<compile_context>
chip_gen: v6e
topology: v6e:2x2x1
jax: 0.10.0
libtpu: 0.0.40
codegen_flags: <defaults>
</compile_context>

<pallas_src>
import functools

import jax
import jax.numpy as jnp
from jax.experimental import pallas as pl
from jax.experimental.pallas import tpu as pltpu

LN_EPS = 1e-5  # nn.LayerNorm default


def _layernorm(y, w, b):
    mu = jnp.mean(y, axis=-1, keepdims=True)
    var = jnp.mean((y - mu) ** 2, axis=-1, keepdims=True)
    return (y - mu) * jax.lax.rsqrt(var + LN_EPS) * w + b


# ---------------------------------------------------------------------------
# One fully-fused forward pass: the whole batch in a single grid step.
# ---------------------------------------------------------------------------
def fused_forward_kernel(x_ref, pos_ref,
                         wqkv_ref, wu_ref, bu_ref,
                         ln1w_ref, ln1b_ref,
                         w1_ref, b1_ref, w2_ref, b2_ref,
                         ln2w_ref, ln2b_ref,
                         wp_ref, bp_ref,
                         o_ref, *, b, t, heads, emb, depth, mm_dtype):
    he = heads * emb
    qscale = emb ** (-0.5)          # == dividing q and k each by emb**0.25

    # positional embedding added to every batch element (f32)
    x = (x_ref[...].reshape(b, t, emb) + pos_ref[...]).reshape(b * t, emb)

    for d in range(depth):          # static unroll (depth=2)
        # fused q/k/v projection: (b*t, e) @ (e, 3*he) -> (b*t, 3*he)
        proj = jnp.dot(x.astype(mm_dtype), wqkv_ref[d],
                       preferred_element_type=jnp.float32)
        q = proj[:, :he] * qscale               # whole-vreg lane slices (he=128)
        k = proj[:, he:2 * he]
        v = proj[:, 2 * he:]

        # split (batch, head) tiles into one stacked (b*heads, t, e) array
        def split_heads(m):
            return jnp.stack(
                [m[bb * t:(bb + 1) * t, hh * emb:(hh + 1) * emb]
                 for bb in range(b) for hh in range(heads)], axis=0)

        q3, k3, v3 = split_heads(q), split_heads(k), split_heads(v)

        # all-head, all-batch scores in one batched matmul (f32 throughout)
        scores = jnp.einsum('bqe,bke->bqk', q3, k3,
                            preferred_element_type=jnp.float32)   # (b*h, t, t)
        m_ = jnp.max(scores, axis=-1, keepdims=True)
        p = jnp.exp(scores - m_)
        denom = jnp.sum(p, axis=-1, keepdims=True)
        p = p * pl.reciprocal(denom, approx=True)                 # EUP divide
        out3 = jnp.einsum('bqk,bke->bqe', p, v3,
                          preferred_element_type=jnp.float32)     # (b*h, t, e)

        # merge heads back to (b*t, he) for the single K=he unify matmul
        att = jnp.concatenate(
            [jnp.concatenate([out3[bb * heads + hh] for hh in range(heads)],
                             axis=-1)
             for bb in range(b)], axis=0)

        attended = jnp.dot(att.astype(mm_dtype), wu_ref[d],
                           preferred_element_type=jnp.float32) + bu_ref[d]

        # residual + LayerNorm1 (f32)
        y = _layernorm(attended + x, ln1w_ref[d], ln1b_ref[d])

        # feed-forward: Linear(e, 4e) -> ReLU -> Linear(4e, e)
        h1 = jnp.maximum(
            jnp.dot(y.astype(mm_dtype), w1_ref[d],
                    preferred_element_type=jnp.float32) + b1_ref[d], 0.0)
        ff = jnp.dot(h1.astype(mm_dtype), w2_ref[d],
                     preferred_element_type=jnp.float32) + b2_ref[d]

        # residual + LayerNorm2 (f32)
        x = _layernorm(ff + y, ln2w_ref[d], ln2b_ref[d])

    # global max-pool over t + classifier, fused; one lane-dense store
    pooled = jnp.max(x.reshape(b, t, emb), axis=1)                 # (b, e)
    logits = jnp.dot(pooled.astype(mm_dtype), wp_ref[...],
                     preferred_element_type=jnp.float32) + bp_ref[...]
    o_ref[...] = logits                                            # (b, nc)


def rtransformer_forward(x, params):
    b, t, e = x.shape
    heads, depth = params["heads"], params["depth"]
    nc = params["wp"].shape[-1]
    assert t <= params["pos_emb"].shape[0], "t exceeds positional-embedding table"
    mm_dtype = jnp.bfloat16

    pos = params["pos_emb"][:t]                                    # (t, e)
    # fused qkv weight; matmul weights as bf16 operands, biases/LN stay f32
    wqkv = jnp.concatenate([params["wq"], params["wk"], params["wv"]],
                           axis=-1).astype(mm_dtype)               # (d, e, 3*he)
    wu = params["wu"].astype(mm_dtype)
    w1 = params["w1"].astype(mm_dtype)
    w2 = params["w2"].astype(mm_dtype)
    wp = params["wp"].astype(mm_dtype)

    x2d = x.reshape(b * t, e)                                      # free reshape

    args = [x2d, pos, wqkv, wu, params["bu"],
            params["ln1w"], params["ln1b"],
            w1, params["b1"], w2, params["b2"],
            params["ln2w"], params["ln2b"], wp, params["bp"]]

    in_specs = [pl.BlockSpec(a.shape, lambda i, _nd=a.ndim: (0,) * _nd)
                for a in args]                                     # all resident

    kernel = functools.partial(fused_forward_kernel, b=b, t=t, heads=heads,
                               emb=e, depth=depth, mm_dtype=mm_dtype)

    out = pl.pallas_call(
        kernel,
        out_shape=jax.ShapeDtypeStruct((b, nc), jnp.float32),
        grid_spec=pltpu.PrefetchScalarGridSpec(
            num_scalar_prefetch=0,
            grid=(1,),                       # whole batch in one step
            in_specs=in_specs,
            out_specs=pl.BlockSpec((b, nc), lambda i: (0, 0)),
        ),
        compiler_params=pltpu.CompilerParams(
            dimension_semantics=("arbitrary",)),
    )(*args)

    return jnp.squeeze(out)                   # mirrors torch.squeeze


# ---------------------------------------------------------------------------
# Parameters (deterministic synthetic init, stacked over depth)
# ---------------------------------------------------------------------------
def init_params(key, emb, heads, depth, seq_length, num_classes):
    keys = jax.random.split(key, 2 + 6 * depth)
    it = iter(keys)

    def nrm(shape, scale=0.1):
        return (scale * jax.random.normal(next(it), shape)).astype(jnp.float32)

    he = heads * emb
    pos_emb = nrm((seq_length, emb))
    wq, wk, wv, wu, w1, w2 = [], [], [], [], [], []
    for _ in range(depth):
        wq.append(nrm((emb, he)))
        wk.append(nrm((emb, he)))
        wv.append(nrm((emb, he)))
        wu.append(nrm((he, emb)))
        w1.append(nrm((emb, 4 * emb)))
        w2.append(nrm((4 * emb, emb)))
    wp = nrm((emb, num_classes))
    return {
        "pos_emb": pos_emb,
        "wq": jnp.stack(wq), "wk": jnp.stack(wk), "wv": jnp.stack(wv),
        "wu": jnp.stack(wu),
        "bu": jnp.zeros((depth, 1, emb), jnp.float32),
        "ln1w": jnp.ones((depth, 1, emb), jnp.float32),
        "ln1b": jnp.zeros((depth, 1, emb), jnp.float32),
        "w1": jnp.stack(w1),
        "b1": jnp.zeros((depth, 1, 4 * emb), jnp.float32),
        "w2": jnp.stack(w2),
        "b2": jnp.zeros((depth, 1, emb), jnp.float32),
        "ln2w": jnp.ones((depth, 1, emb), jnp.float32),
        "ln2b": jnp.zeros((depth, 1, emb), jnp.float32),
        "wp": wp,
        "bp": jnp.zeros((1, num_classes), jnp.float32),
        "heads": heads, "depth": depth,
    }


# ---------------------------------------------------------------------------
# Pure-JAX reference with matching numerics:
#   bf16 operands for projection / unify / FF / classifier matmuls,
#   attention inner path (q.k^T, softmax, p@v) in f32.
# ---------------------------------------------------------------------------
def reference_forward(x, params):
    heads, depth = params["heads"], params["depth"]
    b, t, e = x.shape
    mmt = jnp.bfloat16

    def mm(a, w):
        return jnp.dot(a.astype(mmt), w.astype(mmt),
                       preferred_element_type=jnp.float32)

    y = x + params["pos_emb"][:t][None, :, :]
    qscale = e ** (-0.5)
    for d in range(depth):
        q = mm(y, params["wq"][d]) * qscale
        k = mm(y, params["wk"][d])
        v = mm(y, params["wv"][d])
        outs = []
        for hh in range(heads):
            lo, hi = hh * e, (hh + 1) * e
            s = jnp.einsum("bqe,bke->bqk", q[..., lo:hi], k[..., lo:hi],
                           preferred_element_type=jnp.float32)
            p = jax.nn.softmax(s, axis=-1)
            outs.append(jnp.einsum("bqk,bke->bqe", p, v[..., lo:hi],
                                   preferred_element_type=jnp.float32))
        concat = jnp.concatenate(outs, axis=-1)
        attended = mm(concat, params["wu"][d]) + params["bu"][d]
        y1 = _layernorm(attended + y, params["ln1w"][d], params["ln1b"][d])
        h1 = jnp.maximum(mm(y1, params["w1"][d]) + params["b1"][d], 0.0)
        ff = mm(h1, params["w2"][d]) + params["b2"][d]
        y = _layernorm(ff + y1, params["ln2w"][d], params["ln2b"][d])
    pooled = jnp.max(y, axis=1)
    logits = mm(pooled, params["wp"]) + params["bp"]
    return jnp.squeeze(logits)


if __name__ == "__main__":
    # Small shapes consistent with the module's forward: x is (b, t, e) floats.
    b, t, emb = 2, 8, 32
    heads, depth, seq_length, num_classes = 4, 2, 8, 4

    key = jax.random.PRNGKey(0)
    kx, kp = jax.random.split(key)
    x = jax.random.normal(kx, (b, t, emb), dtype=jnp.float32)
    params = init_params(kp, emb, heads, depth, seq_length, num_classes)

    out = jax.block_until_ready(rtransformer_forward(x, params))
    ref = jax.block_until_ready(reference_forward(x, params))

    assert out.shape == (b, num_classes), out.shape
    assert not bool(jnp.any(jnp.isnan(out)))
    assert jnp.allclose(out, ref, atol=2e-2, rtol=2e-2), float(
        jnp.max(jnp.abs(out - ref)))

    print("KERNEL_OK")
</pallas_src>

<mosaic_0001>
module attributes {stable_mosaic.version = 11 : i64} {
  func.func @fused_forward_kernel(%arg0: i32, %arg1: memref<16x32xf32, #tpu.memory_space<vmem>>, %arg2: memref<8x32xf32, #tpu.memory_space<vmem>>, %arg3: memref<2x32x384xbf16, #tpu.memory_space<vmem>>, %arg4: memref<2x128x32xbf16, #tpu.memory_space<vmem>>, %arg5: memref<2x1x32xf32, #tpu.memory_space<vmem>>, %arg6: memref<2x1x32xf32, #tpu.memory_space<vmem>>, %arg7: memref<2x1x32xf32, #tpu.memory_space<vmem>>, %arg8: memref<2x32x128xbf16, #tpu.memory_space<vmem>>, %arg9: memref<2x1x128xf32, #tpu.memory_space<vmem>>, %arg10: memref<2x128x32xbf16, #tpu.memory_space<vmem>>, %arg11: memref<2x1x32xf32, #tpu.memory_space<vmem>>, %arg12: memref<2x1x32xf32, #tpu.memory_space<vmem>>, %arg13: memref<2x1x32xf32, #tpu.memory_space<vmem>>, %arg14: memref<32x4xbf16, #tpu.memory_space<vmem>>, %arg15: memref<1x4xf32, #tpu.memory_space<vmem>>, %arg16: memref<2x4xf32, #tpu.memory_space<vmem>>) attributes {dimension_semantics = [#tpu.dimension_semantics<arbitrary>], iteration_bounds = array<i64: 1>, scalar_prefetch = 0 : i64, scratch_operands = 0 : i64, tpu.core_type = #tpu.core_type<tc>, window_params = [{pipeline_mode = #tpu.pipeline_mode<synchronous>, transform_indices = @transform_0, window_bounds = array<i64: 16, 32>}, {pipeline_mode = #tpu.pipeline_mode<synchronous>, transform_indices = @transform_1, window_bounds = array<i64: 8, 32>}, {pipeline_mode = #tpu.pipeline_mode<synchronous>, transform_indices = @transform_2, window_bounds = array<i64: 2, 32, 384>}, {pipeline_mode = #tpu.pipeline_mode<synchronous>, transform_indices = @transform_3, window_bounds = array<i64: 2, 128, 32>}, {pipeline_mode = #tpu.pipeline_mode<synchronous>, transform_indices = @transform_4, window_bounds = array<i64: 2, 1, 32>}, {pipeline_mode = #tpu.pipeline_mode<synchronous>, transform_indices = @transform_5, window_bounds = array<i64: 2, 1, 32>}, {pipeline_mode = #tpu.pipeline_mode<synchronous>, transform_indices = @transform_6, window_bounds = array<i64: 2, 1, 32>}, {pipeline_mode = #tpu.pipeline_mode<synchronous>, transform_indices = @transform_7, window_bounds = array<i64: 2, 32, 128>}, {pipeline_mode = #tpu.pipeline_mode<synchronous>, transform_indices = @transform_8, window_bounds = array<i64: 2, 1, 128>}, {pipeline_mode = #tpu.pipeline_mode<synchronous>, transform_indices = @transform_9, window_bounds = array<i64: 2, 128, 32>}, {pipeline_mode = #tpu.pipeline_mode<synchronous>, transform_indices = @transform_10, window_bounds = array<i64: 2, 1, 32>}, {pipeline_mode = #tpu.pipeline_mode<synchronous>, transform_indices = @transform_11, window_bounds = array<i64: 2, 1, 32>}, {pipeline_mode = #tpu.pipeline_mode<synchronous>, transform_indices = @transform_12, window_bounds = array<i64: 2, 1, 32>}, {pipeline_mode = #tpu.pipeline_mode<synchronous>, transform_indices = @transform_13, window_bounds = array<i64: 32, 4>}, {pipeline_mode = #tpu.pipeline_mode<synchronous>, transform_indices = @transform_14, window_bounds = array<i64: 1, 4>}, {pipeline_mode = #tpu.pipeline_mode<synchronous>, transform_indices = @transform_15, window_bounds = array<i64: 2, 4>}]} {
    %c0 = arith.constant 0 : index
    %c0_0 = arith.constant 0 : index
    %0 = vector.load %arg1[%c0, %c0_0] : memref<16x32xf32, #tpu.memory_space<vmem>>, vector<16x32xf32>
    %1 = vector.shape_cast %0 : vector<16x32xf32> to vector<2x8x32xf32>
    %c0_1 = arith.constant 0 : index
    %c0_2 = arith.constant 0 : index
    %2 = vector.load %arg2[%c0_1, %c0_2] : memref<8x32xf32, #tpu.memory_space<vmem>>, vector<8x32xf32>
    %3 = vector.shape_cast %2 : vector<8x32xf32> to vector<1x8x32xf32>
    %4 = vector.broadcast %3 : vector<1x8x32xf32> to vector<2x8x32xf32>
    %5 = arith.addf %1, %4 : vector<2x8x32xf32>
    %6 = vector.shape_cast %5 : vector<2x8x32xf32> to vector<16x32xf32>
    %7 = arith.truncf %6 : vector<16x32xf32> to vector<16x32xbf16>
    %c0_3 = arith.constant 0 : index
    %c0_4 = arith.constant 0 : index
    %c0_5 = arith.constant 0 : index
    %8 = vector.load %arg3[%c0_3, %c0_4, %c0_5] : memref<2x32x384xbf16, #tpu.memory_space<vmem>>, vector<1x32x384xbf16>
    %9 = vector.shape_cast %8 : vector<1x32x384xbf16> to vector<32x384xbf16>
    %cst = arith.constant dense<0.000000e+00> : vector<16x384xf32>
    %10 = tpu.matmul %7, %9, %cst {dimension_numbers = #tpu.dot_dimension_numbers<[1], [0], [0], [1], [0, 0, 1, 1], [], []>} : vector<16x32xbf16>, vector<32x384xbf16>, vector<16x384xf32> -> vector<16x384xf32>
    %11 = vector.extract_strided_slice %10 {offsets = [0, 0], sizes = [16, 128], strides = [1, 1]} : vector<16x384xf32> to vector<16x128xf32>
    %cst_6 = arith.constant 0.176776692 : f32
    %12 = vector.broadcast %cst_6 : f32 to vector<16x128xf32>
    %13 = arith.mulf %11, %12 : vector<16x128xf32>
    %14 = vector.extract_strided_slice %10 {offsets = [0, 128], sizes = [16, 128], strides = [1, 1]} : vector<16x384xf32> to vector<16x128xf32>
    %15 = vector.extract_strided_slice %10 {offsets = [0, 256], sizes = [16, 128], strides = [1, 1]} : vector<16x384xf32> to vector<16x128xf32>
    %16 = vector.extract_strided_slice %13 {offsets = [0, 0], sizes = [8, 32], strides = [1, 1]} : vector<16x128xf32> to vector<8x32xf32>
    %17 = vector.extract_strided_slice %13 {offsets = [0, 32], sizes = [8, 32], strides = [1, 1]} : vector<16x128xf32> to vector<8x32xf32>
    %18 = vector.extract_strided_slice %13 {offsets = [0, 64], sizes = [8, 32], strides = [1, 1]} : vector<16x128xf32> to vector<8x32xf32>
    %19 = vector.extract_strided_slice %13 {offsets = [0, 96], sizes = [8, 32], strides = [1, 1]} : vector<16x128xf32> to vector<8x32xf32>
    %20 = vector.extract_strided_slice %13 {offsets = [8, 0], sizes = [8, 32], strides = [1, 1]} : vector<16x128xf32> to vector<8x32xf32>
    %21 = vector.extract_strided_slice %13 {offsets = [8, 32], sizes = [8, 32], strides = [1, 1]} : vector<16x128xf32> to vector<8x32xf32>
    %22 = vector.extract_strided_slice %13 {offsets = [8, 64], sizes = [8, 32], strides = [1, 1]} : vector<16x128xf32> to vector<8x32xf32>
    %23 = vector.extract_strided_slice %13 {offsets = [8, 96], sizes = [8, 32], strides = [1, 1]} : vector<16x128xf32> to vector<8x32xf32>
    %24 = vector.shape_cast %16 : vector<8x32xf32> to vector<1x8x32xf32>
    %25 = vector.shape_cast %17 : vector<8x32xf32> to vector<1x8x32xf32>
    %26 = vector.shape_cast %18 : vector<8x32xf32> to vector<1x8x32xf32>
    %27 = vector.shape_cast %19 : vector<8x32xf32> to vector<1x8x32xf32>
    %28 = vector.shape_cast %20 : vector<8x32xf32> to vector<1x8x32xf32>
    %29 = vector.shape_cast %21 : vector<8x32xf32> to vector<1x8x32xf32>
    %30 = vector.shape_cast %22 : vector<8x32xf32> to vector<1x8x32xf32>
    %31 = vector.shape_cast %23 : vector<8x32xf32> to vector<1x8x32xf32>
    %32 = tpu.concatenate %24, %25, %26, %27, %28, %29, %30, %31 in 0 : vector<1x8x32xf32>, vector<1x8x32xf32>, vector<1x8x32xf32>, vector<1x8x32xf32>, vector<1x8x32xf32>, vector<1x8x32xf32>, vector<1x8x32xf32>, vector<1x8x32xf32> -> vector<8x8x32xf32>
    %33 = vector.extract_strided_slice %14 {offsets = [0, 0], sizes = [8, 32], strides = [1, 1]} : vector<16x128xf32> to vector<8x32xf32>
    %34 = vector.extract_strided_slice %14 {offsets = [0, 32], sizes = [8, 32], strides = [1, 1]} : vector<16x128xf32> to vector<8x32xf32>
    %35 = vector.extract_strided_slice %14 {offsets = [0, 64], sizes = [8, 32], strides = [1, 1]} : vector<16x128xf32> to vector<8x32xf32>
    %36 = vector.extract_strided_slice %14 {offsets = [0, 96], sizes = [8, 32], strides = [1, 1]} : vector<16x128xf32> to vector<8x32xf32>
    %37 = vector.extract_strided_slice %14 {offsets = [8, 0], sizes = [8, 32], strides = [1, 1]} : vector<16x128xf32> to vector<8x32xf32>
    %38 = vector.extract_strided_slice %14 {offsets = [8, 32], sizes = [8, 32], strides = [1, 1]} : vector<16x128xf32> to vector<8x32xf32>
    %39 = vector.extract_strided_slice %14 {offsets = [8, 64], sizes = [8, 32], strides = [1, 1]} : vector<16x128xf32> to vector<8x32xf32>
    %40 = vector.extract_strided_slice %14 {offsets = [8, 96], sizes = [8, 32], strides = [1, 1]} : vector<16x128xf32> to vector<8x32xf32>
    %41 = vector.shape_cast %33 : vector<8x32xf32> to vector<1x8x32xf32>
    %42 = vector.shape_cast %34 : vector<8x32xf32> to vector<1x8x32xf32>
    %43 = vector.shape_cast %35 : vector<8x32xf32> to vector<1x8x32xf32>
    %44 = vector.shape_cast %36 : vector<8x32xf32> to vector<1x8x32xf32>
    %45 = vector.shape_cast %37 : vector<8x32xf32> to vector<1x8x32xf32>
    %46 = vector.shape_cast %38 : vector<8x32xf32> to vector<1x8x32xf32>
    %47 = vector.shape_cast %39 : vector<8x32xf32> to vector<1x8x32xf32>
    %48 = vector.shape_cast %40 : vector<8x32xf32> to vector<1x8x32xf32>
    %49 = tpu.concatenate %41, %42, %43, %44, %45, %46, %47, %48 in 0 : vector<1x8x32xf32>, vector<1x8x32xf32>, vector<1x8x32xf32>, vector<1x8x32xf32>, vector<1x8x32xf32>, vector<1x8x32xf32>, vector<1x8x32xf32>, vector<1x8x32xf32> -> vector<8x8x32xf32>
    %50 = vector.extract_strided_slice %15 {offsets = [0, 0], sizes = [8, 32], strides = [1, 1]} : vector<16x128xf32> to vector<8x32xf32>
    %51 = vector.extract_strided_slice %15 {offsets = [0, 32], sizes = [8, 32], strides = [1, 1]} : vector<16x128xf32> to vector<8x32xf32>
    %52 = vector.extract_strided_slice %15 {offsets = [0, 64], sizes = [8, 32], strides = [1, 1]} : vector<16x128xf32> to vector<8x32xf32>
    %53 = vector.extract_strided_slice %15 {offsets = [0, 96], sizes = [8, 32], strides = [1, 1]} : vector<16x128xf32> to vector<8x32xf32>
    %54 = vector.extract_strided_slice %15 {offsets = [8, 0], sizes = [8, 32], strides = [1, 1]} : vector<16x128xf32> to vector<8x32xf32>
    %55 = vector.extract_strided_slice %15 {offsets = [8, 32], sizes = [8, 32], strides = [1, 1]} : vector<16x128xf32> to vector<8x32xf32>
    %56 = vector.extract_strided_slice %15 {offsets = [8, 64], sizes = [8, 32], strides = [1, 1]} : vector<16x128xf32> to vector<8x32xf32>
    %57 = vector.extract_strided_slice %15 {offsets = [8, 96], sizes = [8, 32], strides = [1, 1]} : vector<16x128xf32> to vector<8x32xf32>
    %58 = vector.shape_cast %50 : vector<8x32xf32> to vector<1x8x32xf32>
    %59 = vector.shape_cast %51 : vector<8x32xf32> to vector<1x8x32xf32>
    %60 = vector.shape_cast %52 : vector<8x32xf32> to vector<1x8x32xf32>
    %61 = vector.shape_cast %53 : vector<8x32xf32> to vector<1x8x32xf32>
    %62 = vector.shape_cast %54 : vector<8x32xf32> to vector<1x8x32xf32>
    %63 = vector.shape_cast %55 : vector<8x32xf32> to vector<1x8x32xf32>
    %64 = vector.shape_cast %56 : vector<8x32xf32> to vector<1x8x32xf32>
    %65 = vector.shape_cast %57 : vector<8x32xf32> to vector<1x8x32xf32>
    %66 = tpu.concatenate %58, %59, %60, %61, %62, %63, %64, %65 in 0 : vector<1x8x32xf32>, vector<1x8x32xf32>, vector<1x8x32xf32>, vector<1x8x32xf32>, vector<1x8x32xf32>, vector<1x8x32xf32>, vector<1x8x32xf32>, vector<1x8x32xf32> -> vector<8x8x32xf32>
    "tpu.trace_start"() <{level = 10 : i32, message = "bqe,bke->bqk"}> : () -> ()
    %cst_7 = arith.constant dense<0.000000e+00> : vector<8x8x8xf32>
    %67 = tpu.matmul %32, %49, %cst_7 {dimension_numbers = #tpu.dot_dimension_numbers<[2], [2], [1], [1], [0, 0, 0, 1, 1, 1], [0], [0]>} : vector<8x8x32xf32>, vector<8x8x32xf32>, vector<8x8x8xf32> -> vector<8x8x8xf32>
    "tpu.trace_stop"() : () -> ()
    %cst_8 = arith.constant dense<0xFF800000> : vector<8x8xf32>
    %68 = vector.multi_reduction <maximumf>, %67, %cst_8 [2] : vector<8x8x8xf32> to vector<8x8xf32>
    %69 = vector.shape_cast %68 : vector<8x8xf32> to vector<8x8x1xf32>
    %70 = vector.broadcast %69 : vector<8x8x1xf32> to vector<8x8x8xf32>
    %71 = arith.subf %67, %70 : vector<8x8x8xf32>
    %72 = math.exp %71 : vector<8x8x8xf32>
    %cst_9 = arith.constant dense<0.000000e+00> : vector<8x8xf32>
    %73 = vector.multi_reduction <add>, %72, %cst_9 [2] : vector<8x8x8xf32> to vector<8x8xf32>
    %74 = vector.shape_cast %73 : vector<8x8xf32> to vector<8x8x1xf32>
    %75 = tpu.reciprocal %74 {approx = true} : vector<8x8x1xf32> -> vector<8x8x1xf32>
    %76 = vector.broadcast %75 : vector<8x8x1xf32> to vector<8x8x8xf32>
    %77 = arith.mulf %72, %76 : vector<8x8x8xf32>
    "tpu.trace_start"() <{level = 10 : i32, message = "bqk,bke->bqe"}> : () -> ()
    %cst_10 = arith.constant dense<0.000000e+00> : vector<8x8x32xf32>
    %78 = tpu.matmul %77, %66, %cst_10 {dimension_numbers = #tpu.dot_dimension_numbers<[2], [1], [1], [2], [0, 0, 0, 1, 1, 2], [0], [0]>} : vector<8x8x8xf32>, vector<8x8x32xf32>, vector<8x8x32xf32> -> vector<8x8x32xf32>
    "tpu.trace_stop"() : () -> ()
    %79 = vector.extract_strided_slice %78 {offsets = [0, 0, 0], sizes = [1, 8, 32], strides = [1, 1, 1]} : vector<8x8x32xf32> to vector<1x8x32xf32>
    %80 = vector.shape_cast %79 : vector<1x8x32xf32> to vector<8x32xf32>
    %81 = vector.extract_strided_slice %78 {offsets = [1, 0, 0], sizes = [1, 8, 32], strides = [1, 1, 1]} : vector<8x8x32xf32> to vector<1x8x32xf32>
    %82 = vector.shape_cast %81 : vector<1x8x32xf32> to vector<8x32xf32>
    %83 = vector.extract_strided_slice %78 {offsets = [2, 0, 0], sizes = [1, 8, 32], strides = [1, 1, 1]} : vector<8x8x32xf32> to vector<1x8x32xf32>
    %84 = vector.shape_cast %83 : vector<1x8x32xf32> to vector<8x32xf32>
    %85 = vector.extract_strided_slice %78 {offsets = [3, 0, 0], sizes = [1, 8, 32], strides = [1, 1, 1]} : vector<8x8x32xf32> to vector<1x8x32xf32>
    %86 = vector.shape_cast %85 : vector<1x8x32xf32> to vector<8x32xf32>
    %87 = tpu.concatenate %80, %82, %84, %86 in 1 : vector<8x32xf32>, vector<8x32xf32>, vector<8x32xf32>, vector<8x32xf32> -> vector<8x128xf32>
    %88 = vector.extract_strided_slice %78 {offsets = [4, 0, 0], sizes = [1, 8, 32], strides = [1, 1, 1]} : vector<8x8x32xf32> to vector<1x8x32xf32>
    %89 = vector.shape_cast %88 : vector<1x8x32xf32> to vector<8x32xf32>
    %90 = vector.extract_strided_slice %78 {offsets = [5, 0, 0], sizes = [1, 8, 32], strides = [1, 1, 1]} : vector<8x8x32xf32> to vector<1x8x32xf32>
    %91 = vector.shape_cast %90 : vector<1x8x32xf32> to vector<8x32xf32>
    %92 = vector.extract_strided_slice %78 {offsets = [6, 0, 0], sizes = [1, 8, 32], strides = [1, 1, 1]} : vector<8x8x32xf32> to vector<1x8x32xf32>
    %93 = vector.shape_cast %92 : vector<1x8x32xf32> to vector<8x32xf32>
    %94 = vector.extract_strided_slice %78 {offsets = [7, 0, 0], sizes = [1, 8, 32], strides = [1, 1, 1]} : vector<8x8x32xf32> to vector<1x8x32xf32>
    %95 = vector.shape_cast %94 : vector<1x8x32xf32> to vector<8x32xf32>
    %96 = tpu.concatenate %89, %91, %93, %95 in 1 : vector<8x32xf32>, vector<8x32xf32>, vector<8x32xf32>, vector<8x32xf32> -> vector<8x128xf32>
    %97 = tpu.concatenate %87, %96 in 0 : vector<8x128xf32>, vector<8x128xf32> -> vector<16x128xf32>
    %98 = arith.truncf %97 : vector<16x128xf32> to vector<16x128xbf16>
    %c0_11 = arith.constant 0 : index
    %c0_12 = arith.constant 0 : index
    %c0_13 = arith.constant 0 : index
    %99 = vector.load %arg4[%c0_11, %c0_12, %c0_13] : memref<2x128x32xbf16, #tpu.memory_space<vmem>>, vector<1x128x32xbf16>
    %100 = vector.shape_cast %99 : vector<1x128x32xbf16> to vector<128x32xbf16>
    %cst_14 = arith.constant dense<0.000000e+00> : vector<16x32xf32>
    %101 = tpu.matmul %98, %100, %cst_14 {dimension_numbers = #tpu.dot_dimension_numbers<[1], [0], [0], [1], [0, 0, 1, 1], [], []>} : vector<16x128xbf16>, vector<128x32xbf16>, vector<16x32xf32> -> vector<16x32xf32>
    %c0_15 = arith.constant 0 : index
    %c0_16 = arith.constant 0 : index
    %c0_17 = arith.constant 0 : index
    %102 = vector.load %arg5[%c0_15, %c0_16, %c0_17] : memref<2x1x32xf32, #tpu.memory_space<vmem>>, vector<1x1x32xf32>
    %103 = vector.shape_cast %102 : vector<1x1x32xf32> to vector<1x32xf32>
    %104 = vector.broadcast %103 : vector<1x32xf32> to vector<16x32xf32>
    %105 = arith.addf %101, %104 : vector<16x32xf32>
    %106 = arith.addf %105, %6 : vector<16x32xf32>
    %c0_18 = arith.constant 0 : index
    %c0_19 = arith.constant 0 : index
    %c0_20 = arith.constant 0 : index
    %107 = vector.load %arg6[%c0_18, %c0_19, %c0_20] : memref<2x1x32xf32, #tpu.memory_space<vmem>>, vector<1x1x32xf32>
    %108 = vector.shape_cast %107 : vector<1x1x32xf32> to vector<1x32xf32>
    %c0_21 = arith.constant 0 : index
    %c0_22 = arith.constant 0 : index
    %c0_23 = arith.constant 0 : index
    %109 = vector.load %arg7[%c0_21, %c0_22, %c0_23] : memref<2x1x32xf32, #tpu.memory_space<vmem>>, vector<1x1x32xf32>
    %110 = vector.shape_cast %109 : vector<1x1x32xf32> to vector<1x32xf32>
    %cst_24 = arith.constant dense<0.000000e+00> : vector<16xf32>
    %111 = vector.multi_reduction <add>, %106, %cst_24 [1] : vector<16x32xf32> to vector<16xf32>
    %112 = vector.shape_cast %111 : vector<16xf32> to vector<16x1xf32>
    %cst_25 = arith.constant 3.200000e+01 : f32
    %113 = vector.broadcast %cst_25 : f32 to vector<16x1xf32>
    %114 = arith.divf %112, %113 : vector<16x1xf32>
    %115 = vector.broadcast %114 : vector<16x1xf32> to vector<16x32xf32>
    %116 = arith.subf %106, %115 : vector<16x32xf32>
    %117 = arith.mulf %116, %116 : vector<16x32xf32>
    %cst_26 = arith.constant dense<0.000000e+00> : vector<16xf32>
    %118 = vector.multi_reduction <add>, %117, %cst_26 [1] : vector<16x32xf32> to vector<16xf32>
    %119 = vector.shape_cast %118 : vector<16xf32> to vector<16x1xf32>
    %cst_27 = arith.constant 3.200000e+01 : f32
    %120 = vector.broadcast %cst_27 : f32 to vector<16x1xf32>
    %121 = arith.divf %119, %120 : vector<16x1xf32>
    %122 = vector.broadcast %114 : vector<16x1xf32> to vector<16x32xf32>
    %123 = arith.subf %106, %122 : vector<16x32xf32>
    %cst_28 = arith.constant 9.99999974E-6 : f32
    %124 = vector.broadcast %cst_28 : f32 to vector<16x1xf32>
    %125 = arith.addf %121, %124 : vector<16x1xf32>
    %126 = math.rsqrt %125 : vector<16x1xf32>
    %127 = vector.broadcast %126 : vector<16x1xf32> to vector<16x32xf32>
    %128 = arith.mulf %123, %127 : vector<16x32xf32>
    %129 = vector.broadcast %108 : vector<1x32xf32> to vector<16x32xf32>
    %130 = arith.mulf %128, %129 : vector<16x32xf32>
    %131 = vector.broadcast %110 : vector<1x32xf32> to vector<16x32xf32>
    %132 = arith.addf %130, %131 : vector<16x32xf32>
    %133 = arith.truncf %132 : vector<16x32xf32> to vector<16x32xbf16>
    %c0_29 = arith.constant 0 : index
    %c0_30 = arith.constant 0 : index
    %c0_31 = arith.constant 0 : index
    %134 = vector.load %arg8[%c0_29, %c0_30, %c0_31] : memref<2x32x128xbf16, #tpu.memory_space<vmem>>, vector<1x32x128xbf16>
    %135 = vector.shape_cast %134 : vector<1x32x128xbf16> to vector<32x128xbf16>
    %cst_32 = arith.constant dense<0.000000e+00> : vector<16x128xf32>
    %136 = tpu.matmul %133, %135, %cst_32 {dimension_numbers = #tpu.dot_dimension_numbers<[1], [0], [0], [1], [0, 0, 1, 1], [], []>} : vector<16x32xbf16>, vector<32x128xbf16>, vector<16x128xf32> -> vector<16x128xf32>
    %c0_33 = arith.constant 0 : index
    %c0_34 = arith.constant 0 : index
    %c0_35 = arith.constant 0 : index
    %137 = vector.load %arg9[%c0_33, %c0_34, %c0_35] : memref<2x1x128xf32, #tpu.memory_space<vmem>>, vector<1x1x128xf32>
    %138 = vector.shape_cast %137 : vector<1x1x128xf32> to vector<1x128xf32>
    %139 = vector.broadcast %138 : vector<1x128xf32> to vector<16x128xf32>
    %140 = arith.addf %136, %139 : vector<16x128xf32>
    %cst_36 = arith.constant 0.000000e+00 : f32
    %141 = vector.broadcast %cst_36 : f32 to vector<16x128xf32>
    %142 = arith.maximumf %140, %141 : vector<16x128xf32>
    %143 = arith.truncf %142 : vector<16x128xf32> to vector<16x128xbf16>
    %c0_37 = arith.constant 0 : index
    %c0_38 = arith.constant 0 : index
    %c0_39 = arith.constant 0 : index
    %144 = vector.load %arg10[%c0_37, %c0_38, %c0_39] : memref<2x128x32xbf16, #tpu.memory_space<vmem>>, vector<1x128x32xbf16>
    %145 = vector.shape_cast %144 : vector<1x128x32xbf16> to vector<128x32xbf16>
    %cst_40 = arith.constant dense<0.000000e+00> : vector<16x32xf32>
    %146 = tpu.matmul %143, %145, %cst_40 {dimension_numbers = #tpu.dot_dimension_numbers<[1], [0], [0], [1], [0, 0, 1, 1], [], []>} : vector<16x128xbf16>, vector<128x32xbf16>, vector<16x32xf32> -> vector<16x32xf32>
    %c0_41 = arith.constant 0 : index
    %c0_42 = arith.constant 0 : index
    %c0_43 = arith.constant 0 : index
    %147 = vector.load %arg11[%c0_41, %c0_42, %c0_43] : memref<2x1x32xf32, #tpu.memory_space<vmem>>, vector<1x1x32xf32>
    %148 = vector.shape_cast %147 : vector<1x1x32xf32> to vector<1x32xf32>
    %149 = vector.broadcast %148 : vector<1x32xf32> to vector<16x32xf32>
    %150 = arith.addf %146, %149 : vector<16x32xf32>
    %151 = arith.addf %150, %132 : vector<16x32xf32>
    %c0_44 = arith.constant 0 : index
    %c0_45 = arith.constant 0 : index
    %c0_46 = arith.constant 0 : index
    %152 = vector.load %arg12[%c0_44, %c0_45, %c0_46] : memref<2x1x32xf32, #tpu.memory_space<vmem>>, vector<1x1x32xf32>
    %153 = vector.shape_cast %152 : vector<1x1x32xf32> to vector<1x32xf32>
    %c0_47 = arith.constant 0 : index
    %c0_48 = arith.constant 0 : index
    %c0_49 = arith.constant 0 : index
    %154 = vector.load %arg13[%c0_47, %c0_48, %c0_49] : memref<2x1x32xf32, #tpu.memory_space<vmem>>, vector<1x1x32xf32>
    %155 = vector.shape_cast %154 : vector<1x1x32xf32> to vector<1x32xf32>
    %cst_50 = arith.constant dense<0.000000e+00> : vector<16xf32>
    %156 = vector.multi_reduction <add>, %151, %cst_50 [1] : vector<16x32xf32> to vector<16xf32>
    %157 = vector.shape_cast %156 : vector<16xf32> to vector<16x1xf32>
    %cst_51 = arith.constant 3.200000e+01 : f32
    %158 = vector.broadcast %cst_51 : f32 to vector<16x1xf32>
    %159 = arith.divf %157, %158 : vector<16x1xf32>
    %160 = vector.broadcast %159 : vector<16x1xf32> to vector<16x32xf32>
    %161 = arith.subf %151, %160 : vector<16x32xf32>
    %162 = arith.mulf %161, %161 : vector<16x32xf32>
    %cst_52 = arith.constant dense<0.000000e+00> : vector<16xf32>
    %163 = vector.multi_reduction <add>, %162, %cst_52 [1] : vector<16x32xf32> to vector<16xf32>
    %164 = vector.shape_cast %163 : vector<16xf32> to vector<16x1xf32>
    %cst_53 = arith.constant 3.200000e+01 : f32
    %165 = vector.broadcast %cst_53 : f32 to vector<16x1xf32>
    %166 = arith.divf %164, %165 : vector<16x1xf32>
    %167 = vector.broadcast %159 : vector<16x1xf32> to vector<16x32xf32>
    %168 = arith.subf %151, %167 : vector<16x32xf32>
    %cst_54 = arith.constant 9.99999974E-6 : f32
    %169 = vector.broadcast %cst_54 : f32 to vector<16x1xf32>
    %170 = arith.addf %166, %169 : vector<16x1xf32>
    %171 = math.rsqrt %170 : vector<16x1xf32>
    %172 = vector.broadcast %171 : vector<16x1xf32> to vector<16x32xf32>
    %173 = arith.mulf %168, %172 : vector<16x32xf32>
    %174 = vector.broadcast %153 : vector<1x32xf32> to vector<16x32xf32>
    %175 = arith.mulf %173, %174 : vector<16x32xf32>
    %176 = vector.broadcast %155 : vector<1x32xf32> to vector<16x32xf32>
    %177 = arith.addf %175, %176 : vector<16x32xf32>
    %178 = arith.truncf %177 : vector<16x32xf32> to vector<16x32xbf16>
    %c1 = arith.constant 1 : index
    %c0_55 = arith.constant 0 : index
    %c0_56 = arith.constant 0 : index
    %179 = vector.load %arg3[%c1, %c0_55, %c0_56] : memref<2x32x384xbf16, #tpu.memory_space<vmem>>, vector<1x32x384xbf16>
    %180 = vector.shape_cast %179 : vector<1x32x384xbf16> to vector<32x384xbf16>
    %cst_57 = arith.constant dense<0.000000e+00> : vector<16x384xf32>
    %181 = tpu.matmul %178, %180, %cst_57 {dimension_numbers = #tpu.dot_dimension_numbers<[1], [0], [0], [1], [0, 0, 1, 1], [], []>} : vector<16x32xbf16>, vector<32x384xbf16>, vector<16x384xf32> -> vector<16x384xf32>
    %182 = vector.extract_strided_slice %181 {offsets = [0, 0], sizes = [16, 128], strides = [1, 1]} : vector<16x384xf32> to vector<16x128xf32>
    %cst_58 = arith.constant 0.176776692 : f32
    %183 = vector.broadcast %cst_58 : f32 to vector<16x128xf32>
    %184 = arith.mulf %182, %183 : vector<16x128xf32>
    %185 = vector.extract_strided_slice %181 {offsets = [0, 128], sizes = [16, 128], strides = [1, 1]} : vector<16x384xf32> to vector<16x128xf32>
    %186 = vector.extract_strided_slice %181 {offsets = [0, 256], sizes = [16, 128], strides = [1, 1]} : vector<16x384xf32> to vector<16x128xf32>
    %187 = vector.extract_strided_slice %184 {offsets = [0, 0], sizes = [8, 32], strides = [1, 1]} : vector<16x128xf32> to vector<8x32xf32>
    %188 = vector.extract_strided_slice %184 {offsets = [0, 32], sizes = [8, 32], strides = [1, 1]} : vector<16x128xf32> to vector<8x32xf32>
    %189 = vector.extract_strided_slice %184 {offsets = [0, 64], sizes = [8, 32], strides = [1, 1]} : vector<16x128xf32> to vector<8x32xf32>
    %190 = vector.extract_strided_slice %184 {offsets = [0, 96], sizes = [8, 32], strides = [1, 1]} : vector<16x128xf32> to vector<8x32xf32>
    %191 = vector.extract_strided_slice %184 {offsets = [8, 0], sizes = [8, 32], strides = [1, 1]} : vector<16x128xf32> to vector<8x32xf32>
    %192 = vector.extract_strided_slice %184 {offsets = [8, 32], sizes = [8, 32], strides = [1, 1]} : vector<16x128xf32> to vector<8x32xf32>
    %193 = vector.extract_strided_slice %184 {offsets = [8, 64], sizes = [8, 32], strides = [1, 1]} : vector<16x128xf32> to vector<8x32xf32>
    %194 = vector.extract_strided_slice %184 {offsets = [8, 96], sizes = [8, 32], strides = [1, 1]} : vector<16x128xf32> to vector<8x32xf32>
    %195 = vector.shape_cast %187 : vector<8x32xf32> to vector<1x8x32xf32>
    %196 = vector.shape_cast %188 : vector<8x32xf32> to vector<1x8x32xf32>
    %197 = vector.shape_cast %189 : vector<8x32xf32> to vector<1x8x32xf32>
    %198 = vector.shape_cast %190 : vector<8x32xf32> to vector<1x8x32xf32>
    %199 = vector.shape_cast %191 : vector<8x32xf32> to vector<1x8x32xf32>
    %200 = vector.shape_cast %192 : vector<8x32xf32> to vector<1x8x32xf32>
    %201 = vector.shape_cast %193 : vector<8x32xf32> to vector<1x8x32xf32>
    %202 = vector.shape_cast %194 : vector<8x32xf32> to vector<1x8x32xf32>
    %203 = tpu.concatenate %195, %196, %197, %198, %199, %200, %201, %202 in 0 : vector<1x8x32xf32>, vector<1x8x32xf32>, vector<1x8x32xf32>, vector<1x8x32xf32>, vector<1x8x32xf32>, vector<1x8x32xf32>, vector<1x8x32xf32>, vector<1x8x32xf32> -> vector<8x8x32xf32>
    %204 = vector.extract_strided_slice %185 {offsets = [0, 0], sizes = [8, 32], strides = [1, 1]} : vector<16x128xf32> to vector<8x32xf32>
    %205 = vector.extract_strided_slice %185 {offsets = [0, 32], sizes = [8, 32], strides = [1, 1]} : vector<16x128xf32> to vector<8x32xf32>
    %206 = vector.extract_strided_slice %185 {offsets = [0, 64], sizes = [8, 32], strides = [1, 1]} : vector<16x128xf32> to vector<8x32xf32>
    %207 = vector.extract_strided_slice %185 {offsets = [0, 96], sizes = [8, 32], strides = [1, 1]} : vector<16x128xf32> to vector<8x32xf32>
    %208 = vector.extract_strided_slice %185 {offsets = [8, 0], sizes = [8, 32], strides = [1, 1]} : vector<16x128xf32> to vector<8x32xf32>
    %209 = vector.extract_strided_slice %185 {offsets = [8, 32], sizes = [8, 32], strides = [1, 1]} : vector<16x128xf32> to vector<8x32xf32>
    %210 = vector.extract_strided_slice %185 {offsets = [8, 64], sizes = [8, 32], strides = [1, 1]} : vector<16x128xf32> to vector<8x32xf32>
    %211 = vector.extract_strided_slice %185 {offsets = [8, 96], sizes = [8, 32], strides = [1, 1]} : vector<16x128xf32> to vector<8x32xf32>
    %212 = vector.shape_cast %204 : vector<8x32xf32> to vector<1x8x32xf32>
    %213 = vector.shape_cast %205 : vector<8x32xf32> to vector<1x8x32xf32>
    %214 = vector.shape_cast %206 : vector<8x32xf32> to vector<1x8x32xf32>
    %215 = vector.shape_cast %207 : vector<8x32xf32> to vector<1x8x32xf32>
    %216 = vector.shape_cast %208 : vector<8x32xf32> to vector<1x8x32xf32>
    %217 = vector.shape_cast %209 : vector<8x32xf32> to vector<1x8x32xf32>
    %218 = vector.shape_cast %210 : vector<8x32xf32> to vector<1x8x32xf32>
    %219 = vector.shape_cast %211 : vector<8x32xf32> to vector<1x8x32xf32>
    %220 = tpu.concatenate %212, %213, %214, %215, %216, %217, %218, %219 in 0 : vector<1x8x32xf32>, vector<1x8x32xf32>, vector<1x8x32xf32>, vector<1x8x32xf32>, vector<1x8x32xf32>, vector<1x8x32xf32>, vector<1x8x32xf32>, vector<1x8x32xf32> -> vector<8x8x32xf32>
    %221 = vector.extract_strided_slice %186 {offsets = [0, 0], sizes = [8, 32], strides = [1, 1]} : vector<16x128xf32> to vector<8x32xf32>
    %222 = vector.extract_strided_slice %186 {offsets = [0, 32], sizes = [8, 32], strides = [1, 1]} : vector<16x128xf32> to vector<8x32xf32>
    %223 = vector.extract_strided_slice %186 {offsets = [0, 64], sizes = [8, 32], strides = [1, 1]} : vector<16x128xf32> to vector<8x32xf32>
    %224 = vector.extract_strided_slice %186 {offsets = [0, 96], sizes = [8, 32], strides = [1, 1]} : vector<16x128xf32> to vector<8x32xf32>
    %225 = vector.extract_strided_slice %186 {offsets = [8, 0], sizes = [8, 32], strides = [1, 1]} : vector<16x128xf32> to vector<8x32xf32>
    %226 = vector.extract_strided_slice %186 {offsets = [8, 32], sizes = [8, 32], strides = [1, 1]} : vector<16x128xf32> to vector<8x32xf32>
    %227 = vector.extract_strided_slice %186 {offsets = [8, 64], sizes = [8, 32], strides = [1, 1]} : vector<16x128xf32> to vector<8x32xf32>
    %228 = vector.extract_strided_slice %186 {offsets = [8, 96], sizes = [8, 32], strides = [1, 1]} : vector<16x128xf32> to vector<8x32xf32>
    %229 = vector.shape_cast %221 : vector<8x32xf32> to vector<1x8x32xf32>
    %230 = vector.shape_cast %222 : vector<8x32xf32> to vector<1x8x32xf32>
    %231 = vector.shape_cast %223 : vector<8x32xf32> to vector<1x8x32xf32>
    %232 = vector.shape_cast %224 : vector<8x32xf32> to vector<1x8x32xf32>
    %233 = vector.shape_cast %225 : vector<8x32xf32> to vector<1x8x32xf32>
    %234 = vector.shape_cast %226 : vector<8x32xf32> to vector<1x8x32xf32>
    %235 = vector.shape_cast %227 : vector<8x32xf32> to vector<1x8x32xf32>
    %236 = vector.shape_cast %228 : vector<8x32xf32> to vector<1x8x32xf32>
    %237 = tpu.concatenate %229, %230, %231, %232, %233, %234, %235, %236 in 0 : vector<1x8x32xf32>, vector<1x8x32xf32>, vector<1x8x32xf32>, vector<1x8x32xf32>, vector<1x8x32xf32>, vector<1x8x32xf32>, vector<1x8x32xf32>, vector<1x8x32xf32> -> vector<8x8x32xf32>
    "tpu.trace_start"() <{level = 10 : i32, message = "bqe,bke->bqk"}> : () -> ()
    %cst_59 = arith.constant dense<0.000000e+00> : vector<8x8x8xf32>
    %238 = tpu.matmul %203, %220, %cst_59 {dimension_numbers = #tpu.dot_dimension_numbers<[2], [2], [1], [1], [0, 0, 0, 1, 1, 1], [0], [0]>} : vector<8x8x32xf32>, vector<8x8x32xf32>, vector<8x8x8xf32> -> vector<8x8x8xf32>
    "tpu.trace_stop"() : () -> ()
    %cst_60 = arith.constant dense<0xFF800000> : vector<8x8xf32>
    %239 = vector.multi_reduction <maximumf>, %238, %cst_60 [2] : vector<8x8x8xf32> to vector<8x8xf32>
    %240 = vector.shape_cast %239 : vector<8x8xf32> to vector<8x8x1xf32>
    %241 = vector.broadcast %240 : vector<8x8x1xf32> to vector<8x8x8xf32>
    %242 = arith.subf %238, %241 : vector<8x8x8xf32>
    %243 = math.exp %242 : vector<8x8x8xf32>
    %cst_61 = arith.constant dense<0.000000e+00> : vector<8x8xf32>
    %244 = vector.multi_reduction <add>, %243, %cst_61 [2] : vector<8x8x8xf32> to vector<8x8xf32>
    %245 = vector.shape_cast %244 : vector<8x8xf32> to vector<8x8x1xf32>
    %246 = tpu.reciprocal %245 {approx = true} : vector<8x8x1xf32> -> vector<8x8x1xf32>
    %247 = vector.broadcast %246 : vector<8x8x1xf32> to vector<8x8x8xf32>
    %248 = arith.mulf %243, %247 : vector<8x8x8xf32>
    "tpu.trace_start"() <{level = 10 : i32, message = "bqk,bke->bqe"}> : () -> ()
    %cst_62 = arith.constant dense<0.000000e+00> : vector<8x8x32xf32>
    %249 = tpu.matmul %248, %237, %cst_62 {dimension_numbers = #tpu.dot_dimension_numbers<[2], [1], [1], [2], [0, 0, 0, 1, 1, 2], [0], [0]>} : vector<8x8x8xf32>, vector<8x8x32xf32>, vector<8x8x32xf32> -> vector<8x8x32xf32>
    "tpu.trace_stop"() : () -> ()
    %250 = vector.extract_strided_slice %249 {offsets = [0, 0, 0], sizes = [1, 8, 32], strides = [1, 1, 1]} : vector<8x8x32xf32> to vector<1x8x32xf32>
    %251 = vector.shape_cast %250 : vector<1x8x32xf32> to vector<8x32xf32>
    %252 = vector.extract_strided_slice %249 {offsets = [1, 0, 0], sizes = [1, 8, 32], strides = [1, 1, 1]} : vector<8x8x32xf32> to vector<1x8x32xf32>
    %253 = vector.shape_cast %252 : vector<1x8x32xf32> to vector<8x32xf32>
    %254 = vector.extract_strided_slice %249 {offsets = [2, 0, 0], sizes = [1, 8, 32], strides = [1, 1, 1]} : vector<8x8x32xf32> to vector<1x8x32xf32>
    %255 = vector.shape_cast %254 : vector<1x8x32xf32> to vector<8x32xf32>
    %256 = vector.extract_strided_slice %249 {offsets = [3, 0, 0], sizes = [1, 8, 32], strides = [1, 1, 1]} : vector<8x8x32xf32> to vector<1x8x32xf32>
    %257 = vector.shape_cast %256 : vector<1x8x32xf32> to vector<8x32xf32>
    %258 = tpu.concatenate %251, %253, %255, %257 in 1 : vector<8x32xf32>, vector<8x32xf32>, vector<8x32xf32>, vector<8x32xf32> -> vector<8x128xf32>
    %259 = vector.extract_strided_slice %249 {offsets = [4, 0, 0], sizes = [1, 8, 32], strides = [1, 1, 1]} : vector<8x8x32xf32> to vector<1x8x32xf32>
    %260 = vector.shape_cast %259 : vector<1x8x32xf32> to vector<8x32xf32>
    %261 = vector.extract_strided_slice %249 {offsets = [5, 0, 0], sizes = [1, 8, 32], strides = [1, 1, 1]} : vector<8x8x32xf32> to vector<1x8x32xf32>
    %262 = vector.shape_cast %261 : vector<1x8x32xf32> to vector<8x32xf32>
    %263 = vector.extract_strided_slice %249 {offsets = [6, 0, 0], sizes = [1, 8, 32], strides = [1, 1, 1]} : vector<8x8x32xf32> to vector<1x8x32xf32>
    %264 = vector.shape_cast %263 : vector<1x8x32xf32> to vector<8x32xf32>
    %265 = vector.extract_strided_slice %249 {offsets = [7, 0, 0], sizes = [1, 8, 32], strides = [1, 1, 1]} : vector<8x8x32xf32> to vector<1x8x32xf32>
    %266 = vector.shape_cast %265 : vector<1x8x32xf32> to vector<8x32xf32>
    %267 = tpu.concatenate %260, %262, %264, %266 in 1 : vector<8x32xf32>, vector<8x32xf32>, vector<8x32xf32>, vector<8x32xf32> -> vector<8x128xf32>
    %268 = tpu.concatenate %258, %267 in 0 : vector<8x128xf32>, vector<8x128xf32> -> vector<16x128xf32>
    %269 = arith.truncf %268 : vector<16x128xf32> to vector<16x128xbf16>
    %c1_63 = arith.constant 1 : index
    %c0_64 = arith.constant 0 : index
    %c0_65 = arith.constant 0 : index
    %270 = vector.load %arg4[%c1_63, %c0_64, %c0_65] : memref<2x128x32xbf16, #tpu.memory_space<vmem>>, vector<1x128x32xbf16>
    %271 = vector.shape_cast %270 : vector<1x128x32xbf16> to vector<128x32xbf16>
    %cst_66 = arith.constant dense<0.000000e+00> : vector<16x32xf32>
    %272 = tpu.matmul %269, %271, %cst_66 {dimension_numbers = #tpu.dot_dimension_numbers<[1], [0], [0], [1], [0, 0, 1, 1], [], []>} : vector<16x128xbf16>, vector<128x32xbf16>, vector<16x32xf32> -> vector<16x32xf32>
    %c1_67 = arith.constant 1 : index
    %c0_68 = arith.constant 0 : index
    %c0_69 = arith.constant 0 : index
    %273 = vector.load %arg5[%c1_67, %c0_68, %c0_69] : memref<2x1x32xf32, #tpu.memory_space<vmem>>, vector<1x1x32xf32>
    %274 = vector.shape_cast %273 : vector<1x1x32xf32> to vector<1x32xf32>
    %275 = vector.broadcast %274 : vector<1x32xf32> to vector<16x32xf32>
    %276 = arith.addf %272, %275 : vector<16x32xf32>
    %277 = arith.addf %276, %177 : vector<16x32xf32>
    %c1_70 = arith.constant 1 : index
    %c0_71 = arith.constant 0 : index
    %c0_72 = arith.constant 0 : index
    %278 = vector.load %arg6[%c1_70, %c0_71, %c0_72] : memref<2x1x32xf32, #tpu.memory_space<vmem>>, vector<1x1x32xf32>
    %279 = vector.shape_cast %278 : vector<1x1x32xf32> to vector<1x32xf32>
    %c1_73 = arith.constant 1 : index
    %c0_74 = arith.constant 0 : index
    %c0_75 = arith.constant 0 : index
    %280 = vector.load %arg7[%c1_73, %c0_74, %c0_75] : memref<2x1x32xf32, #tpu.memory_space<vmem>>, vector<1x1x32xf32>
    %281 = vector.shape_cast %280 : vector<1x1x32xf32> to vector<1x32xf32>
    %cst_76 = arith.constant dense<0.000000e+00> : vector<16xf32>
    %282 = vector.multi_reduction <add>, %277, %cst_76 [1] : vector<16x32xf32> to vector<16xf32>
    %283 = vector.shape_cast %282 : vector<16xf32> to vector<16x1xf32>
    %cst_77 = arith.constant 3.200000e+01 : f32
    %284 = vector.broadcast %cst_77 : f32 to vector<16x1xf32>
    %285 = arith.divf %283, %284 : vector<16x1xf32>
    %286 = vector.broadcast %285 : vector<16x1xf32> to vector<16x32xf32>
    %287 = arith.subf %277, %286 : vector<16x32xf32>
    %288 = arith.mulf %287, %287 : vector<16x32xf32>
    %cst_78 = arith.constant dense<0.000000e+00> : vector<16xf32>
    %289 = vector.multi_reduction <add>, %288, %cst_78 [1] : vector<16x32xf32> to vector<16xf32>
    %290 = vector.shape_cast %289 : vector<16xf32> to vector<16x1xf32>
    %cst_79 = arith.constant 3.200000e+01 : f32
    %291 = vector.broadcast %cst_79 : f32 to vector<16x1xf32>
    %292 = arith.divf %290, %291 : vector<16x1xf32>
    %293 = vector.broadcast %285 : vector<16x1xf32> to vector<16x32xf32>
    %294 = arith.subf %277, %293 : vector<16x32xf32>
    %cst_80 = arith.constant 9.99999974E-6 : f32
    %295 = vector.broadcast %cst_80 : f32 to vector<16x1xf32>
    %296 = arith.addf %292, %295 : vector<16x1xf32>
    %297 = math.rsqrt %296 : vector<16x1xf32>
    %298 = vector.broadcast %297 : vector<16x1xf32> to vector<16x32xf32>
    %299 = arith.mulf %294, %298 : vector<16x32xf32>
    %300 = vector.broadcast %279 : vector<1x32xf32> to vector<16x32xf32>
    %301 = arith.mulf %299, %300 : vector<16x32xf32>
    %302 = vector.broadcast %281 : vector<1x32xf32> to vector<16x32xf32>
    %303 = arith.addf %301, %302 : vector<16x32xf32>
    %304 = arith.truncf %303 : vector<16x32xf32> to vector<16x32xbf16>
    %c1_81 = arith.constant 1 : index
    %c0_82 = arith.constant 0 : index
    %c0_83 = arith.constant 0 : index
    %305 = vector.load %arg8[%c1_81, %c0_82, %c0_83] : memref<2x32x128xbf16, #tpu.memory_space<vmem>>, vector<1x32x128xbf16>
    %306 = vector.shape_cast %305 : vector<1x32x128xbf16> to vector<32x128xbf16>
    %cst_84 = arith.constant dense<0.000000e+00> : vector<16x128xf32>
    %307 = tpu.matmul %304, %306, %cst_84 {dimension_numbers = #tpu.dot_dimension_numbers<[1], [0], [0], [1], [0, 0, 1, 1], [], []>} : vector<16x32xbf16>, vector<32x128xbf16>, vector<16x128xf32> -> vector<16x128xf32>
    %c1_85 = arith.constant 1 : index
    %c0_86 = arith.constant 0 : index
    %c0_87 = arith.constant 0 : index
    %308 = vector.load %arg9[%c1_85, %c0_86, %c0_87] : memref<2x1x128xf32, #tpu.memory_space<vmem>>, vector<1x1x128xf32>
    %309 = vector.shape_cast %308 : vector<1x1x128xf32> to vector<1x128xf32>
    %310 = vector.broadcast %309 : vector<1x128xf32> to vector<16x128xf32>
    %311 = arith.addf %307, %310 : vector<16x128xf32>
    %cst_88 = arith.constant 0.000000e+00 : f32
    %312 = vector.broadcast %cst_88 : f32 to vector<16x128xf32>
    %313 = arith.maximumf %311, %312 : vector<16x128xf32>
    %314 = arith.truncf %313 : vector<16x128xf32> to vector<16x128xbf16>
    %c1_89 = arith.constant 1 : index
    %c0_90 = arith.constant 0 : index
    %c0_91 = arith.constant 0 : index
    %315 = vector.load %arg10[%c1_89, %c0_90, %c0_91] : memref<2x128x32xbf16, #tpu.memory_space<vmem>>, vector<1x128x32xbf16>
    %316 = vector.shape_cast %315 : vector<1x128x32xbf16> to vector<128x32xbf16>
    %cst_92 = arith.constant dense<0.000000e+00> : vector<16x32xf32>
    %317 = tpu.matmul %314, %316, %cst_92 {dimension_numbers = #tpu.dot_dimension_numbers<[1], [0], [0], [1], [0, 0, 1, 1], [], []>} : vector<16x128xbf16>, vector<128x32xbf16>, vector<16x32xf32> -> vector<16x32xf32>
    %c1_93 = arith.constant 1 : index
    %c0_94 = arith.constant 0 : index
    %c0_95 = arith.constant 0 : index
    %318 = vector.load %arg11[%c1_93, %c0_94, %c0_95] : memref<2x1x32xf32, #tpu.memory_space<vmem>>, vector<1x1x32xf32>
    %319 = vector.shape_cast %318 : vector<1x1x32xf32> to vector<1x32xf32>
    %320 = vector.broadcast %319 : vector<1x32xf32> to vector<16x32xf32>
    %321 = arith.addf %317, %320 : vector<16x32xf32>
    %322 = arith.addf %321, %303 : vector<16x32xf32>
    %c1_96 = arith.constant 1 : index
    %c0_97 = arith.constant 0 : index
    %c0_98 = arith.constant 0 : index
    %323 = vector.load %arg12[%c1_96, %c0_97, %c0_98] : memref<2x1x32xf32, #tpu.memory_space<vmem>>, vector<1x1x32xf32>
    %324 = vector.shape_cast %323 : vector<1x1x32xf32> to vector<1x32xf32>
    %c1_99 = arith.constant 1 : index
    %c0_100 = arith.constant 0 : index
    %c0_101 = arith.constant 0 : index
    %325 = vector.load %arg13[%c1_99, %c0_100, %c0_101] : memref<2x1x32xf32, #tpu.memory_space<vmem>>, vector<1x1x32xf32>
    %326 = vector.shape_cast %325 : vector<1x1x32xf32> to vector<1x32xf32>
    %cst_102 = arith.constant dense<0.000000e+00> : vector<16xf32>
    %327 = vector.multi_reduction <add>, %322, %cst_102 [1] : vector<16x32xf32> to vector<16xf32>
    %328 = vector.shape_cast %327 : vector<16xf32> to vector<16x1xf32>
    %cst_103 = arith.constant 3.200000e+01 : f32
    %329 = vector.broadcast %cst_103 : f32 to vector<16x1xf32>
    %330 = arith.divf %328, %329 : vector<16x1xf32>
    %331 = vector.broadcast %330 : vector<16x1xf32> to vector<16x32xf32>
    %332 = arith.subf %322, %331 : vector<16x32xf32>
    %333 = arith.mulf %332, %332 : vector<16x32xf32>
    %cst_104 = arith.constant dense<0.000000e+00> : vector<16xf32>
    %334 = vector.multi_reduction <add>, %333, %cst_104 [1] : vector<16x32xf32> to vector<16xf32>
    %335 = vector.shape_cast %334 : vector<16xf32> to vector<16x1xf32>
    %cst_105 = arith.constant 3.200000e+01 : f32
    %336 = vector.broadcast %cst_105 : f32 to vector<16x1xf32>
    %337 = arith.divf %335, %336 : vector<16x1xf32>
    %338 = vector.broadcast %330 : vector<16x1xf32> to vector<16x32xf32>
    %339 = arith.subf %322, %338 : vector<16x32xf32>
    %cst_106 = arith.constant 9.99999974E-6 : f32
    %340 = vector.broadcast %cst_106 : f32 to vector<16x1xf32>
    %341 = arith.addf %337, %340 : vector<16x1xf32>
    %342 = math.rsqrt %341 : vector<16x1xf32>
    %343 = vector.broadcast %342 : vector<16x1xf32> to vector<16x32xf32>
    %344 = arith.mulf %339, %343 : vector<16x32xf32>
    %345 = vector.broadcast %324 : vector<1x32xf32> to vector<16x32xf32>
    %346 = arith.mulf %344, %345 : vector<16x32xf32>
    %347 = vector.broadcast %326 : vector<1x32xf32> to vector<16x32xf32>
    %348 = arith.addf %346, %347 : vector<16x32xf32>
    %349 = vector.shape_cast %348 : vector<16x32xf32> to vector<2x8x32xf32>
    %cst_107 = arith.constant dense<0xFF800000> : vector<2x32xf32>
    %350 = vector.multi_reduction <maximumf>, %349, %cst_107 [1] : vector<2x8x32xf32> to vector<2x32xf32>
    %351 = arith.truncf %350 : vector<2x32xf32> to vector<2x32xbf16>
    %c0_108 = arith.constant 0 : index
    %c0_109 = arith.constant 0 : index
    %352 = vector.load %arg14[%c0_108, %c0_109] : memref<32x4xbf16, #tpu.memory_space<vmem>>, vector<32x4xbf16>
    %cst_110 = arith.constant dense<0.000000e+00> : vector<2x4xf32>
    %353 = tpu.matmul %351, %352, %cst_110 {dimension_numbers = #tpu.dot_dimension_numbers<[1], [0], [0], [1], [0, 0, 1, 1], [], []>} : vector<2x32xbf16>, vector<32x4xbf16>, vector<2x4xf32> -> vector<2x4xf32>
    %c0_111 = arith.constant 0 : index
    %c0_112 = arith.constant 0 : index
    %354 = vector.load %arg15[%c0_111, %c0_112] : memref<1x4xf32, #tpu.memory_space<vmem>>, vector<1x4xf32>
    %355 = vector.broadcast %354 : vector<1x4xf32> to vector<2x4xf32>
    %356 = arith.addf %353, %355 : vector<2x4xf32>
    %c0_113 = arith.constant 0 : index
    %c0_114 = arith.constant 0 : index
    %357 = vector.load %arg16[%c0_113, %c0_114] : memref<2x4xf32, #tpu.memory_space<vmem>>, vector<2x4xf32>
    tpu.vector_store %arg16[%c0_113, %c0_114], %356 {strides = array<i32>} : memref<2x4xf32, #tpu.memory_space<vmem>>, vector<2x4xf32>,
    return
  }
  func.func @transform_0(%arg0: i32) -> (i32, i32) {
    %c0_i32 = arith.constant 0 : i32
    %c0_i32_0 = arith.constant 0 : i32
    %c0_i32_1 = arith.constant 0 : i32
    return %c0_i32, %c0_i32_0 : i32, i32
  }
  func.func @transform_1(%arg0: i32) -> (i32, i32) {
    %c0_i32 = arith.constant 0 : i32
    %c0_i32_0 = arith.constant 0 : i32
    %c0_i32_1 = arith.constant 0 : i32
    return %c0_i32, %c0_i32_0 : i32, i32
  }
  func.func @transform_2(%arg0: i32) -> (i32, i32, i32) {
    %c0_i32 = arith.constant 0 : i32
    %c0_i32_0 = arith.constant 0 : i32
    %c0_i32_1 = arith.constant 0 : i32
    %c0_i32_2 = arith.constant 0 : i32
    return %c0_i32, %c0_i32_0, %c0_i32_1 : i32, i32, i32
  }
  func.func @transform_3(%arg0: i32) -> (i32, i32, i32) {
    %c0_i32 = arith.constant 0 : i32
    %c0_i32_0 = arith.constant 0 : i32
    %c0_i32_1 = arith.constant 0 : i32
    %c0_i32_2 = arith.constant 0 : i32
    return %c0_i32, %c0_i32_0, %c0_i32_1 : i32, i32, i32
  }
  func.func @transform_4(%arg0: i32) -> (i32, i32, i32) {
    %c0_i32 = arith.constant 0 : i32
    %c0_i32_0 = arith.constant 0 : i32
    %c0_i32_1 = arith.constant 0 : i32
    %c0_i32_2 = arith.constant 0 : i32
    return %c0_i32, %c0_i32_0, %c0_i32_1 : i32, i32, i32
  }
  func.func @transform_5(%arg0: i32) -> (i32, i32, i32) {
    %c0_i32 = arith.constant 0 : i32
    %c0_i32_0 = arith.constant 0 : i32
    %c0_i32_1 = arith.constant 0 : i32
    %c0_i32_2 = arith.constant 0 : i32
    return %c0_i32, %c0_i32_0, %c0_i32_1 : i32, i32, i32
  }
  func.func @transform_6(%arg0: i32) -> (i32, i32, i32) {
    %c0_i32 = arith.constant 0 : i32
    %c0_i32_0 = arith.constant 0 : i32
    %c0_i32_1 = arith.constant 0 : i32
    %c0_i32_2 = arith.constant 0 : i32
    return %c0_i32, %c0_i32_0, %c0_i32_1 : i32, i32, i32
  }
  func.func @transform_7(%arg0: i32) -> (i32, i32, i32) {
    %c0_i32 = arith.constant 0 : i32
    %c0_i32_0 = arith.constant 0 : i32
    %c0_i32_1 = arith.constant 0 : i32
    %c0_i32_2 = arith.constant 0 : i32
    return %c0_i32, %c0_i32_0, %c0_i32_1 : i32, i32, i32
  }
  func.func @transform_8(%arg0: i32) -> (i32, i32, i32) {
    %c0_i32 = arith.constant 0 : i32
    %c0_i32_0 = arith.constant 0 : i32
    %c0_i32_1 = arith.constant 0 : i32
    %c0_i32_2 = arith.constant 0 : i32
    return %c0_i32, %c0_i32_0, %c0_i32_1 : i32, i32, i32
  }
  func.func @transform_9(%arg0: i32) -> (i32, i32, i32) {
    %c0_i32 = arith.constant 0 : i32
    %c0_i32_0 = arith.constant 0 : i32
    %c0_i32_1 = arith.constant 0 : i32
    %c0_i32_2 = arith.constant 0 : i32
    return %c0_i32, %c0_i32_0, %c0_i32_1 : i32, i32, i32
  }
  func.func @transform_10(%arg0: i32) -> (i32, i32, i32) {
    %c0_i32 = arith.constant 0 : i32
    %c0_i32_0 = arith.constant 0 : i32
    %c0_i32_1 = arith.constant 0 : i32
    %c0_i32_2 = arith.constant 0 : i32
    return %c0_i32, %c0_i32_0, %c0_i32_1 : i32, i32, i32
  }
  func.func @transform_11(%arg0: i32) -> (i32, i32, i32) {
    %c0_i32 = arith.constant 0 : i32
    %c0_i32_0 = arith.constant 0 : i32
    %c0_i32_1 = arith.constant 0 : i32
    %c0_i32_2 = arith.constant 0 : i32
    return %c0_i32, %c0_i32_0, %c0_i32_1 : i32, i32, i32
  }
  func.func @transform_12(%arg0: i32) -> (i32, i32, i32) {
    %c0_i32 = arith.constant 0 : i32
    %c0_i32_0 = arith.constant 0 : i32
    %c0_i32_1 = arith.constant 0 : i32
    %c0_i32_2 = arith.constant 0 : i32
    return %c0_i32, %c0_i32_0, %c0_i32_1 : i32, i32, i32
  }
  func.func @transform_13(%arg0: i32) -> (i32, i32) {
    %c0_i32 = arith.constant 0 : i32
    %c0_i32_0 = arith.constant 0 : i32
    %c0_i32_1 = arith.constant 0 : i32
    return %c0_i32, %c0_i32_0 : i32, i32
  }
  func.func @transform_14(%arg0: i32) -> (i32, i32) {
    %c0_i32 = arith.constant 0 : i32
    %c0_i32_0 = arith.constant 0 : i32
    %c0_i32_1 = arith.constant 0 : i32
    return %c0_i32, %c0_i32_0 : i32, i32
  }
  func.func @transform_15(%arg0: i32) -> (i32, i32) {
    %c0_i32 = arith.constant 0 : i32
    %c0_i32_0 = arith.constant 0 : i32
    %c0_i32_1 = arith.constant 0 : i32
    return %c0_i32, %c0_i32_0 : i32, i32
  }
}

</mosaic_0001>

<llo_original>
// kernel: tpu_custom_call.1
$region0: #{tpu_custom_call.1}
  #allocation0 [shape = 'u32[]', space=smem, size = 0x4, offset = 0x4, fixed_abs, tag = 'smem constant byte address 0x4 - core index']
  #allocation1 [shape = 'u32[144,128]{1,0:T(1,128)}', space=vmem, size = 0x12000, scoped, tag = 'internal scratch']
  %s0 = inlined_call_operand.vmem [shape: f32[16,32], index: 0, kind: input, shape index: {}]
  %s1 = inlined_call_operand.vmem [shape: f32[8,32], index: 1, kind: input, shape index: {}]
  %s2 = inlined_call_operand.vmem [shape: bf16[2,32,384], index: 2, kind: input, shape index: {}]
  %s3 = inlined_call_operand.vmem [shape: bf16[2,128,32], index: 3, kind: input, shape index: {}]
  %s4 = inlined_call_operand.vmem [shape: f32[2,1,32], index: 4, kind: input, shape index: {}]
  %s5 = inlined_call_operand.vmem [shape: f32[2,1,32], index: 5, kind: input, shape index: {}]
  %s6 = inlined_call_operand.vmem [shape: f32[2,1,32], index: 6, kind: input, shape index: {}]
  %s7 = inlined_call_operand.vmem [shape: bf16[2,32,128], index: 7, kind: input, shape index: {}]
  %s8 = inlined_call_operand.vmem [shape: f32[2,1,128], index: 8, kind: input, shape index: {}]
  %s9 = inlined_call_operand.vmem [shape: bf16[2,128,32], index: 9, kind: input, shape index: {}]
  %s10 = inlined_call_operand.vmem [shape: f32[2,1,32], index: 10, kind: input, shape index: {}]
  %s11 = inlined_call_operand.vmem [shape: f32[2,1,32], index: 11, kind: input, shape index: {}]
  %s12 = inlined_call_operand.vmem [shape: f32[2,1,32], index: 12, kind: input, shape index: {}]
  %s13 = inlined_call_operand.vmem [shape: bf16[32,4], index: 13, kind: input, shape index: {}]
  %s14 = inlined_call_operand.vmem [shape: f32[1,4], index: 14, kind: input, shape index: {}]
  %s15 = inlined_call_operand.hbm [shape: f32[2,4], index: 15, kind: output, shape index: {}]
  %s16 = sld [smem:[#allocation0]]
  $region70: #{tpu_custom_call.1} parent=0
    _
  %s18 = ssub.s32 1, %s16
  %s19 = scalar_select 0, %s18, %s16
  $region1: #{tpu_custom_call.1} parent=0
    #allocation2 [shape = 'u8[1024]{0}', space=vmem, size = 0x400, scoped, tag = 'output window, operand 0, single buffered']
    #allocation3 [shape = 's32[1]{0}', space=sflag, size = 0x4, scoped, tag = 'scoped memory for tpu_custom_call.1']
    %20 = vsyncpa [#allocation3], 0
    // Predicated region
    $region2: #{tpu_custom_call.1} parent=1 // pred_check
      _
    $region3: #{tpu_custom_call.1} parent=1 // pred_check_branch
      %22 = sbr.rel (0) target = $region5
    $region4: #{tpu_custom_call.1} parent=1 // pred_region
      _
    $region5: #{tpu_custom_call.1} parent=1 // pred_fallthru
      _
    // Predicated region
    $region6: #{tpu_custom_call.1} parent=1 // pred_check
      _
    $region7: #{tpu_custom_call.1} parent=1 // pred_check_branch
      %24 = sbr.rel (0) target = $region9
    $region8: #{tpu_custom_call.1} parent=1 // pred_region
      _
    $region9: #{tpu_custom_call.1} parent=1 // pred_fallthru
      _
    // Predicated region
    $region10: #{tpu_custom_call.1} parent=1 // pred_check
      _
    $region11: #{tpu_custom_call.1} parent=1 // pred_check_branch
      %26 = sbr.rel (0) target = $region13
    $region12: #{tpu_custom_call.1} parent=1 // pred_region
      _
    $region13: #{tpu_custom_call.1} parent=1 // pred_fallthru
      _
    // Predicated region
    $region14: #{tpu_custom_call.1} parent=1 // pred_check
      _
    $region15: #{tpu_custom_call.1} parent=1 // pred_check_branch
      %28 = sbr.rel (0) target = $region17
    $region16: #{tpu_custom_call.1} parent=1 // pred_region
      _
    $region17: #{tpu_custom_call.1} parent=1 // pred_fallthru
      _
    // Predicated region
    $region18: #{tpu_custom_call.1} parent=1 // pred_check
      _
    $region19: #{tpu_custom_call.1} parent=1 // pred_check_branch
      %30 = sbr.rel (0) target = $region21
    $region20: #{tpu_custom_call.1} parent=1 // pred_region
      _
    $region21: #{tpu_custom_call.1} parent=1 // pred_fallthru
      _
    // Predicated region
    $region22: #{tpu_custom_call.1} parent=1 // pred_check
      _
    $region23: #{tpu_custom_call.1} parent=1 // pred_check_branch
      %32 = sbr.rel (0) target = $region25
    $region24: #{tpu_custom_call.1} parent=1 // pred_region
      _
    $region25: #{tpu_custom_call.1} parent=1 // pred_fallthru
      _
    // Predicated region
    $region26: #{tpu_custom_call.1} parent=1 // pred_check
      _
    $region27: #{tpu_custom_call.1} parent=1 // pred_check_branch
      %34 = sbr.rel (0) target = $region29
    $region28: #{tpu_custom_call.1} parent=1 // pred_region
      _
    $region29: #{tpu_custom_call.1} parent=1 // pred_fallthru
      _
    // Predicated region
    $region30: #{tpu_custom_call.1} parent=1 // pred_check
      _
    $region31: #{tpu_custom_call.1} parent=1 // pred_check_branch
      %36 = sbr.rel (0) target = $region33
    $region32: #{tpu_custom_call.1} parent=1 // pred_region
      _
    $region33: #{tpu_custom_call.1} parent=1 // pred_fallthru
      _
    // Predicated region
    $region34: #{tpu_custom_call.1} parent=1 // pred_check
      _
    $region35: #{tpu_custom_call.1} parent=1 // pred_check_branch
      %38 = sbr.rel (0) target = $region37
    $region36: #{tpu_custom_call.1} parent=1 // pred_region
      _
    $region37: #{tpu_custom_call.1} parent=1 // pred_fallthru
      _
    // Predicated region
    $region38: #{tpu_custom_call.1} parent=1 // pred_check
      _
    $region39: #{tpu_custom_call.1} parent=1 // pred_check_branch
      %40 = sbr.rel (0) target = $region41
    $region40: #{tpu_custom_call.1} parent=1 // pred_region
      _
    $region41: #{tpu_custom_call.1} parent=1 // pred_fallthru
      _
    // Predicated region
    $region42: #{tpu_custom_call.1} parent=1 // pred_check
      _
    $region43: #{tpu_custom_call.1} parent=1 // pred_check_branch
      %42 = sbr.rel (0) target = $region45
    $region44: #{tpu_custom_call.1} parent=1 // pred_region
      _
    $region45: #{tpu_custom_call.1} parent=1 // pred_fallthru
      _
    // Predicated region
    $region46: #{tpu_custom_call.1} parent=1 // pred_check
      _
    $region47: #{tpu_custom_call.1} parent=1 // pred_check_branch
      %44 = sbr.rel (0) target = $region49
    $region48: #{tpu_custom_call.1} parent=1 // pred_region
      _
    $region49: #{tpu_custom_call.1} parent=1 // pred_fallthru
      _
    // Predicated region
    $region50: #{tpu_custom_call.1} parent=1 // pred_check
      _
    $region51: #{tpu_custom_call.1} parent=1 // pred_check_branch
      %46 = sbr.rel (0) target = $region53
    $region52: #{tpu_custom_call.1} parent=1 // pred_region
      _
    $region53: #{tpu_custom_call.1} parent=1 // pred_fallthru
      _
    // Predicated region
    $region54: #{tpu_custom_call.1} parent=1 // pred_check
      _
    $region55: #{tpu_custom_call.1} parent=1 // pred_check_branch
      %48 = sbr.rel (0) target = $region57
    $region56: #{tpu_custom_call.1} parent=1 // pred_region
      _
    $region57: #{tpu_custom_call.1} parent=1 // pred_fallthru
      _
    // Predicated region
    $region58: #{tpu_custom_call.1} parent=1 // pred_check
      _
    $region59: #{tpu_custom_call.1} parent=1 // pred_check_branch
      %50 = sbr.rel (0) target = $region61
    $region60: #{tpu_custom_call.1} parent=1 // pred_region
      _
    $region61: #{tpu_custom_call.1} parent=1 // pred_fallthru
      _
    %v52 = vld [vmem:[%s0] sm:$0xff]
    %v53 = vld [vmem:[%s0 + $0x8] sm:$0xff]
    %v54 = vld [vmem:[%s1] sm:$0xff]
    %v55 = vadd.f32 %v52, %v54
    %v56 = vadd.f32 %v53, %v54
    %v57 = vpack.c.bf16 %v56, %v55
    %v58 = vld [vmem:[%s2] sm:$0xff]
    %v59 = vld [vmem:[%s2 + $0x8] sm:$0xf]
    %v60 = vld [vmem:[%s2 + $0xc] sm:$0xff]
    %v61 = vld [vmem:[%s2 + $0x14] sm:$0xf]
    %v62 = vld [vmem:[%s2 + $0x18] sm:$0xff]
    %v63 = vld [vmem:[%s2 + $0x20] sm:$0xf]
    %v64 = vld [vmem:[%s2 + $0x24] sm:$0xff]
    %v65 = vld [vmem:[%s2 + $0x2c] sm:$0xf]
    %v74 = vunpack.c.l.b16 %v58
    %v75 = vunpack.c.h.b16 %v58
    %v76 = vunpack.c.l.b16 %v59
    %v77 = vunpack.c.l.b16 %v60
    %v78 = vunpack.c.h.b16 %v60
    %v79 = vunpack.c.l.b16 %v61
    %v80 = vunpack.c.l.b16 %v62
    %v81 = vunpack.c.h.b16 %v62
    %v82 = vunpack.c.l.b16 %v63
    %v83 = vunpack.c.l.b16 %v64
    %v84 = vunpack.c.h.b16 %v64
    %v85 = vunpack.c.l.b16 %v65
    %v86 = vpack.c.b16 %v77, %v74
    %v87 = vpack.c.b16 %v78, %v75
    %v88 = vpack.c.b16 %v79, %v76
    %v89 = vpack.c.b16 %v83, %v80
    %v90 = vpack.c.b16 %v84, %v81
    %v91 = vpack.c.b16 %v85, %v82
    %vm98 = vcmask 261120
    %v100 = vsel %vm98, %v57, 0
    %102 = vmatprep.subr.bf16.mxu0 0
    %103 = vmatpush1.bf16.msra.mxu0 0
    %104 = vmatprep.subr.bf16.mxu0 0
    %105 = vmatpush1.bf16.msra.mxu0 0
    %106 = vmatprep.subr.bf16.mxu0 0
    %107 = vmatpush1.bf16.msra.mxu0 0
    %108 = vmatprep.subr.bf16.mxu0 0
    %109 = vmatpush1.bf16.msra.mxu0 0
    %110 = vmatprep.subr.bf16.mxu0 0
    %111 = vmatpush1.bf16.msra.mxu0 0
    %112 = vmatprep.subr.bf16.mxu0 0
    %113 = vmatpush1.bf16.msra.mxu0 0
    %114 = vmatprep.subr.bf16.mxu0 %v90
    %115 = vmatpush1.bf16.msra.mxu0 %v89
    %116 = vmatprep.subr.bf16.mxu0 %v87
    %117 = vmatpush1.bf16.msra.mxu0 %v86
    %118 = vmatprep.subr.bf16.mxu0 0
    %119 = vmatpush2.bf16.msra.mxu0 0
    %120 = vmatprep.subr.bf16.mxu0 0
    %121 = vmatpush2.bf16.msra.mxu0 0
    %122 = vmatprep.subr.bf16.mxu0 0
    %123 = vmatpush2.bf16.msra.mxu0 0
    %124 = vmatprep.subr.bf16.mxu0 0
    %125 = vmatpush2.bf16.msra.mxu0 0
    %126 = vmatprep.subr.bf16.mxu0 0
    %127 = vmatpush2.bf16.msra.mxu0 0
    %128 = vmatprep.subr.bf16.mxu0 0
    %129 = vmatpush2.bf16.msra.mxu0 0
    %130 = vmatprep.subr.bf16.mxu0 0
    %131 = vmatpush2.bf16.msra.mxu0 0
    %132 = vmatprep.subr.bf16.mxu0 0
    %133 = vmatpush2.bf16.msra.mxu0 0
    %134 = vmatprep.mubr.bf16.mxu0 0
    %135 = vmatmul.mubr.bf16.gmra.mxu0 %v100
    %v136 = vpop.f32.mrf.mxu0
    %v137 = vadd.f32 0.0, %v136
    %v138 = vpop.f32.mrf.mxu0
    %v139 = vadd.f32 0.0, %v138
    %v140 = vpop.f32.mrf.mxu0
    %v141 = vadd.f32 0.0, %v140
    %v142 = vpop.f32.mrf.mxu0
    %v143 = vadd.f32 0.0, %v142
    %144 = vdwg.mxu0
    %145 = vmatprep.subr.bf16.mxu0 0
    %146 = vmatpush1.bf16.msra.mxu0 0
    %147 = vmatprep.subr.bf16.mxu0 0
    %148 = vmatpush1.bf16.msra.mxu0 0
    %149 = vmatprep.subr.bf16.mxu0 0
    %150 = vmatpush1.bf16.msra.mxu0 0
    %151 = vmatprep.subr.bf16.mxu0 0
    %152 = vmatpush1.bf16.msra.mxu0 0
    %153 = vmatprep.subr.bf16.mxu0 0
    %154 = vmatpush1.bf16.msra.mxu0 0
    %155 = vmatprep.subr.bf16.mxu0 0
    %156 = vmatpush1.bf16.msra.mxu0 0
    %157 = vmatprep.subr.bf16.mxu0 0
    %158 = vmatpush1.bf16.msra.mxu0 %v91
    %159 = vmatprep.subr.bf16.mxu0 0
    %160 = vmatpush1.bf16.msra.mxu0 %v88
    %161 = vmatprep.subr.bf16.mxu0 0
    %162 = vmatpush2.bf16.msra.mxu0 0
    %163 = vmatprep.subr.bf16.mxu0 0
    %164 = vmatpush2.bf16.msra.mxu0 0
    %165 = vmatprep.subr.bf16.mxu0 0
    %166 = vmatpush2.bf16.msra.mxu0 0
    %167 = vmatprep.subr.bf16.mxu0 0
    %168 = vmatpush2.bf16.msra.mxu0 0
    %169 = vmatprep.subr.bf16.mxu0 0
    %170 = vmatpush2.bf16.msra.mxu0 0
    %171 = vmatprep.subr.bf16.mxu0 0
    %172 = vmatpush2.bf16.msra.mxu0 0
    %173 = vmatprep.subr.bf16.mxu0 0
    %174 = vmatpush2.bf16.msra.mxu0 0
    %175 = vmatprep.subr.bf16.mxu0 0
    %176 = vmatpush2.bf16.msra.mxu0 0
    %177 = vmatprep.mubr.bf16.mxu0 0
    %178 = vmatmul.mubr.bf16.gmra.mxu0 %v100
    %v179 = vpop.f32.mrf.mxu0
    %v180 = vadd.f32 0.0, %v179
    %v181 = vpop.f32.mrf.mxu0
    %v182 = vpop.f32.mrf.mxu0
    %v183 = vadd.f32 0.0, %v182
    %v184 = vpop.f32.mrf.mxu0
    %185 = vdwg.mxu0
    %v186 = vmul.f32 %v137, 0.17677669
    %v187 = vmul.f32 %v141, 0.17677669
    %189 = vrot.lane.b32.xlu0 %v186, 96
    %v190 = vpop.permute.xlu0 %189
    %191 = vrot.lane.b32.xlu0 %v186, 64
    %v192 = vpop.permute.xlu0 %191
    %193 = vrot.lane.b32.xlu0 %v186, 32
    %v194 = vpop.permute.xlu0 %193
    %196 = vrot.lane.b32.xlu0 %v187, 96
    %v197 = vpop.permute.xlu0 %196
    %198 = vrot.lane.b32.xlu0 %v187, 64
    %v199 = vpop.permute.xlu0 %198
    %200 = vrot.lane.b32.xlu0 %v187, 32
    %v201 = vpop.permute.xlu0 %200
    %203 = vrot.lane.b32.xlu0 %v139, 96
    %v204 = vpop.permute.xlu0 %203
    %205 = vrot.lane.b32.xlu0 %v139, 64
    %v206 = vpop.permute.xlu0 %205
    %207 = vrot.lane.b32.xlu0 %v139, 32
    %v208 = vpop.permute.xlu0 %207
    %210 = vrot.lane.b32.xlu0 %v143, 96
    %v211 = vpop.permute.xlu0 %210
    %212 = vrot.lane.b32.xlu0 %v143, 64
    %v213 = vpop.permute.xlu0 %212
    %214 = vrot.lane.b32.xlu0 %v143, 32
    %v215 = vpop.permute.xlu0 %214
    %217 = vrot.lane.b32.xlu0 %v180, 96
    %v218 = vpop.permute.xlu0 %217
    %220 = vrot.lane.b32.xlu0 %v180, 64
    %v221 = vpop.permute.xlu0 %220
    %223 = vrot.lane.b32.xlu0 %v180, 32
    %v224 = vpop.permute.xlu0 %223
    %227 = vrot.lane.b32.xlu0 %v183, 96
    %v228 = vpop.permute.xlu0 %227
    %230 = vrot.lane.b32.xlu0 %v183, 64
    %v231 = vpop.permute.xlu0 %230
    %233 = vrot.lane.b32.xlu0 %v183, 32
    %v234 = vpop.permute.xlu0 %233
    %v236 = vsel %vm98, %v186, 0
    %v238 = vsel %vm98, %v139, 0
    %240 = vmatprep.subr.mxu0 0.0
    %241 = vmatpush1.xpose.msra.mxu0 0.0
    %242 = vmatprep.subr.mxu0 0.0
    %243 = vmatpush1.xpose.msra.mxu0 0.0
    %244 = vmatprep.subr.mxu0 0.0
    %245 = vmatpush1.xpose.msra.mxu0 0.0
    %246 = vmatprep.subr.mxu0 0.0
    %247 = vmatpush1.xpose.msra.mxu0 0.0
    %248 = vmatprep.subr.mxu0 0.0
    %249 = vmatpush1.xpose.msra.mxu0 0.0
    %250 = vmatprep.subr.mxu0 0.0
    %251 = vmatpush1.xpose.msra.mxu0 0.0
    %252 = vmatprep.subr.mxu0 0.0
    %253 = vmatpush1.xpose.msra.mxu0 0.0
    %254 = vmatprep.subr.mxu0 0.0
    %255 = vmatpush1.xpose.msra.mxu0 0.0
    %256 = vmatprep.subr.mxu0 0.0
    %257 = vmatpush1.xpose.msra.mxu0 0.0
    %258 = vmatprep.subr.mxu0 0.0
    %259 = vmatpush1.xpose.msra.mxu0 0.0
    %260 = vmatprep.subr.mxu0 0.0
    %261 = vmatpush1.xpose.msra.mxu0 0.0
    %262 = vmatprep.subr.mxu0 0.0
    %263 = vmatpush1.xpose.msra.mxu0 0.0
    %264 = vmatprep.subr.mxu0 0.0
    %265 = vmatpush1.xpose.msra.mxu0 0.0
    %266 = vmatprep.subr.mxu0 0.0
    %267 = vmatpush1.xpose.msra.mxu0 0.0
    %268 = vmatprep.subr.mxu0 0.0
    %269 = vmatpush1.xpose.msra.mxu0 0.0
    %270 = vmatprep.subr.mxu0 0.0
    %271 = vmatpush1.xpose.msra.mxu0 %v238
    %272 = vmatprep.subr.mxu0 0.0
    %273 = vmatpush2.xpose.msra.mxu0 0.0
    %274 = vmatprep.subr.mxu0 0.0
    %275 = vmatpush2.xpose.msra.mxu0 0.0
    %276 = vmatprep.subr.mxu0 0.0
    %277 = vmatpush2.xpose.msra.mxu0 0.0
    %278 = vmatprep.subr.mxu0 0.0
    %279 = vmatpush2.xpose.msra.mxu0 0.0
    %280 = vmatprep.subr.mxu0 0.0
    %281 = vmatpush2.xpose.msra.mxu0 0.0
    %282 = vmatprep.subr.mxu0 0.0
    %283 = vmatpush2.xpose.msra.mxu0 0.0
    %284 = vmatprep.subr.mxu0 0.0
    %285 = vmatpush2.xpose.msra.mxu0 0.0
    %286 = vmatprep.subr.mxu0 0.0
    %287 = vmatpush2.xpose.msra.mxu0 0.0
    %288 = vmatprep.subr.mxu0 0.0
    %289 = vmatpush2.xpose.msra.mxu0 0.0
    %290 = vmatprep.subr.mxu0 0.0
    %291 = vmatpush2.xpose.msra.mxu0 0.0
    %292 = vmatprep.subr.mxu0 0.0
    %293 = vmatpush2.xpose.msra.mxu0 0.0
    %294 = vmatprep.subr.mxu0 0.0
    %295 = vmatpush2.xpose.msra.mxu0 0.0
    %296 = vmatprep.subr.mxu0 0.0
    %297 = vmatpush2.xpose.msra.mxu0 0.0
    %298 = vmatprep.subr.mxu0 0.0
    %299 = vmatpush2.xpose.msra.mxu0 0.0
    %300 = vmatprep.subr.mxu0 0.0
    %301 = vmatpush2.xpose.msra.mxu0 0.0
    %302 = vmatprep.subr.mxu0 0.0
    %303 = vmatpush2.xpose.msra.mxu0 0.0
    %304 = vmatprep.mubr.f32.mxu0 0.0
    %305 = vmatmul.mubr.f32.gmra.mxu0 %v236
    %v306 = vpop.f32.mrf.mxu0
    %v307 = vadd.f32 0.0, %v306
    %v308 = vpop.f32.mrf.mxu0
    %309 = vdwg.mxu0
    %v310 = vsel %vm98, %v190, 0
    %v312 = vsel %vm98, %v204, 0
    %314 = vmatprep.subr.mxu0 0.0
    %315 = vmatpush1.xpose.msra.mxu0 0.0
    %316 = vmatprep.subr.mxu0 0.0
    %317 = vmatpush1.xpose.msra.mxu0 0.0
    %318 = vmatprep.subr.mxu0 0.0
    %319 = vmatpush1.xpose.msra.mxu0 0.0
    %320 = vmatprep.subr.mxu0 0.0
    %321 = vmatpush1.xpose.msra.mxu0 0.0
    %322 = vmatprep.subr.mxu0 0.0
    %323 = vmatpush1.xpose.msra.mxu0 0.0
    %324 = vmatprep.subr.mxu0 0.0
    %325 = vmatpush1.xpose.msra.mxu0 0.0
    %326 = vmatprep.subr.mxu0 0.0
    %327 = vmatpush1.xpose.msra.mxu0 0.0
    %328 = vmatprep.subr.mxu0 0.0
    %329 = vmatpush1.xpose.msra.mxu0 0.0
    %330 = vmatprep.subr.mxu0 0.0
    %331 = vmatpush1.xpose.msra.mxu0 0.0
    %332 = vmatprep.subr.mxu0 0.0
    %333 = vmatpush1.xpose.msra.mxu0 0.0
    %334 = vmatprep.subr.mxu0 0.0
    %335 = vmatpush1.xpose.msra.mxu0 0.0
    %336 = vmatprep.subr.mxu0 0.0
    %337 = vmatpush1.xpose.msra.mxu0 0.0
    %338 = vmatprep.subr.mxu0 0.0
    %339 = vmatpush1.xpose.msra.mxu0 0.0
    %340 = vmatprep.subr.mxu0 0.0
    %341 = vmatpush1.xpose.msra.mxu0 0.0
    %342 = vmatprep.subr.mxu0 0.0
    %343 = vmatpush1.xpose.msra.mxu0 0.0
    %344 = vmatprep.subr.mxu0 0.0
    %345 = vmatpush1.xpose.msra.mxu0 %v312
    %346 = vmatprep.subr.mxu0 0.0
    %347 = vmatpush2.xpose.msra.mxu0 0.0
    %348 = vmatprep.subr.mxu0 0.0
    %349 = vmatpush2.xpose.msra.mxu0 0.0
    %350 = vmatprep.subr.mxu0 0.0
    %351 = vmatpush2.xpose.msra.mxu0 0.0
    %352 = vmatprep.subr.mxu0 0.0
    %353 = vmatpush2.xpose.msra.mxu0 0.0
    %354 = vmatprep.subr.mxu0 0.0
    %355 = vmatpush2.xpose.msra.mxu0 0.0
    %356 = vmatprep.subr.mxu0 0.0
    %357 = vmatpush2.xpose.msra.mxu0 0.0
    %358 = vmatprep.subr.mxu0 0.0
    %359 = vmatpush2.xpose.msra.mxu0 0.0
    %360 = vmatprep.subr.mxu0 0.0
    %361 = vmatpush2.xpose.msra.mxu0 0.0
    %362 = vmatprep.subr.mxu0 0.0
    %363 = vmatpush2.xpose.msra.mxu0 0.0
    %364 = vmatprep.subr.mxu0 0.0
    %365 = vmatpush2.xpose.msra.mxu0 0.0
    %366 = vmatprep.subr.mxu0 0.0
    %367 = vmatpush2.xpose.msra.mxu0 0.0
    %368 = vmatprep.subr.mxu0 0.0
    %369 = vmatpush2.xpose.msra.mxu0 0.0
    %370 = vmatprep.subr.mxu0 0.0
    %371 = vmatpush2.xpose.msra.mxu0 0.0
    %372 = vmatprep.subr.mxu0 0.0
    %373 = vmatpush2.xpose.msra.mxu0 0.0
    %374 = vmatprep.subr.mxu0 0.0
    %375 = vmatpush2.xpose.msra.mxu0 0.0
    %376 = vmatprep.subr.mxu0 0.0
    %377 = vmatpush2.xpose.msra.mxu0 0.0
    %378 = vmatprep.mubr.f32.mxu0 0.0
    %379 = vmatmul.mubr.f32.gmra.mxu0 %v310
    %v380 = vpop.f32.mrf.mxu0
    %v381 = vadd.f32 0.0, %v380
    %v382 = vpop.f32.mrf.mxu0
    %383 = vdwg.mxu0
    %v384 = vsel %vm98, %v192, 0
    %v386 = vsel %vm98, %v206, 0
    %388 = vmatprep.subr.mxu0 0.0
    %389 = vmatpush1.xpose.msra.mxu0 0.0
    %390 = vmatprep.subr.mxu0 0.0
    %391 = vmatpush1.xpose.msra.mxu0 0.0
    %392 = vmatprep.subr.mxu0 0.0
    %393 = vmatpush1.xpose.msra.mxu0 0.0
    %394 = vmatprep.subr.mxu0 0.0
    %395 = vmatpush1.xpose.msra.mxu0 0.0
    %396 = vmatprep.subr.mxu0 0.0
    %397 = vmatpush1.xpose.msra.mxu0 0.0
    %398 = vmatprep.subr.mxu0 0.0
    %399 = vmatpush1.xpose.msra.mxu0 0.0
    %400 = vmatprep.subr.mxu0 0.0
    %401 = vmatpush1.xpose.msra.mxu0 0.0
    %402 = vmatprep.subr.mxu0 0.0
    %403 = vmatpush1.xpose.msra.mxu0 0.0
    %404 = vmatprep.subr.mxu0 0.0
    %405 = vmatpush1.xpose.msra.mxu0 0.0
    %406 = vmatprep.subr.mxu0 0.0
    %407 = vmatpush1.xpose.msra.mxu0 0.0
    %408 = vmatprep.subr.mxu0 0.0
    %409 = vmatpush1.xpose.msra.mxu0 0.0
    %410 = vmatprep.subr.mxu0 0.0
    %411 = vmatpush1.xpose.msra.mxu0 0.0
    %412 = vmatprep.subr.mxu0 0.0
    %413 = vmatpush1.xpose.msra.mxu0 0.0
    %414 = vmatprep.subr.mxu0 0.0
    %415 = vmatpush1.xpose.msra.mxu0 0.0
    %416 = vmatprep.subr.mxu0 0.0
    %417 = vmatpush1.xpose.msra.mxu0 0.0
    %418 = vmatprep.subr.mxu0 0.0
    %419 = vmatpush1.xpose.msra.mxu0 %v386
    %420 = vmatprep.subr.mxu0 0.0
    %421 = vmatpush2.xpose.msra.mxu0 0.0
    %422 = vmatprep.subr.mxu0 0.0
    %423 = vmatpush2.xpose.msra.mxu0 0.0
    %424 = vmatprep.subr.mxu0 0.0
    %425 = vmatpush2.xpose.msra.mxu0 0.0
    %426 = vmatprep.subr.mxu0 0.0
    %427 = vmatpush2.xpose.msra.mxu0 0.0
    %428 = vmatprep.subr.mxu0 0.0
    %429 = vmatpush2.xpose.msra.mxu0 0.0
    %430 = vmatprep.subr.mxu0 0.0
    %431 = vmatpush2.xpose.msra.mxu0 0.0
    %432 = vmatprep.subr.mxu0 0.0
    %433 = vmatpush2.xpose.msra.mxu0 0.0
    %434 = vmatprep.subr.mxu0 0.0
    %435 = vmatpush2.xpose.msra.mxu0 0.0
    %436 = vmatprep.subr.mxu0 0.0
    %437 = vmatpush2.xpose.msra.mxu0 0.0
    %438 = vmatprep.subr.mxu0 0.0
    %439 = vmatpush2.xpose.msra.mxu0 0.0
    %440 = vmatprep.subr.mxu0 0.0
    %441 = vmatpush2.xpose.msra.mxu0 0.0
    %442 = vmatprep.subr.mxu0 0.0
    %443 = vmatpush2.xpose.msra.mxu0 0.0
    %444 = vmatprep.subr.mxu0 0.0
    %445 = vmatpush2.xpose.msra.mxu0 0.0
    %446 = vmatprep.subr.mxu0 0.0
    %447 = vmatpush2.xpose.msra.mxu0 0.0
    %448 = vmatprep.subr.mxu0 0.0
    %449 = vmatpush2.xpose.msra.mxu0 0.0
    %450 = vmatprep.subr.mxu0 0.0
    %451 = vmatpush2.xpose.msra.mxu0 0.0
    %452 = vmatprep.mubr.f32.mxu0 0.0
    %453 = vmatmul.mubr.f32.gmra.mxu0 %v384
    %v454 = vpop.f32.mrf.mxu0
    %v455 = vadd.f32 0.0, %v454
    %v456 = vpop.f32.mrf.mxu0
    %457 = vdwg.mxu0
    %v458 = vsel %vm98, %v194, 0
    %v460 = vsel %vm98, %v208, 0
    %462 = vmatprep.subr.mxu0 0.0
    %463 = vmatpush1.xpose.msra.mxu0 0.0
    %464 = vmatprep.subr.mxu0 0.0
    %465 = vmatpush1.xpose.msra.mxu0 0.0
    %466 = vmatprep.subr.mxu0 0.0
    %467 = vmatpush1.xpose.msra.mxu0 0.0
    %468 = vmatprep.subr.mxu0 0.0
    %469 = vmatpush1.xpose.msra.mxu0 0.0
    %470 = vmatprep.subr.mxu0 0.0
    %471 = vmatpush1.xpose.msra.mxu0 0.0
    %472 = vmatprep.subr.mxu0 0.0
    %473 = vmatpush1.xpose.msra.mxu0 0.0
    %474 = vmatprep.subr.mxu0 0.0
    %475 = vmatpush1.xpose.msra.mxu0 0.0
    %476 = vmatprep.subr.mxu0 0.0
    %477 = vmatpush1.xpose.msra.mxu0 0.0
    %478 = vmatprep.subr.mxu0 0.0
    %479 = vmatpush1.xpose.msra.mxu0 0.0
    %480 = vmatprep.subr.mxu0 0.0
    %481 = vmatpush1.xpose.msra.mxu0 0.0
    %482 = vmatprep.subr.mxu0 0.0
    %483 = vmatpush1.xpose.msra.mxu0 0.0
    %484 = vmatprep.subr.mxu0 0.0
    %485 = vmatpush1.xpose.msra.mxu0 0.0
    %486 = vmatprep.subr.mxu0 0.0
    %487 = vmatpush1.xpose.msra.mxu0 0.0
    %488 = vmatprep.subr.mxu0 0.0
    %489 = vmatpush1.xpose.msra.mxu0 0.0
    %490 = vmatprep.subr.mxu0 0.0
    %491 = vmatpush1.xpose.msra.mxu0 0.0
    %492 = vmatprep.subr.mxu0 0.0
    %493 = vmatpush1.xpose.msra.mxu0 %v460
    %494 = vmatprep.subr.mxu0 0.0
    %495 = vmatpush2.xpose.msra.mxu0 0.0
    %496 = vmatprep.subr.mxu0 0.0
    %497 = vmatpush2.xpose.msra.mxu0 0.0
    %498 = vmatprep.subr.mxu0 0.0
    %499 = vmatpush2.xpose.msra.mxu0 0.0
    %500 = vmatprep.subr.mxu0 0.0
    %501 = vmatpush2.xpose.msra.mxu0 0.0
    %502 = vmatprep.subr.mxu0 0.0
    %503 = vmatpush2.xpose.msra.mxu0 0.0
    %504 = vmatprep.subr.mxu0 0.0
    %505 = vmatpush2.xpose.msra.mxu0 0.0
    %506 = vmatprep.subr.mxu0 0.0
    %507 = vmatpush2.xpose.msra.mxu0 0.0
    %508 = vmatprep.subr.mxu0 0.0
    %509 = vmatpush2.xpose.msra.mxu0 0.0
    %510 = vmatprep.subr.mxu0 0.0
    %511 = vmatpush2.xpose.msra.mxu0 0.0
    %512 = vmatprep.subr.mxu0 0.0
    %513 = vmatpush2.xpose.msra.mxu0 0.0
    %514 = vmatprep.subr.mxu0 0.0
    %515 = vmatpush2.xpose.msra.mxu0 0.0
    %516 = vmatprep.subr.mxu0 0.0
    %517 = vmatpush2.xpose.msra.mxu0 0.0
    %518 = vmatprep.subr.mxu0 0.0
    %519 = vmatpush2.xpose.msra.mxu0 0.0
    %520 = vmatprep.subr.mxu0 0.0
    %521 = vmatpush2.xpose.msra.mxu0 0.0
    %522 = vmatprep.subr.mxu0 0.0
    %523 = vmatpush2.xpose.msra.mxu0 0.0
    %524 = vmatprep.subr.mxu0 0.0
    %525 = vmatpush2.xpose.msra.mxu0 0.0
    %526 = vmatprep.mubr.f32.mxu0 0.0
    %527 = vmatmul.mubr.f32.gmra.mxu0 %v458
    %v528 = vpop.f32.mrf.mxu0
    %v529 = vadd.f32 0.0, %v528
    %v530 = vpop.f32.mrf.mxu0
    %531 = vdwg.mxu0
    %v532 = vsel %vm98, %v187, 0
    %v534 = vsel %vm98, %v143, 0
    %536 = vmatprep.subr.mxu0 0.0
    %537 = vmatpush1.xpose.msra.mxu0 0.0
    %538 = vmatprep.subr.mxu0 0.0
    %539 = vmatpush1.xpose.msra.mxu0 0.0
    %540 = vmatprep.subr.mxu0 0.0
    %541 = vmatpush1.xpose.msra.mxu0 0.0
    %542 = vmatprep.subr.mxu0 0.0
    %543 = vmatpush1.xpose.msra.mxu0 0.0
    %544 = vmatprep.subr.mxu0 0.0
    %545 = vmatpush1.xpose.msra.mxu0 0.0
    %546 = vmatprep.subr.mxu0 0.0
    %547 = vmatpush1.xpose.msra.mxu0 0.0
    %548 = vmatprep.subr.mxu0 0.0
    %549 = vmatpush1.xpose.msra.mxu0 0.0
    %550 = vmatprep.subr.mxu0 0.0
    %551 = vmatpush1.xpose.msra.mxu0 0.0
    %552 = vmatprep.subr.mxu0 0.0
    %553 = vmatpush1.xpose.msra.mxu0 0.0
    %554 = vmatprep.subr.mxu0 0.0
    %555 = vmatpush1.xpose.msra.mxu0 0.0
    %556 = vmatprep.subr.mxu0 0.0
    %557 = vmatpush1.xpose.msra.mxu0 0.0
    %558 = vmatprep.subr.mxu0 0.0
    %559 = vmatpush1.xpose.msra.mxu0 0.0
    %560 = vmatprep.subr.mxu0 0.0
    %561 = vmatpush1.xpose.msra.mxu0 0.0
    %562 = vmatprep.subr.mxu0 0.0
    %563 = vmatpush1.xpose.msra.mxu0 0.0
    %564 = vmatprep.subr.mxu0 0.0
    %565 = vmatpush1.xpose.msra.mxu0 0.0
    %566 = vmatprep.subr.mxu0 0.0
    %567 = vmatpush1.xpose.msra.mxu0 %v534
    %568 = vmatprep.subr.mxu0 0.0
    %569 = vmatpush2.xpose.msra.mxu0 0.0
    %570 = vmatprep.subr.mxu0 0.0
    %571 = vmatpush2.xpose.msra.mxu0 0.0
    %572 = vmatprep.subr.mxu0 0.0
    %573 = vmatpush2.xpose.msra.mxu0 0.0
    %574 = vmatprep.subr.mxu0 0.0
    %575 = vmatpush2.xpose.msra.mxu0 0.0
    %576 = vmatprep.subr.mxu0 0.0
    %577 = vmatpush2.xpose.msra.mxu0 0.0
    %578 = vmatprep.subr.mxu0 0.0
    %579 = vmatpush2.xpose.msra.mxu0 0.0
    %580 = vmatprep.subr.mxu0 0.0
    %581 = vmatpush2.xpose.msra.mxu0 0.0
    %582 = vmatprep.subr.mxu0 0.0
    %583 = vmatpush2.xpose.msra.mxu0 0.0
    %584 = vmatprep.subr.mxu0 0.0
    %585 = vmatpush2.xpose.msra.mxu0 0.0
    %586 = vmatprep.subr.mxu0 0.0
    %587 = vmatpush2.xpose.msra.mxu0 0.0
    %588 = vmatprep.subr.mxu0 0.0
    %589 = vmatpush2.xpose.msra.mxu0 0.0
    %590 = vmatprep.subr.mxu0 0.0
    %591 = vmatpush2.xpose.msra.mxu0 0.0
    %592 = vmatprep.subr.mxu0 0.0
    %593 = vmatpush2.xpose.msra.mxu0 0.0
    %594 = vmatprep.subr.mxu0 0.0
    %595 = vmatpush2.xpose.msra.mxu0 0.0
    %596 = vmatprep.subr.mxu0 0.0
    %597 = vmatpush2.xpose.msra.mxu0 0.0
    %598 = vmatprep.subr.mxu0 0.0
    %599 = vmatpush2.xpose.msra.mxu0 0.0
    %600 = vmatprep.mubr.f32.mxu0 0.0
    %601 = vmatmul.mubr.f32.gmra.mxu0 %v532
    %v602 = vpop.f32.mrf.mxu0
    %v603 = vadd.f32 0.0, %v602
    %v604 = vpop.f32.mrf.mxu0
    %605 = vdwg.mxu0
    %v606 = vsel %vm98, %v197, 0
    %v608 = vsel %vm98, %v211, 0
    %610 = vmatprep.subr.mxu0 0.0
    %611 = vmatpush1.xpose.msra.mxu0 0.0
    %612 = vmatprep.subr.mxu0 0.0
    %613 = vmatpush1.xpose.msra.mxu0 0.0
    %614 = vmatprep.subr.mxu0 0.0
    %615 = vmatpush1.xpose.msra.mxu0 0.0
    %616 = vmatprep.subr.mxu0 0.0
    %617 = vmatpush1.xpose.msra.mxu0 0.0
    %618 = vmatprep.subr.mxu0 0.0
    %619 = vmatpush1.xpose.msra.mxu0 0.0
    %620 = vmatprep.subr.mxu0 0.0
    %621 = vmatpush1.xpose.msra.mxu0 0.0
    %622 = vmatprep.subr.mxu0 0.0
    %623 = vmatpush1.xpose.msra.mxu0 0.0
    %624 = vmatprep.subr.mxu0 0.0
    %625 = vmatpush1.xpose.msra.mxu0 0.0
    %626 = vmatprep.subr.mxu0 0.0
    %627 = vmatpush1.xpose.msra.mxu0 0.0
    %628 = vmatprep.subr.mxu0 0.0
    %629 = vmatpush1.xpose.msra.mxu0 0.0
    %630 = vmatprep.subr.mxu0 0.0
    %631 = vmatpush1.xpose.msra.mxu0 0.0
    %632 = vmatprep.subr.mxu0 0.0
    %633 = vmatpush1.xpose.msra.mxu0 0.0
    %634 = vmatprep.subr.mxu0 0.0
    %635 = vmatpush1.xpose.msra.mxu0 0.0
    %636 = vmatprep.subr.mxu0 0.0
    %637 = vmatpush1.xpose.msra.mxu0 0.0
    %638 = vmatprep.subr.mxu0 0.0
    %639 = vmatpush1.xpose.msra.mxu0 0.0
    %640 = vmatprep.subr.mxu0 0.0
    %641 = vmatpush1.xpose.msra.mxu0 %v608
    %642 = vmatprep.subr.mxu0 0.0
    %643 = vmatpush2.xpose.msra.mxu0 0.0
    %644 = vmatprep.subr.mxu0 0.0
    %645 = vmatpush2.xpose.msra.mxu0 0.0
    %646 = vmatprep.subr.mxu0 0.0
    %647 = vmatpush2.xpose.msra.mxu0 0.0
    %648 = vmatprep.subr.mxu0 0.0
    %649 = vmatpush2.xpose.msra.mxu0 0.0
    %650 = vmatprep.subr.mxu0 0.0
    %651 = vmatpush2.xpose.msra.mxu0 0.0
    %652 = vmatprep.subr.mxu0 0.0
    %653 = vmatpush2.xpose.msra.mxu0 0.0
    %654 = vmatprep.subr.mxu0 0.0
    %655 = vmatpush2.xpose.msra.mxu0 0.0
    %656 = vmatprep.subr.mxu0 0.0
    %657 = vmatpush2.xpose.msra.mxu0 0.0
    %658 = vmatprep.subr.mxu0 0.0
    %659 = vmatpush2.xpose.msra.mxu0 0.0
    %660 = vmatprep.subr.mxu0 0.0
    %661 = vmatpush2.xpose.msra.mxu0 0.0
    %662 = vmatprep.subr.mxu0 0.0
    %663 = vmatpush2.xpose.msra.mxu0 0.0
    %664 = vmatprep.subr.mxu0 0.0
    %665 = vmatpush2.xpose.msra.mxu0 0.0
    %666 = vmatprep.subr.mxu0 0.0
    %667 = vmatpush2.xpose.msra.mxu0 0.0
    %668 = vmatprep.subr.mxu0 0.0
    %669 = vmatpush2.xpose.msra.mxu0 0.0
    %670 = vmatprep.subr.mxu0 0.0
    %671 = vmatpush2.xpose.msra.mxu0 0.0
    %672 = vmatprep.subr.mxu0 0.0
    %673 = vmatpush2.xpose.msra.mxu0 0.0
    %674 = vmatprep.mubr.f32.mxu0 0.0
    %675 = vmatmul.mubr.f32.gmra.mxu0 %v606
    %v676 = vpop.f32.mrf.mxu0
    %v677 = vadd.f32 0.0, %v676
    %v678 = vpop.f32.mrf.mxu0
    %679 = vdwg.mxu0
    %v680 = vsel %vm98, %v199, 0
    %v682 = vsel %vm98, %v213, 0
    %684 = vmatprep.subr.mxu0 0.0
    %685 = vmatpush1.xpose.msra.mxu0 0.0
    %686 = vmatprep.subr.mxu0 0.0
    %687 = vmatpush1.xpose.msra.mxu0 0.0
    %688 = vmatprep.subr.mxu0 0.0
    %689 = vmatpush1.xpose.msra.mxu0 0.0
    %690 = vmatprep.subr.mxu0 0.0
    %691 = vmatpush1.xpose.msra.mxu0 0.0
    %692 = vmatprep.subr.mxu0 0.0
    %693 = vmatpush1.xpose.msra.mxu0 0.0
    %694 = vmatprep.subr.mxu0 0.0
    %695 = vmatpush1.xpose.msra.mxu0 0.0
    %696 = vmatprep.subr.mxu0 0.0
    %697 = vmatpush1.xpose.msra.mxu0 0.0
    %698 = vmatprep.subr.mxu0 0.0
    %699 = vmatpush1.xpose.msra.mxu0 0.0
    %700 = vmatprep.subr.mxu0 0.0
    %701 = vmatpush1.xpose.msra.mxu0 0.0
    %702 = vmatprep.subr.mxu0 0.0
    %703 = vmatpush1.xpose.msra.mxu0 0.0
    %704 = vmatprep.subr.mxu0 0.0
    %705 = vmatpush1.xpose.msra.mxu0 0.0
    %706 = vmatprep.subr.mxu0 0.0
    %707 = vmatpush1.xpose.msra.mxu0 0.0
    %708 = vmatprep.subr.mxu0 0.0
    %709 = vmatpush1.xpose.msra.mxu0 0.0
    %710 = vmatprep.subr.mxu0 0.0
    %711 = vmatpush1.xpose.msra.mxu0 0.0
    %712 = vmatprep.subr.mxu0 0.0
    %713 = vmatpush1.xpose.msra.mxu0 0.0
    %714 = vmatprep.subr.mxu0 0.0
    %715 = vmatpush1.xpose.msra.mxu0 %v682
    %716 = vmatprep.subr.mxu0 0.0
    %717 = vmatpush2.xpose.msra.mxu0 0.0
    %718 = vmatprep.subr.mxu0 0.0
    %719 = vmatpush2.xpose.msra.mxu0 0.0
    %720 = vmatprep.subr.mxu0 0.0
    %721 = vmatpush2.xpose.msra.mxu0 0.0
    %722 = vmatprep.subr.mxu0 0.0
    %723 = vmatpush2.xpose.msra.mxu0 0.0
    %724 = vmatprep.subr.mxu0 0.0
    %725 = vmatpush2.xpose.msra.mxu0 0.0
    %726 = vmatprep.subr.mxu0 0.0
    %727 = vmatpush2.xpose.msra.mxu0 0.0
    %728 = vmatprep.subr.mxu0 0.0
    %729 = vmatpush2.xpose.msra.mxu0 0.0
    %730 = vmatprep.subr.mxu0 0.0
    %731 = vmatpush2.xpose.msra.mxu0 0.0
    %732 = vmatprep.subr.mxu0 0.0
    %733 = vmatpush2.xpose.msra.mxu0 0.0
    %734 = vmatprep.subr.mxu0 0.0
    %735 = vmatpush2.xpose.msra.mxu0 0.0
    %736 = vmatprep.subr.mxu0 0.0
    %737 = vmatpush2.xpose.msra.mxu0 0.0
    %738 = vmatprep.subr.mxu0 0.0
    %739 = vmatpush2.xpose.msra.mxu0 0.0
    %740 = vmatprep.subr.mxu0 0.0
    %741 = vmatpush2.xpose.msra.mxu0 0.0
    %742 = vmatprep.subr.mxu0 0.0
    %743 = vmatpush2.xpose.msra.mxu0 0.0
    %744 = vmatprep.subr.mxu0 0.0
    %745 = vmatpush2.xpose.msra.mxu0 0.0
    %746 = vmatprep.subr.mxu0 0.0
    %747 = vmatpush2.xpose.msra.mxu0 0.0
    %748 = vmatprep.mubr.f32.mxu0 0.0
    %749 = vmatmul.mubr.f32.gmra.mxu0 %v680
    %v750 = vpop.f32.mrf.mxu0
    %v751 = vadd.f32 0.0, %v750
    %v752 = vpop.f32.mrf.mxu0
    %753 = vdwg.mxu0
    %v754 = vsel %vm98, %v201, 0
    %v756 = vsel %vm98, %v215, 0
    %758 = vmatprep.subr.mxu0 0.0
    %759 = vmatpush1.xpose.msra.mxu0 0.0
    %760 = vmatprep.subr.mxu0 0.0
    %761 = vmatpush1.xpose.msra.mxu0 0.0
    %762 = vmatprep.subr.mxu0 0.0
    %763 = vmatpush1.xpose.msra.mxu0 0.0
    %764 = vmatprep.subr.mxu0 0.0
    %765 = vmatpush1.xpose.msra.mxu0 0.0
    %766 = vmatprep.subr.mxu0 0.0
    %767 = vmatpush1.xpose.msra.mxu0 0.0
    %768 = vmatprep.subr.mxu0 0.0
    %769 = vmatpush1.xpose.msra.mxu0 0.0
    %770 = vmatprep.subr.mxu0 0.0
    %771 = vmatpush1.xpose.msra.mxu0 0.0
    %772 = vmatprep.subr.mxu0 0.0
    %773 = vmatpush1.xpose.msra.mxu0 0.0
    %774 = vmatprep.subr.mxu0 0.0
    %775 = vmatpush1.xpose.msra.mxu0 0.0
    %776 = vmatprep.subr.mxu0 0.0
    %777 = vmatpush1.xpose.msra.mxu0 0.0
    %778 = vmatprep.subr.mxu0 0.0
    %779 = vmatpush1.xpose.msra.mxu0 0.0
    %780 = vmatprep.subr.mxu0 0.0
    %781 = vmatpush1.xpose.msra.mxu0 0.0
    %782 = vmatprep.subr.mxu0 0.0
    %783 = vmatpush1.xpose.msra.mxu0 0.0
    %784 = vmatprep.subr.mxu0 0.0
    %785 = vmatpush1.xpose.msra.mxu0 0.0
    %786 = vmatprep.subr.mxu0 0.0
    %787 = vmatpush1.xpose.msra.mxu0 0.0
    %788 = vmatprep.subr.mxu0 0.0
    %789 = vmatpush1.xpose.msra.mxu0 %v756
    %790 = vmatprep.subr.mxu0 0.0
    %791 = vmatpush2.xpose.msra.mxu0 0.0
    %792 = vmatprep.subr.mxu0 0.0
    %793 = vmatpush2.xpose.msra.mxu0 0.0
    %794 = vmatprep.subr.mxu0 0.0
    %795 = vmatpush2.xpose.msra.mxu0 0.0
    %796 = vmatprep.subr.mxu0 0.0
    %797 = vmatpush2.xpose.msra.mxu0 0.0
    %798 = vmatprep.subr.mxu0 0.0
    %799 = vmatpush2.xpose.msra.mxu0 0.0
    %800 = vmatprep.subr.mxu0 0.0
    %801 = vmatpush2.xpose.msra.mxu0 0.0
    %802 = vmatprep.subr.mxu0 0.0
    %803 = vmatpush2.xpose.msra.mxu0 0.0
    %804 = vmatprep.subr.mxu0 0.0
    %805 = vmatpush2.xpose.msra.mxu0 0.0
    %806 = vmatprep.subr.mxu0 0.0
    %807 = vmatpush2.xpose.msra.mxu0 0.0
    %808 = vmatprep.subr.mxu0 0.0
    %809 = vmatpush2.xpose.msra.mxu0 0.0
    %810 = vmatprep.subr.mxu0 0.0
    %811 = vmatpush2.xpose.msra.mxu0 0.0
    %812 = vmatprep.subr.mxu0 0.0
    %813 = vmatpush2.xpose.msra.mxu0 0.0
    %814 = vmatprep.subr.mxu0 0.0
    %815 = vmatpush2.xpose.msra.mxu0 0.0
    %816 = vmatprep.subr.mxu0 0.0
    %817 = vmatpush2.xpose.msra.mxu0 0.0
    %818 = vmatprep.subr.mxu0 0.0
    %819 = vmatpush2.xpose.msra.mxu0 0.0
    %820 = vmatprep.subr.mxu0 0.0
    %821 = vmatpush2.xpose.msra.mxu0 0.0
    %822 = vmatprep.mubr.f32.mxu0 0.0
    %823 = vmatmul.mubr.f32.gmra.mxu0 %v754
    %v824 = vpop.f32.mrf.mxu0
    %v825 = vadd.f32 0.0, %v824
    %v826 = vpop.f32.mrf.mxu0
    %827 = vdwg.mxu0
    %vm828 = vcmask 64512
    %v829 = vsel %vm828, %v307, -inf
    %830 = vmax.xlane.f32.xlu0 %v829
    %v831 = vpop.xlane.xlu0 %830
    %v832 = vsel %vm828, %v381, -inf
    %833 = vmax.xlane.f32.xlu0 %v832
    %v834 = vpop.xlane.xlu0 %833
    %v835 = vsel %vm828, %v455, -inf
    %836 = vmax.xlane.f32.xlu0 %v835
    %v837 = vpop.xlane.xlu0 %836
    %v838 = vsel %vm828, %v529, -inf
    %839 = vmax.xlane.f32.xlu0 %v838
    %v840 = vpop.xlane.xlu0 %839
    %v841 = vsel %vm828, %v603, -inf
    %842 = vmax.xlane.f32.xlu0 %v841
    %v843 = vpop.xlane.xlu0 %842
    %v844 = vsel %vm828, %v677, -inf
    %845 = vmax.xlane.f32.xlu0 %v844
    %v846 = vpop.xlane.xlu0 %845
    %v847 = vsel %vm828, %v751, -inf
    %848 = vmax.xlane.f32.xlu0 %v847
    %v849 = vpop.xlane.xlu0 %848
    %v850 = vsel %vm828, %v825, -inf
    %851 = vmax.xlane.f32.xlu0 %v850
    %v852 = vpop.xlane.xlu0 %851
    %v853 = vsub.f32 %v307, %v831
    %v854 = vsub.f32 %v381, %v834
    %v855 = vsub.f32 %v455, %v837
    %v856 = vsub.f32 %v529, %v840
    %v857 = vsub.f32 %v603, %v843
    %v858 = vsub.f32 %v677, %v846
    %v859 = vsub.f32 %v751, %v849
    %v860 = vsub.f32 %v825, %v852
    %v861 = vmul.f32 %v853, 1.442695
    %v862 = vpow.pop %v861
    %v863 = vmul.f32 %v854, 1.442695
    %v864 = vpow.pop %v863
    %v865 = vmul.f32 %v855, 1.442695
    %v866 = vpow.pop %v865
    %v867 = vmul.f32 %v856, 1.442695
    %v868 = vpow.pop %v867
    %v869 = vmul.f32 %v857, 1.442695
    %v870 = vpow.pop %v869
    %v871 = vmul.f32 %v858, 1.442695
    %v872 = vpow.pop %v871
    %v873 = vmul.f32 %v859, 1.442695
    %v874 = vpow.pop %v873
    %v875 = vmul.f32 %v860, 1.442695
    %v876 = vpow.pop %v875
    %v877 = vsel %vm828, %v862, 0.0
    %878 = vadd.xlane.f32.xlu0 %v877
    %v879 = vpop.xlane.xlu0 %878
    %v880 = vsel %vm828, %v864, 0.0
    %881 = vadd.xlane.f32.xlu0 %v880
    %v882 = vpop.xlane.xlu0 %881
    %v883 = vsel %vm828, %v866, 0.0
    %884 = vadd.xlane.f32.xlu0 %v883
    %v885 = vpop.xlane.xlu0 %884
    %v886 = vsel %vm828, %v868, 0.0
    %887 = vadd.xlane.f32.xlu0 %v886
    %v888 = vpop.xlane.xlu0 %887
    %v889 = vsel %vm828, %v870, 0.0
    %890 = vadd.xlane.f32.xlu0 %v889
    %v891 = vpop.xlane.xlu0 %890
    %v892 = vsel %vm828, %v872, 0.0
    %893 = vadd.xlane.f32.xlu0 %v892
    %v894 = vpop.xlane.xlu0 %893
    %v895 = vsel %vm828, %v874, 0.0
    %896 = vadd.xlane.f32.xlu0 %v895
    %v897 = vpop.xlane.xlu0 %896
    %v898 = vsel %vm828, %v876, 0.0
    %899 = vadd.xlane.f32.xlu0 %v898
    %v900 = vpop.xlane.xlu0 %899
    %v901 = vrcp.pop %v879
    %v902 = vrcp.pop %v882
    %v903 = vrcp.pop %v885
    %v904 = vrcp.pop %v888
    %v905 = vrcp.pop %v891
    %v906 = vrcp.pop %v894
    %v907 = vrcp.pop %v897
    %v908 = vrcp.pop %v900
    %v909 = vmul.f32 %v862, %v901
    %v910 = vmul.f32 %v864, %v902
    %v911 = vmul.f32 %v866, %v903
    %v912 = vmul.f32 %v868, %v904
    %v913 = vmul.f32 %v870, %v905
    %v914 = vmul.f32 %v872, %v906
    %v915 = vmul.f32 %v874, %v907
    %v916 = vmul.f32 %v876, %v908
    %v918 = vsel %vm828, %v909, 0
    %920 = vmatprep.subr.mxu0 0.0
    %921 = vmatpush1.msra.mxu0 0.0
    %922 = vmatprep.subr.mxu0 0.0
    %923 = vmatpush1.msra.mxu0 0.0
    %924 = vmatprep.subr.mxu0 0.0
    %925 = vmatpush1.msra.mxu0 0.0
    %926 = vmatprep.subr.mxu0 0.0
    %927 = vmatpush1.msra.mxu0 0.0
    %928 = vmatprep.subr.mxu0 0.0
    %929 = vmatpush1.msra.mxu0 0.0
    %930 = vmatprep.subr.mxu0 0.0
    %931 = vmatpush1.msra.mxu0 0.0
    %932 = vmatprep.subr.mxu0 0.0
    %933 = vmatpush1.msra.mxu0 0.0
    %934 = vmatprep.subr.mxu0 0.0
    %935 = vmatpush1.msra.mxu0 0.0
    %936 = vmatprep.subr.mxu0 0.0
    %937 = vmatpush1.msra.mxu0 0.0
    %938 = vmatprep.subr.mxu0 0.0
    %939 = vmatpush1.msra.mxu0 0.0
    %940 = vmatprep.subr.mxu0 0.0
    %941 = vmatpush1.msra.mxu0 0.0
    %942 = vmatprep.subr.mxu0 0.0
    %943 = vmatpush1.msra.mxu0 0.0
    %944 = vmatprep.subr.mxu0 0.0
    %945 = vmatpush1.msra.mxu0 0.0
    %946 = vmatprep.subr.mxu0 0.0
    %947 = vmatpush1.msra.mxu0 0.0
    %948 = vmatprep.subr.mxu0 0.0
    %949 = vmatpush1.msra.mxu0 0.0
    %950 = vmatprep.subr.mxu0 0.0
    %951 = vmatpush1.msra.mxu0 %v180
    %952 = vmatprep.subr.mxu0 0.0
    %953 = vmatpush2.msra.mxu0 0.0
    %954 = vmatprep.subr.mxu0 0.0
    %955 = vmatpush2.msra.mxu0 0.0
    %956 = vmatprep.subr.mxu0 0.0
    %957 = vmatpush2.msra.mxu0 0.0
    %958 = vmatprep.subr.mxu0 0.0
    %959 = vmatpush2.msra.mxu0 0.0
    %960 = vmatprep.subr.mxu0 0.0
    %961 = vmatpush2.msra.mxu0 0.0
    %962 = vmatprep.subr.mxu0 0.0
    %963 = vmatpush2.msra.mxu0 0.0
    %964 = vmatprep.subr.mxu0 0.0
    %965 = vmatpush2.msra.mxu0 0.0
    %966 = vmatprep.subr.mxu0 0.0
    %967 = vmatpush2.msra.mxu0 0.0
    %968 = vmatprep.subr.mxu0 0.0
    %969 = vmatpush2.msra.mxu0 0.0
    %970 = vmatprep.subr.mxu0 0.0
    %971 = vmatpush2.msra.mxu0 0.0
    %972 = vmatprep.subr.mxu0 0.0
    %973 = vmatpush2.msra.mxu0 0.0
    %974 = vmatprep.subr.mxu0 0.0
    %975 = vmatpush2.msra.mxu0 0.0
    %976 = vmatprep.subr.mxu0 0.0
    %977 = vmatpush2.msra.mxu0 0.0
    %978 = vmatprep.subr.mxu0 0.0
    %979 = vmatpush2.msra.mxu0 0.0
    %980 = vmatprep.subr.mxu0 0.0
    %981 = vmatpush2.msra.mxu0 0.0
    %982 = vmatprep.subr.mxu0 0.0
    %983 = vmatpush2.msra.mxu0 0.0
    %984 = vmatprep.mubr.f32.mxu0 0.0
    %985 = vmatmul.mubr.f32.gmra.mxu0 %v918
    %v986 = vpop.f32.mrf.mxu0
    %v987 = vadd.f32 0.0, %v986
    %v988 = vpop.f32.mrf.mxu0
    %989 = vdwg.mxu0
    %v991 = vsel %vm828, %v910, 0
    %993 = vmatprep.subr.mxu0 0.0
    %994 = vmatpush1.msra.mxu0 0.0
    %995 = vmatprep.subr.mxu0 0.0
    %996 = vmatpush1.msra.mxu0 0.0
    %997 = vmatprep.subr.mxu0 0.0
    %998 = vmatpush1.msra.mxu0 0.0
    %999 = vmatprep.subr.mxu0 0.0
    %1000 = vmatpush1.msra.mxu0 0.0
    %1001 = vmatprep.subr.mxu0 0.0
    %1002 = vmatpush1.msra.mxu0 0.0
    %1003 = vmatprep.subr.mxu0 0.0
    %1004 = vmatpush1.msra.mxu0 0.0
    %1005 = vmatprep.subr.mxu0 0.0
    %1006 = vmatpush1.msra.mxu0 0.0
    %1007 = vmatprep.subr.mxu0 0.0
    %1008 = vmatpush1.msra.mxu0 0.0
    %1009 = vmatprep.subr.mxu0 0.0
    %1010 = vmatpush1.msra.mxu0 0.0
    %1011 = vmatprep.subr.mxu0 0.0
    %1012 = vmatpush1.msra.mxu0 0.0
    %1013 = vmatprep.subr.mxu0 0.0
    %1014 = vmatpush1.msra.mxu0 0.0
    %1015 = vmatprep.subr.mxu0 0.0
    %1016 = vmatpush1.msra.mxu0 0.0
    %1017 = vmatprep.subr.mxu0 0.0
    %1018 = vmatpush1.msra.mxu0 0.0
    %1019 = vmatprep.subr.mxu0 0.0
    %1020 = vmatpush1.msra.mxu0 0.0
    %1021 = vmatprep.subr.mxu0 0.0
    %1022 = vmatpush1.msra.mxu0 0.0
    %1023 = vmatprep.subr.mxu0 0.0
    %1024 = vmatpush1.msra.mxu0 %v218
    %1025 = vmatprep.subr.mxu0 0.0
    %1026 = vmatpush2.msra.mxu0 0.0
    %1027 = vmatprep.subr.mxu0 0.0
    %1028 = vmatpush2.msra.mxu0 0.0
    %1029 = vmatprep.subr.mxu0 0.0
    %1030 = vmatpush2.msra.mxu0 0.0
    %1031 = vmatprep.subr.mxu0 0.0
    %1032 = vmatpush2.msra.mxu0 0.0
    %1033 = vmatprep.subr.mxu0 0.0
    %1034 = vmatpush2.msra.mxu0 0.0
    %1035 = vmatprep.subr.mxu0 0.0
    %1036 = vmatpush2.msra.mxu0 0.0
    %1037 = vmatprep.subr.mxu0 0.0
    %1038 = vmatpush2.msra.mxu0 0.0
    %1039 = vmatprep.subr.mxu0 0.0
    %1040 = vmatpush2.msra.mxu0 0.0
    %1041 = vmatprep.subr.mxu0 0.0
    %1042 = vmatpush2.msra.mxu0 0.0
    %1043 = vmatprep.subr.mxu0 0.0
    %1044 = vmatpush2.msra.mxu0 0.0
    %1045 = vmatprep.subr.mxu0 0.0
    %1046 = vmatpush2.msra.mxu0 0.0
    %1047 = vmatprep.subr.mxu0 0.0
    %1048 = vmatpush2.msra.mxu0 0.0
    %1049 = vmatprep.subr.mxu0 0.0
    %1050 = vmatpush2.msra.mxu0 0.0
    %1051 = vmatprep.subr.mxu0 0.0
    %1052 = vmatpush2.msra.mxu0 0.0
    %1053 = vmatprep.subr.mxu0 0.0
    %1054 = vmatpush2.msra.mxu0 0.0
    %1055 = vmatprep.subr.mxu0 0.0
    %1056 = vmatpush2.msra.mxu0 0.0
    %1057 = vmatprep.mubr.f32.mxu0 0.0
    %1058 = vmatmul.mubr.f32.gmra.mxu0 %v991
    %v1059 = vpop.f32.mrf.mxu0
    %v1060 = vadd.f32 0.0, %v1059
    %v1061 = vpop.f32.mrf.mxu0
    %1062 = vdwg.mxu0
    %v1064 = vsel %vm828, %v911, 0
    %1066 = vmatprep.subr.mxu0 0.0
    %1067 = vmatpush1.msra.mxu0 0.0
    %1068 = vmatprep.subr.mxu0 0.0
    %1069 = vmatpush1.msra.mxu0 0.0
    %1070 = vmatprep.subr.mxu0 0.0
    %1071 = vmatpush1.msra.mxu0 0.0
    %1072 = vmatprep.subr.mxu0 0.0
    %1073 = vmatpush1.msra.mxu0 0.0
    %1074 = vmatprep.subr.mxu0 0.0
    %1075 = vmatpush1.msra.mxu0 0.0
    %1076 = vmatprep.subr.mxu0 0.0
    %1077 = vmatpush1.msra.mxu0 0.0
    %1078 = vmatprep.subr.mxu0 0.0
    %1079 = vmatpush1.msra.mxu0 0.0
    %1080 = vmatprep.subr.mxu0 0.0
    %1081 = vmatpush1.msra.mxu0 0.0
    %1082 = vmatprep.subr.mxu0 0.0
    %1083 = vmatpush1.msra.mxu0 0.0
    %1084 = vmatprep.subr.mxu0 0.0
    %1085 = vmatpush1.msra.mxu0 0.0
    %1086 = vmatprep.subr.mxu0 0.0
    %1087 = vmatpush1.msra.mxu0 0.0
    %1088 = vmatprep.subr.mxu0 0.0
    %1089 = vmatpush1.msra.mxu0 0.0
    %1090 = vmatprep.subr.mxu0 0.0
    %1091 = vmatpush1.msra.mxu0 0.0
    %1092 = vmatprep.subr.mxu0 0.0
    %1093 = vmatpush1.msra.mxu0 0.0
    %1094 = vmatprep.subr.mxu0 0.0
    %1095 = vmatpush1.msra.mxu0 0.0
    %1096 = vmatprep.subr.mxu0 0.0
    %1097 = vmatpush1.msra.mxu0 %v221
    %1098 = vmatprep.subr.mxu0 0.0
    %1099 = vmatpush2.msra.mxu0 0.0
    %1100 = vmatprep.subr.mxu0 0.0
    %1101 = vmatpush2.msra.mxu0 0.0
    %1102 = vmatprep.subr.mxu0 0.0
    %1103 = vmatpush2.msra.mxu0 0.0
    %1104 = vmatprep.subr.mxu0 0.0
    %1105 = vmatpush2.msra.mxu0 0.0
    %1106 = vmatprep.subr.mxu0 0.0
    %1107 = vmatpush2.msra.mxu0 0.0
    %1108 = vmatprep.subr.mxu0 0.0
    %1109 = vmatpush2.msra.mxu0 0.0
    %1110 = vmatprep.subr.mxu0 0.0
    %1111 = vmatpush2.msra.mxu0 0.0
    %1112 = vmatprep.subr.mxu0 0.0
    %1113 = vmatpush2.msra.mxu0 0.0
    %1114 = vmatprep.subr.mxu0 0.0
    %1115 = vmatpush2.msra.mxu0 0.0
    %1116 = vmatprep.subr.mxu0 0.0
    %1117 = vmatpush2.msra.mxu0 0.0
    %1118 = vmatprep.subr.mxu0 0.0
    %1119 = vmatpush2.msra.mxu0 0.0
    %1120 = vmatprep.subr.mxu0 0.0
    %1121 = vmatpush2.msra.mxu0 0.0
    %1122 = vmatprep.subr.mxu0 0.0
    %1123 = vmatpush2.msra.mxu0 0.0
    %1124 = vmatprep.subr.mxu0 0.0
    %1125 = vmatpush2.msra.mxu0 0.0
    %1126 = vmatprep.subr.mxu0 0.0
    %1127 = vmatpush2.msra.mxu0 0.0
    %1128 = vmatprep.subr.mxu0 0.0
    %1129 = vmatpush2.msra.mxu0 0.0
    %1130 = vmatprep.mubr.f32.mxu0 0.0
    %1131 = vmatmul.mubr.f32.gmra.mxu0 %v1064
    %v1132 = vpop.f32.mrf.mxu0
    %v1133 = vadd.f32 0.0, %v1132
    %v1134 = vpop.f32.mrf.mxu0
    %1135 = vdwg.mxu0
    %v1137 = vsel %vm828, %v912, 0
    %1139 = vmatprep.subr.mxu0 0.0
    %1140 = vmatpush1.msra.mxu0 0.0
    %1141 = vmatprep.subr.mxu0 0.0
    %1142 = vmatpush1.msra.mxu0 0.0
    %1143 = vmatprep.subr.mxu0 0.0
    %1144 = vmatpush1.msra.mxu0 0.0
    %1145 = vmatprep.subr.mxu0 0.0
    %1146 = vmatpush1.msra.mxu0 0.0
    %1147 = vmatprep.subr.mxu0 0.0
    %1148 = vmatpush1.msra.mxu0 0.0
    %1149 = vmatprep.subr.mxu0 0.0
    %1150 = vmatpush1.msra.mxu0 0.0
    %1151 = vmatprep.subr.mxu0 0.0
    %1152 = vmatpush1.msra.mxu0 0.0
    %1153 = vmatprep.subr.mxu0 0.0
    %1154 = vmatpush1.msra.mxu0 0.0
    %1155 = vmatprep.subr.mxu0 0.0
    %1156 = vmatpush1.msra.mxu0 0.0
    %1157 = vmatprep.subr.mxu0 0.0
    %1158 = vmatpush1.msra.mxu0 0.0
    %1159 = vmatprep.subr.mxu0 0.0
    %1160 = vmatpush1.msra.mxu0 0.0
    %1161 = vmatprep.subr.mxu0 0.0
    %1162 = vmatpush1.msra.mxu0 0.0
    %1163 = vmatprep.subr.mxu0 0.0
    %1164 = vmatpush1.msra.mxu0 0.0
    %1165 = vmatprep.subr.mxu0 0.0
    %1166 = vmatpush1.msra.mxu0 0.0
    %1167 = vmatprep.subr.mxu0 0.0
    %1168 = vmatpush1.msra.mxu0 0.0
    %1169 = vmatprep.subr.mxu0 0.0
    %1170 = vmatpush1.msra.mxu0 %v224
    %1171 = vmatprep.subr.mxu0 0.0
    %1172 = vmatpush2.msra.mxu0 0.0
    %1173 = vmatprep.subr.mxu0 0.0
    %1174 = vmatpush2.msra.mxu0 0.0
    %1175 = vmatprep.subr.mxu0 0.0
    %1176 = vmatpush2.msra.mxu0 0.0
    %1177 = vmatprep.subr.mxu0 0.0
    %1178 = vmatpush2.msra.mxu0 0.0
    %1179 = vmatprep.subr.mxu0 0.0
    %1180 = vmatpush2.msra.mxu0 0.0
    %1181 = vmatprep.subr.mxu0 0.0
    %1182 = vmatpush2.msra.mxu0 0.0
    %1183 = vmatprep.subr.mxu0 0.0
    %1184 = vmatpush2.msra.mxu0 0.0
    %1185 = vmatprep.subr.mxu0 0.0
    %1186 = vmatpush2.msra.mxu0 0.0
    %1187 = vmatprep.subr.mxu0 0.0
    %1188 = vmatpush2.msra.mxu0 0.0
    %1189 = vmatprep.subr.mxu0 0.0
    %1190 = vmatpush2.msra.mxu0 0.0
    %1191 = vmatprep.subr.mxu0 0.0
    %1192 = vmatpush2.msra.mxu0 0.0
    %1193 = vmatprep.subr.mxu0 0.0
    %1194 = vmatpush2.msra.mxu0 0.0
    %1195 = vmatprep.subr.mxu0 0.0
    %1196 = vmatpush2.msra.mxu0 0.0
    %1197 = vmatprep.subr.mxu0 0.0
    %1198 = vmatpush2.msra.mxu0 0.0
    %1199 = vmatprep.subr.mxu0 0.0
    %1200 = vmatpush2.msra.mxu0 0.0
    %1201 = vmatprep.subr.mxu0 0.0
    %1202 = vmatpush2.msra.mxu0 0.0
    %1203 = vmatprep.mubr.f32.mxu0 0.0
    %1204 = vmatmul.mubr.f32.gmra.mxu0 %v1137
    %v1205 = vpop.f32.mrf.mxu0
    %v1206 = vadd.f32 0.0, %v1205
    %v1207 = vpop.f32.mrf.mxu0
    %1208 = vdwg.mxu0
    %v1210 = vsel %vm828, %v913, 0
    %1212 = vmatprep.subr.mxu0 0.0
    %1213 = vmatpush1.msra.mxu0 0.0
    %1214 = vmatprep.subr.mxu0 0.0
    %1215 = vmatpush1.msra.mxu0 0.0
    %1216 = vmatprep.subr.mxu0 0.0
    %1217 = vmatpush1.msra.mxu0 0.0
    %1218 = vmatprep.subr.mxu0 0.0
    %1219 = vmatpush1.msra.mxu0 0.0
    %1220 = vmatprep.subr.mxu0 0.0
    %1221 = vmatpush1.msra.mxu0 0.0
    %1222 = vmatprep.subr.mxu0 0.0
    %1223 = vmatpush1.msra.mxu0 0.0
    %1224 = vmatprep.subr.mxu0 0.0
    %1225 = vmatpush1.msra.mxu0 0.0
    %1226 = vmatprep.subr.mxu0 0.0
    %1227 = vmatpush1.msra.mxu0 0.0
    %1228 = vmatprep.subr.mxu0 0.0
    %1229 = vmatpush1.msra.mxu0 0.0
    %1230 = vmatprep.subr.mxu0 0.0
    %1231 = vmatpush1.msra.mxu0 0.0
    %1232 = vmatprep.subr.mxu0 0.0
    %1233 = vmatpush1.msra.mxu0 0.0
    %1234 = vmatprep.subr.mxu0 0.0
    %1235 = vmatpush1.msra.mxu0 0.0
    %1236 = vmatprep.subr.mxu0 0.0
    %1237 = vmatpush1.msra.mxu0 0.0
    %1238 = vmatprep.subr.mxu0 0.0
    %1239 = vmatpush1.msra.mxu0 0.0
    %1240 = vmatprep.subr.mxu0 0.0
    %1241 = vmatpush1.msra.mxu0 0.0
    %1242 = vmatprep.subr.mxu0 0.0
    %1243 = vmatpush1.msra.mxu0 %v183
    %1244 = vmatprep.subr.mxu0 0.0
    %1245 = vmatpush2.msra.mxu0 0.0
    %1246 = vmatprep.subr.mxu0 0.0
    %1247 = vmatpush2.msra.mxu0 0.0
    %1248 = vmatprep.subr.mxu0 0.0
    %1249 = vmatpush2.msra.mxu0 0.0
    %1250 = vmatprep.subr.mxu0 0.0
    %1251 = vmatpush2.msra.mxu0 0.0
    %1252 = vmatprep.subr.mxu0 0.0
    %1253 = vmatpush2.msra.mxu0 0.0
    %1254 = vmatprep.subr.mxu0 0.0
    %1255 = vmatpush2.msra.mxu0 0.0
    %1256 = vmatprep.subr.mxu0 0.0
    %1257 = vmatpush2.msra.mxu0 0.0
    %1258 = vmatprep.subr.mxu0 0.0
    %1259 = vmatpush2.msra.mxu0 0.0
    %1260 = vmatprep.subr.mxu0 0.0
    %1261 = vmatpush2.msra.mxu0 0.0
    %1262 = vmatprep.subr.mxu0 0.0
    %1263 = vmatpush2.msra.mxu0 0.0
    %1264 = vmatprep.subr.mxu0 0.0
    %1265 = vmatpush2.msra.mxu0 0.0
    %1266 = vmatprep.subr.mxu0 0.0
    %1267 = vmatpush2.msra.mxu0 0.0
    %1268 = vmatprep.subr.mxu0 0.0
    %1269 = vmatpush2.msra.mxu0 0.0
    %1270 = vmatprep.subr.mxu0 0.0
    %1271 = vmatpush2.msra.mxu0 0.0
    %1272 = vmatprep.subr.mxu0 0.0
    %1273 = vmatpush2.msra.mxu0 0.0
    %1274 = vmatprep.subr.mxu0 0.0
    %1275 = vmatpush2.msra.mxu0 0.0
    %1276 = vmatprep.mubr.f32.mxu0 0.0
    %1277 = vmatmul.mubr.f32.gmra.mxu0 %v1210
    %v1278 = vpop.f32.mrf.mxu0
    %v1279 = vadd.f32 0.0, %v1278
    %v1280 = vpop.f32.mrf.mxu0
    %1281 = vdwg.mxu0
    %v1283 = vsel %vm828, %v914, 0
    %1285 = vmatprep.subr.mxu0 0.0
    %1286 = vmatpush1.msra.mxu0 0.0
    %1287 = vmatprep.subr.mxu0 0.0
    %1288 = vmatpush1.msra.mxu0 0.0
    %1289 = vmatprep.subr.mxu0 0.0
    %1290 = vmatpush1.msra.mxu0 0.0
    %1291 = vmatprep.subr.mxu0 0.0
    %1292 = vmatpush1.msra.mxu0 0.0
    %1293 = vmatprep.subr.mxu0 0.0
    %1294 = vmatpush1.msra.mxu0 0.0
    %1295 = vmatprep.subr.mxu0 0.0
    %1296 = vmatpush1.msra.mxu0 0.0
    %1297 = vmatprep.subr.mxu0 0.0
    %1298 = vmatpush1.msra.mxu0 0.0
    %1299 = vmatprep.subr.mxu0 0.0
    %1300 = vmatpush1.msra.mxu0 0.0
    %1301 = vmatprep.subr.mxu0 0.0
    %1302 = vmatpush1.msra.mxu0 0.0
    %1303 = vmatprep.subr.mxu0 0.0
    %1304 = vmatpush1.msra.mxu0 0.0
    %1305 = vmatprep.subr.mxu0 0.0
    %1306 = vmatpush1.msra.mxu0 0.0
    %1307 = vmatprep.subr.mxu0 0.0
    %1308 = vmatpush1.msra.mxu0 0.0
    %1309 = vmatprep.subr.mxu0 0.0
    %1310 = vmatpush1.msra.mxu0 0.0
    %1311 = vmatprep.subr.mxu0 0.0
    %1312 = vmatpush1.msra.mxu0 0.0
    %1313 = vmatprep.subr.mxu0 0.0
    %1314 = vmatpush1.msra.mxu0 0.0
    %1315 = vmatprep.subr.mxu0 0.0
    %1316 = vmatpush1.msra.mxu0 %v228
    %1317 = vmatprep.subr.mxu0 0.0
    %1318 = vmatpush2.msra.mxu0 0.0
    %1319 = vmatprep.subr.mxu0 0.0
    %1320 = vmatpush2.msra.mxu0 0.0
    %1321 = vmatprep.subr.mxu0 0.0
    %1322 = vmatpush2.msra.mxu0 0.0
    %1323 = vmatprep.subr.mxu0 0.0
    %1324 = vmatpush2.msra.mxu0 0.0
    %1325 = vmatprep.subr.mxu0 0.0
    %1326 = vmatpush2.msra.mxu0 0.0
    %1327 = vmatprep.subr.mxu0 0.0
    %1328 = vmatpush2.msra.mxu0 0.0
    %1329 = vmatprep.subr.mxu0 0.0
    %1330 = vmatpush2.msra.mxu0 0.0
    %1331 = vmatprep.subr.mxu0 0.0
    %1332 = vmatpush2.msra.mxu0 0.0
    %1333 = vmatprep.subr.mxu0 0.0
    %1334 = vmatpush2.msra.mxu0 0.0
    %1335 = vmatprep.subr.mxu0 0.0
    %1336 = vmatpush2.msra.mxu0 0.0
    %1337 = vmatprep.subr.mxu0 0.0
    %1338 = vmatpush2.msra.mxu0 0.0
    %1339 = vmatprep.subr.mxu0 0.0
    %1340 = vmatpush2.msra.mxu0 0.0
    %1341 = vmatprep.subr.mxu0 0.0
    %1342 = vmatpush2.msra.mxu0 0.0
    %1343 = vmatprep.subr.mxu0 0.0
    %1344 = vmatpush2.msra.mxu0 0.0
    %1345 = vmatprep.subr.mxu0 0.0
    %1346 = vmatpush2.msra.mxu0 0.0
    %1347 = vmatprep.subr.mxu0 0.0
    %1348 = vmatpush2.msra.mxu0 0.0
    %1349 = vmatprep.mubr.f32.mxu0 0.0
    %1350 = vmatmul.mubr.f32.gmra.mxu0 %v1283
    %v1351 = vpop.f32.mrf.mxu0
    %v1352 = vadd.f32 0.0, %v1351
    %v1353 = vpop.f32.mrf.mxu0
    %1354 = vdwg.mxu0
    %v1356 = vsel %vm828, %v915, 0
    %1358 = vmatprep.subr.mxu0 0.0
    %1359 = vmatpush1.msra.mxu0 0.0
    %1360 = vmatprep.subr.mxu0 0.0
    %1361 = vmatpush1.msra.mxu0 0.0
    %1362 = vmatprep.subr.mxu0 0.0
    %1363 = vmatpush1.msra.mxu0 0.0
    %1364 = vmatprep.subr.mxu0 0.0
    %1365 = vmatpush1.msra.mxu0 0.0
    %1366 = vmatprep.subr.mxu0 0.0
    %1367 = vmatpush1.msra.mxu0 0.0
    %1368 = vmatprep.subr.mxu0 0.0
    %1369 = vmatpush1.msra.mxu0 0.0
    %1370 = vmatprep.subr.mxu0 0.0
    %1371 = vmatpush1.msra.mxu0 0.0
    %1372 = vmatprep.subr.mxu0 0.0
    %1373 = vmatpush1.msra.mxu0 0.0
    %1374 = vmatprep.subr.mxu0 0.0
    %1375 = vmatpush1.msra.mxu0 0.0
    %1376 = vmatprep.subr.mxu0 0.0
    %1377 = vmatpush1.msra.mxu0 0.0
    %1378 = vmatprep.subr.mxu0 0.0
    %1379 = vmatpush1.msra.mxu0 0.0
    %1380 = vmatprep.subr.mxu0 0.0
    %1381 = vmatpush1.msra.mxu0 0.0
    %1382 = vmatprep.subr.mxu0 0.0
    %1383 = vmatpush1.msra.mxu0 0.0
    %1384 = vmatprep.subr.mxu0 0.0
    %1385 = vmatpush1.msra.mxu0 0.0
    %1386 = vmatprep.subr.mxu0 0.0
    %1387 = vmatpush1.msra.mxu0 0.0
    %1388 = vmatprep.subr.mxu0 0.0
    %1389 = vmatpush1.msra.mxu0 %v231
    %1390 = vmatprep.subr.mxu0 0.0
    %1391 = vmatpush2.msra.mxu0 0.0
    %1392 = vmatprep.subr.mxu0 0.0
    %1393 = vmatpush2.msra.mxu0 0.0
    %1394 = vmatprep.subr.mxu0 0.0
    %1395 = vmatpush2.msra.mxu0 0.0
    %1396 = vmatprep.subr.mxu0 0.0
    %1397 = vmatpush2.msra.mxu0 0.0
    %1398 = vmatprep.subr.mxu0 0.0
    %1399 = vmatpush2.msra.mxu0 0.0
    %1400 = vmatprep.subr.mxu0 0.0
    %1401 = vmatpush2.msra.mxu0 0.0
    %1402 = vmatprep.subr.mxu0 0.0
    %1403 = vmatpush2.msra.mxu0 0.0
    %1404 = vmatprep.subr.mxu0 0.0
    %1405 = vmatpush2.msra.mxu0 0.0
    %1406 = vmatprep.subr.mxu0 0.0
    %1407 = vmatpush2.msra.mxu0 0.0
    %1408 = vmatprep.subr.mxu0 0.0
    %1409 = vmatpush2.msra.mxu0 0.0
    %1410 = vmatprep.subr.mxu0 0.0
    %1411 = vmatpush2.msra.mxu0 0.0
    %1412 = vmatprep.subr.mxu0 0.0
    %1413 = vmatpush2.msra.mxu0 0.0
    %1414 = vmatprep.subr.mxu0 0.0
    %1415 = vmatpush2.msra.mxu0 0.0
    %1416 = vmatprep.subr.mxu0 0.0
    %1417 = vmatpush2.msra.mxu0 0.0
    %1418 = vmatprep.subr.mxu0 0.0
    %1419 = vmatpush2.msra.mxu0 0.0
    %1420 = vmatprep.subr.mxu0 0.0
    %1421 = vmatpush2.msra.mxu0 0.0
    %1422 = vmatprep.mubr.f32.mxu0 0.0
    %1423 = vmatmul.mubr.f32.gmra.mxu0 %v1356
    %v1424 = vpop.f32.mrf.mxu0
    %v1425 = vadd.f32 0.0, %v1424
    %v1426 = vpop.f32.mrf.mxu0
    %1427 = vdwg.mxu0
    %v1429 = vsel %vm828, %v916, 0
    %1431 = vmatprep.subr.mxu0 0.0
    %1432 = vmatpush1.msra.mxu0 0.0
    %1433 = vmatprep.subr.mxu0 0.0
    %1434 = vmatpush1.msra.mxu0 0.0
    %1435 = vmatprep.subr.mxu0 0.0
    %1436 = vmatpush1.msra.mxu0 0.0
    %1437 = vmatprep.subr.mxu0 0.0
    %1438 = vmatpush1.msra.mxu0 0.0
    %1439 = vmatprep.subr.mxu0 0.0
    %1440 = vmatpush1.msra.mxu0 0.0
    %1441 = vmatprep.subr.mxu0 0.0
    %1442 = vmatpush1.msra.mxu0 0.0
    %1443 = vmatprep.subr.mxu0 0.0
    %1444 = vmatpush1.msra.mxu0 0.0
    %1445 = vmatprep.subr.mxu0 0.0
    %1446 = vmatpush1.msra.mxu0 0.0
    %1447 = vmatprep.subr.mxu0 0.0
    %1448 = vmatpush1.msra.mxu0 0.0
    %1449 = vmatprep.subr.mxu0 0.0
    %1450 = vmatpush1.msra.mxu0 0.0
    %1451 = vmatprep.subr.mxu0 0.0
    %1452 = vmatpush1.msra.mxu0 0.0
    %1453 = vmatprep.subr.mxu0 0.0
    %1454 = vmatpush1.msra.mxu0 0.0
    %1455 = vmatprep.subr.mxu0 0.0
    %1456 = vmatpush1.msra.mxu0 0.0
    %1457 = vmatprep.subr.mxu0 0.0
    %1458 = vmatpush1.msra.mxu0 0.0
    %1459 = vmatprep.subr.mxu0 0.0
    %1460 = vmatpush1.msra.mxu0 0.0
    %1461 = vmatprep.subr.mxu0 0.0
    %1462 = vmatpush1.msra.mxu0 %v234
    %1463 = vmatprep.subr.mxu0 0.0
    %1464 = vmatpush2.msra.mxu0 0.0
    %1465 = vmatprep.subr.mxu0 0.0
    %1466 = vmatpush2.msra.mxu0 0.0
    %1467 = vmatprep.subr.mxu0 0.0
    %1468 = vmatpush2.msra.mxu0 0.0
    %1469 = vmatprep.subr.mxu0 0.0
    %1470 = vmatpush2.msra.mxu0 0.0
    %1471 = vmatprep.subr.mxu0 0.0
    %1472 = vmatpush2.msra.mxu0 0.0
    %1473 = vmatprep.subr.mxu0 0.0
    %1474 = vmatpush2.msra.mxu0 0.0
    %1475 = vmatprep.subr.mxu0 0.0
    %1476 = vmatpush2.msra.mxu0 0.0
    %1477 = vmatprep.subr.mxu0 0.0
    %1478 = vmatpush2.msra.mxu0 0.0
    %1479 = vmatprep.subr.mxu0 0.0
    %1480 = vmatpush2.msra.mxu0 0.0
    %1481 = vmatprep.subr.mxu0 0.0
    %1482 = vmatpush2.msra.mxu0 0.0
    %1483 = vmatprep.subr.mxu0 0.0
    %1484 = vmatpush2.msra.mxu0 0.0
    %1485 = vmatprep.subr.mxu0 0.0
    %1486 = vmatpush2.msra.mxu0 0.0
    %1487 = vmatprep.subr.mxu0 0.0
    %1488 = vmatpush2.msra.mxu0 0.0
    %1489 = vmatprep.subr.mxu0 0.0
    %1490 = vmatpush2.msra.mxu0 0.0
    %1491 = vmatprep.subr.mxu0 0.0
    %1492 = vmatpush2.msra.mxu0 0.0
    %1493 = vmatprep.subr.mxu0 0.0
    %1494 = vmatpush2.msra.mxu0 0.0
    %1495 = vmatprep.mubr.f32.mxu0 0.0
    %1496 = vmatmul.mubr.f32.gmra.mxu0 %v1429
    %v1497 = vpop.f32.mrf.mxu0
    %v1498 = vadd.f32 0.0, %v1497
    %v1499 = vpop.f32.mrf.mxu0
    %1500 = vdwg.mxu0
    %1502 = vrot.lane.b32.xlu0 %v1060, 32
    %v1503 = vpop.permute.xlu0 %1502
    %1506 = vrot.lane.b32.xlu0 %v1133, 64
    %v1507 = vpop.permute.xlu0 %1506
    %1510 = vrot.lane.b32.xlu0 %v1206, 96
    %v1511 = vpop.permute.xlu0 %1510
    %v1513 = vsel %vm98, %v987, %v1503
    %vm1514 = vcmask 523264
    %v1515 = vsel %vm1514, %v1513, %v1507
    %vm1516 = vcmask 785408
    %v1517 = vsel %vm1516, %v1515, %v1511
    %1519 = vrot.lane.b32.xlu0 %v1352, 32
    %v1520 = vpop.permute.xlu0 %1519
    %1523 = vrot.lane.b32.xlu0 %v1425, 64
    %v1524 = vpop.permute.xlu0 %1523
    %1527 = vrot.lane.b32.xlu0 %v1498, 96
    %v1528 = vpop.permute.xlu0 %1527
    %v1530 = vsel %vm98, %v1279, %v1520
    %v1531 = vsel %vm1514, %v1530, %v1524
    %v1532 = vsel %vm1516, %v1531, %v1528
    %v1533 = vpack.c.bf16 %v1532, %v1517
    %v1534 = vld [vmem:[%s3] sm:$0xf]
    %v1535 = vld [vmem:[%s3 + $0x4] sm:$0xf]
    %v1536 = vld [vmem:[%s3 + $0x8] sm:$0xf]
    %v1537 = vld [vmem:[%s3 + $0xc] sm:$0xf]
    %v1538 = vld [vmem:[%s3 + $0x10] sm:$0xf]
    %v1539 = vld [vmem:[%s3 + $0x14] sm:$0xf]
    %v1540 = vld [vmem:[%s3 + $0x18] sm:$0xf]
    %v1541 = vld [vmem:[%s3 + $0x1c] sm:$0xf]
    %v1542 = vld [vmem:[%s3 + $0x20] sm:$0xf]
    %v1543 = vld [vmem:[%s3 + $0x24] sm:$0xf]
    %v1544 = vld [vmem:[%s3 + $0x28] sm:$0xf]
    %v1545 = vld [vmem:[%s3 + $0x2c] sm:$0xf]
    %v1546 = vld [vmem:[%s3 + $0x30] sm:$0xf]
    %v1547 = vld [vmem:[%s3 + $0x34] sm:$0xf]
    %v1548 = vld [vmem:[%s3 + $0x38] sm:$0xf]
    %v1549 = vld [vmem:[%s3 + $0x3c] sm:$0xf]
    %v1550 = vld [vmem:[%s4] sm:$0x1]
    %v1552 = vlaneseq
    %v1553 = vshrl.u32 %v1552, 7
    %v1554 = vsub.s32 0, %v1553
    %v1555 = vrot.slane %v1550, %v1554
    %v1573 = vunpack.c.l.b16 %v1534
    %v1574 = vunpack.c.l.b16 %v1535
    %v1575 = vunpack.c.l.b16 %v1536
    %v1576 = vunpack.c.l.b16 %v1537
    %v1577 = vunpack.c.l.b16 %v1538
    %v1578 = vunpack.c.l.b16 %v1539
    %v1579 = vunpack.c.l.b16 %v1540
    %v1580 = vunpack.c.l.b16 %v1541
    %v1581 = vunpack.c.l.b16 %v1542
    %v1582 = vunpack.c.l.b16 %v1543
    %v1583 = vunpack.c.l.b16 %v1544
    %v1584 = vunpack.c.l.b16 %v1545
    %v1585 = vunpack.c.l.b16 %v1546
    %v1586 = vunpack.c.l.b16 %v1547
    %v1587 = vunpack.c.l.b16 %v1548
    %v1588 = vunpack.c.l.b16 %v1549
    %v1589 = vpack.c.b16 %v1574, %v1573
    %v1590 = vpack.c.b16 %v1576, %v1575
    %v1591 = vpack.c.b16 %v1578, %v1577
    %v1592 = vpack.c.b16 %v1580, %v1579
    %v1593 = vpack.c.b16 %v1582, %v1581
    %v1594 = vpack.c.b16 %v1584, %v1583
    %v1595 = vpack.c.b16 %v1586, %v1585
    %v1596 = vpack.c.b16 %v1588, %v1587
    %1605 = vmatprep.subr.bf16.mxu0 0
    %1606 = vmatpush1.bf16.msra.mxu0 %v1596
    %1607 = vmatprep.subr.bf16.mxu0 0
    %1608 = vmatpush1.bf16.msra.mxu0 %v1595
    %1609 = vmatprep.subr.bf16.mxu0 0
    %1610 = vmatpush1.bf16.msra.mxu0 %v1594
    %1611 = vmatprep.subr.bf16.mxu0 0
    %1612 = vmatpush1.bf16.msra.mxu0 %v1593
    %1613 = vmatprep.subr.bf16.mxu0 0
    %1614 = vmatpush1.bf16.msra.mxu0 %v1592
    %1615 = vmatprep.subr.bf16.mxu0 0
    %1616 = vmatpush1.bf16.msra.mxu0 %v1591
    %1617 = vmatprep.subr.bf16.mxu0 0
    %1618 = vmatpush1.bf16.msra.mxu0 %v1590
    %1619 = vmatprep.subr.bf16.mxu0 0
    %1620 = vmatpush1.bf16.msra.mxu0 %v1589
    %1621 = vmatprep.subr.bf16.mxu0 0
    %1622 = vmatpush2.bf16.msra.mxu0 0
    %1623 = vmatprep.subr.bf16.mxu0 0
    %1624 = vmatpush2.bf16.msra.mxu0 0
    %1625 = vmatprep.subr.bf16.mxu0 0
    %1626 = vmatpush2.bf16.msra.mxu0 0
    %1627 = vmatprep.subr.bf16.mxu0 0
    %1628 = vmatpush2.bf16.msra.mxu0 0
    %1629 = vmatprep.subr.bf16.mxu0 0
    %1630 = vmatpush2.bf16.msra.mxu0 0
    %1631 = vmatprep.subr.bf16.mxu0 0
    %1632 = vmatpush2.bf16.msra.mxu0 0
    %1633 = vmatprep.subr.bf16.mxu0 0
    %1634 = vmatpush2.bf16.msra.mxu0 0
    %1635 = vmatprep.subr.bf16.mxu0 0
    %1636 = vmatpush2.bf16.msra.mxu0 0
    %1637 = vmatprep.mubr.bf16.mxu0 0
    %1638 = vmatmul.mubr.bf16.gmra.mxu0 %v1533
    %v1639 = vpop.f32.mrf.mxu0
    %v1640 = vadd.f32 %v1555, %v1639
    %v1641 = vpop.f32.mrf.mxu0
    %v1642 = vpop.f32.mrf.mxu0
    %v1643 = vadd.f32 %v1555, %v1642
    %v1644 = vpop.f32.mrf.mxu0
    %1645 = vdwg.mxu0
    %v1646 = vadd.f32 %v1640, %v55
    %v1647 = vadd.f32 %v1643, %v56
    %v1648 = vld [vmem:[%s5] sm:$0x1]
    %v1649 = vld [vmem:[%s6] sm:$0x1]
    %v1650 = vsel %vm98, %v1646, 0.0
    %1651 = vadd.xlane.f32.xlu0 %v1650
    %v1652 = vpop.xlane.xlu0 %1651
    %v1653 = vsel %vm98, %v1647, 0.0
    %1654 = vadd.xlane.f32.xlu0 %v1653
    %v1655 = vpop.xlane.xlu0 %1654
    %v1656 = vrcp.pop 32.0
    %v1657 = vmul.f32 %v1652, %v1656
    %v1658 = vmul.f32 %v1655, %v1656
    %v1659 = vsub.f32 %v1646, %v1657
    %v1660 = vsub.f32 %v1647, %v1658
    %v1661 = vmul.f32 %v1659, %v1659
    %v1662 = vmul.f32 %v1660, %v1660
    %v1663 = vsel %vm98, %v1661, 0.0
    %1664 = vadd.xlane.f32.xlu0 %v1663
    %v1665 = vpop.xlane.xlu0 %1664
    %v1666 = vsel %vm98, %v1662, 0.0
    %1667 = vadd.xlane.f32.xlu0 %v1666
    %v1668 = vpop.xlane.xlu0 %1667
    %v1669 = vmul.f32 %v1665, %v1656
    %v1670 = vmul.f32 %v1668, %v1656
    %v1671 = vadd.f32 %v1669, 1e-05
    %v1672 = vadd.f32 %v1670, 1e-05
    %v1673 = vrsqrt.pop %v1671
    %v1674 = vrsqrt.pop %v1672
    %v1675 = vmul.f32 %v1659, %v1673
    %v1676 = vmul.f32 %v1660, %v1674
    %v1678 = vlaneseq
    %v1679 = vshrl.u32 %v1678, 7
    %v1680 = vsub.s32 0, %v1679
    %v1681 = vrot.slane %v1648, %v1680
    %v1683 = vmul.f32 %v1675, %v1681
    %v1684 = vmul.f32 %v1676, %v1681
    %v1686 = vlaneseq
    %v1687 = vshrl.u32 %v1686, 7
    %v1688 = vsub.s32 0, %v1687
    %v1689 = vrot.slane %v1649, %v1688
    %v1691 = vadd.f32 %v1683, %v1689
    %v1692 = vadd.f32 %v1684, %v1689
    %v1693 = vpack.c.bf16 %v1692, %v1691
    %v1694 = vld [vmem:[%s7] sm:$0xf]
    %v1695 = vld [vmem:[%s7 + $0x4] sm:$0xf]
    %v1696 = vld [vmem:[%s7 + $0x8] sm:$0xf]
    %v1697 = vld [vmem:[%s7 + $0xc] sm:$0xf]
    %v1698 = vld [vmem:[%s8] sm:$0x1]
    %v1700 = vlaneseq
    %v1701 = vshrl.u32 %v1700, 7
    %v1702 = vsub.s32 0, %v1701
    %v1703 = vrot.slane %v1698, %v1702
    %v1709 = vunpack.c.l.b16 %v1694
    %v1710 = vunpack.c.l.b16 %v1695
    %v1711 = vunpack.c.l.b16 %v1696
    %v1712 = vunpack.c.l.b16 %v1697
    %v1713 = vpack.c.b16 %v1710, %v1709
    %v1714 = vpack.c.b16 %v1712, %v1711
    %v1718 = vsel %vm98, %v1693, 0
    %1720 = vmatprep.subr.bf16.mxu0 0
    %1721 = vmatpush1.bf16.msra.mxu0 0
    %1722 = vmatprep.subr.bf16.mxu0 0
    %1723 = vmatpush1.bf16.msra.mxu0 0
    %1724 = vmatprep.subr.bf16.mxu0 0
    %1725 = vmatpush1.bf16.msra.mxu0 0
    %1726 = vmatprep.subr.bf16.mxu0 0
    %1727 = vmatpush1.bf16.msra.mxu0 0
    %1728 = vmatprep.subr.bf16.mxu0 0
    %1729 = vmatpush1.bf16.msra.mxu0 0
    %1730 = vmatprep.subr.bf16.mxu0 0
    %1731 = vmatpush1.bf16.msra.mxu0 0
    %1732 = vmatprep.subr.bf16.mxu0 0
    %1733 = vmatpush1.bf16.msra.mxu0 %v1714
    %1734 = vmatprep.subr.bf16.mxu0 0
    %1735 = vmatpush1.bf16.msra.mxu0 %v1713
    %1736 = vmatprep.subr.bf16.mxu0 0
    %1737 = vmatpush2.bf16.msra.mxu0 0
    %1738 = vmatprep.subr.bf16.mxu0 0
    %1739 = vmatpush2.bf16.msra.mxu0 0
    %1740 = vmatprep.subr.bf16.mxu0 0
    %1741 = vmatpush2.bf16.msra.mxu0 0
    %1742 = vmatprep.subr.bf16.mxu0 0
    %1743 = vmatpush2.bf16.msra.mxu0 0
    %1744 = vmatprep.subr.bf16.mxu0 0
    %1745 = vmatpush2.bf16.msra.mxu0 0
    %1746 = vmatprep.subr.bf16.mxu0 0
    %1747 = vmatpush2.bf16.msra.mxu0 0
    %1748 = vmatprep.subr.bf16.mxu0 0
    %1749 = vmatpush2.bf16.msra.mxu0 0
    %1750 = vmatprep.subr.bf16.mxu0 0
    %1751 = vmatpush2.bf16.msra.mxu0 0
    %1752 = vmatprep.mubr.bf16.mxu0 0
    %1753 = vmatmul.mubr.bf16.gmra.mxu0 %v1718
    %v1754 = vpop.f32.mrf.mxu0
    %v1755 = vadd.f32 %v1703, %v1754
    %v1756 = vpop.f32.mrf.mxu0
    %v1757 = vpop.f32.mrf.mxu0
    %v1758 = vadd.f32 %v1703, %v1757
    %v1759 = vpop.f32.mrf.mxu0
    %1760 = vdwg.mxu0
    %v1761 = vmax.f32 %v1755, 0.0
    %v1762 = vmax.f32 %v1758, 0.0
    %v1763 = vpack.c.bf16 %v1762, %v1761
    %v1764 = vld [vmem:[%s9] sm:$0xf]
    %v1765 = vld [vmem:[%s9 + $0x4] sm:$0xf]
    %v1766 = vld [vmem:[%s9 + $0x8] sm:$0xf]
    %v1767 = vld [vmem:[%s9 + $0xc] sm:$0xf]
    %v1768 = vld [vmem:[%s9 + $0x10] sm:$0xf]
    %v1769 = vld [vmem:[%s9 + $0x14] sm:$0xf]
    %v1770 = vld [vmem:[%s9 + $0x18] sm:$0xf]
    %v1771 = vld [vmem:[%s9 + $0x1c] sm:$0xf]
    %v1772 = vld [vmem:[%s9 + $0x20] sm:$0xf]
    %v1773 = vld [vmem:[%s9 + $0x24] sm:$0xf]
    %v1774 = vld [vmem:[%s9 + $0x28] sm:$0xf]
    %v1775 = vld [vmem:[%s9 + $0x2c] sm:$0xf]
    %v1776 = vld [vmem:[%s9 + $0x30] sm:$0xf]
    %v1777 = vld [vmem:[%s9 + $0x34] sm:$0xf]
    %v1778 = vld [vmem:[%s9 + $0x38] sm:$0xf]
    %v1779 = vld [vmem:[%s9 + $0x3c] sm:$0xf]
    %v1780 = vld [vmem:[%s10] sm:$0x1]
    %v1782 = vlaneseq
    %v1783 = vshrl.u32 %v1782, 7
    %v1784 = vsub.s32 0, %v1783
    %v1785 = vrot.slane %v1780, %v1784
    %v1803 = vunpack.c.l.b16 %v1764
    %v1804 = vunpack.c.l.b16 %v1765
    %v1805 = vunpack.c.l.b16 %v1766
    %v1806 = vunpack.c.l.b16 %v1767
    %v1807 = vunpack.c.l.b16 %v1768
    %v1808 = vunpack.c.l.b16 %v1769
    %v1809 = vunpack.c.l.b16 %v1770
    %v1810 = vunpack.c.l.b16 %v1771
    %v1811 = vunpack.c.l.b16 %v1772
    %v1812 = vunpack.c.l.b16 %v1773
    %v1813 = vunpack.c.l.b16 %v1774
    %v1814 = vunpack.c.l.b16 %v1775
    %v1815 = vunpack.c.l.b16 %v1776
    %v1816 = vunpack.c.l.b16 %v1777
    %v1817 = vunpack.c.l.b16 %v1778
    %v1818 = vunpack.c.l.b16 %v1779
    %v1819 = vpack.c.b16 %v1804, %v1803
    %v1820 = vpack.c.b16 %v1806, %v1805
    %v1821 = vpack.c.b16 %v1808, %v1807
    %v1822 = vpack.c.b16 %v1810, %v1809
    %v1823 = vpack.c.b16 %v1812, %v1811
    %v1824 = vpack.c.b16 %v1814, %v1813
    %v1825 = vpack.c.b16 %v1816, %v1815
    %v1826 = vpack.c.b16 %v1818, %v1817
    %1835 = vmatprep.subr.bf16.mxu0 0
    %1836 = vmatpush1.bf16.msra.mxu0 %v1826
    %1837 = vmatprep.subr.bf16.mxu0 0
    %1838 = vmatpush1.bf16.msra.mxu0 %v1825
    %1839 = vmatprep.subr.bf16.mxu0 0
    %1840 = vmatpush1.bf16.msra.mxu0 %v1824
    %1841 = vmatprep.subr.bf16.mxu0 0
    %1842 = vmatpush1.bf16.msra.mxu0 %v1823
    %1843 = vmatprep.subr.bf16.mxu0 0
    %1844 = vmatpush1.bf16.msra.mxu0 %v1822
    %1845 = vmatprep.subr.bf16.mxu0 0
    %1846 = vmatpush1.bf16.msra.mxu0 %v1821
    %1847 = vmatprep.subr.bf16.mxu0 0
    %1848 = vmatpush1.bf16.msra.mxu0 %v1820
    %1849 = vmatprep.subr.bf16.mxu0 0
    %1850 = vmatpush1.bf16.msra.mxu0 %v1819
    %1851 = vmatprep.subr.bf16.mxu0 0
    %1852 = vmatpush2.bf16.msra.mxu0 0
    %1853 = vmatprep.subr.bf16.mxu0 0
    %1854 = vmatpush2.bf16.msra.mxu0 0
    %1855 = vmatprep.subr.bf16.mxu0 0
    %1856 = vmatpush2.bf16.msra.mxu0 0
    %1857 = vmatprep.subr.bf16.mxu0 0
    %1858 = vmatpush2.bf16.msra.mxu0 0
    %1859 = vmatprep.subr.bf16.mxu0 0
    %1860 = vmatpush2.bf16.msra.mxu0 0
    %1861 = vmatprep.subr.bf16.mxu0 0
    %1862 = vmatpush2.bf16.msra.mxu0 0
    %1863 = vmatprep.subr.bf16.mxu0 0
    %1864 = vmatpush2.bf16.msra.mxu0 0
    %1865 = vmatprep.subr.bf16.mxu0 0
    %1866 = vmatpush2.bf16.msra.mxu0 0
    %1867 = vmatprep.mubr.bf16.mxu0 0
    %1868 = vmatmul.mubr.bf16.gmra.mxu0 %v1763
    %v1869 = vpop.f32.mrf.mxu0
    %v1870 = vadd.f32 %v1785, %v1869
    %v1871 = vpop.f32.mrf.mxu0
    %v1872 = vpop.f32.mrf.mxu0
    %v1873 = vadd.f32 %v1785, %v1872
    %v1874 = vpop.f32.mrf.mxu0
    %1875 = vdwg.mxu0
    %v1876 = vadd.f32 %v1870, %v1691
    %v1877 = vadd.f32 %v1873, %v1692
    %v1878 = vld [vmem:[%s11] sm:$0x1]
    %v1879 = vld [vmem:[%s12] sm:$0x1]
    %v1880 = vsel %vm98, %v1876, 0.0
    %1881 = vadd.xlane.f32.xlu0 %v1880
    %v1882 = vpop.xlane.xlu0 %1881
    %v1883 = vsel %vm98, %v1877, 0.0
    %1884 = vadd.xlane.f32.xlu0 %v1883
    %v1885 = vpop.xlane.xlu0 %1884
    %v1886 = vmul.f32 %v1882, %v1656
    %v1887 = vmul.f32 %v1885, %v1656
    %v1888 = vsub.f32 %v1876, %v1886
    %v1889 = vsub.f32 %v1877, %v1887
    %v1890 = vmul.f32 %v1888, %v1888
    %v1891 = vmul.f32 %v1889, %v1889
    %v1892 = vsel %vm98, %v1890, 0.0
    %1893 = vadd.xlane.f32.xlu0 %v1892
    %v1894 = vpop.xlane.xlu0 %1893
    %v1895 = vsel %vm98, %v1891, 0.0
    %1896 = vadd.xlane.f32.xlu0 %v1895
    %v1897 = vpop.xlane.xlu0 %1896
    %v1898 = vmul.f32 %v1894, %v1656
    %v1899 = vmul.f32 %v1897, %v1656
    %v1900 = vadd.f32 %v1898, 1e-05
    %v1901 = vadd.f32 %v1899, 1e-05
    %v1902 = vrsqrt.pop %v1900
    %v1903 = vrsqrt.pop %v1901
    %v1904 = vmul.f32 %v1888, %v1902
    %v1905 = vmul.f32 %v1889, %v1903
    %v1907 = vlaneseq
    %v1908 = vshrl.u32 %v1907, 7
    %v1909 = vsub.s32 0, %v1908
    %v1910 = vrot.slane %v1878, %v1909
    %v1912 = vmul.f32 %v1904, %v1910
    %v1913 = vmul.f32 %v1905, %v1910
    %v1915 = vlaneseq
    %v1916 = vshrl.u32 %v1915, 7
    %v1917 = vsub.s32 0, %v1916
    %v1918 = vrot.slane %v1879, %v1917
    %v1920 = vadd.f32 %v1912, %v1918
    %v1921 = vadd.f32 %v1913, %v1918
    %v1922 = vpack.c.bf16 %v1921, %v1920
    %s1923 = scalar_lea.vmem %s2, 48
    %v1924 = vld [vmem:[%s1923] sm:$0xff]
    %v1925 = vld [vmem:[%s1923 + $0x8] sm:$0xf]
    %v1926 = vld [vmem:[%s1923 + $0xc] sm:$0xff]
    %v1927 = vld [vmem:[%s1923 + $0x14] sm:$0xf]
    %v1928 = vld [vmem:[%s1923 + $0x18] sm:$0xff]
    %v1929 = vld [vmem:[%s1923 + $0x20] sm:$0xf]
    %v1930 = vld [vmem:[%s1923 + $0x24] sm:$0xff]
    %v1931 = vld [vmem:[%s1923 + $0x2c] sm:$0xf]
    %v1940 = vunpack.c.l.b16 %v1924
    %v1941 = vunpack.c.h.b16 %v1924
    %v1942 = vunpack.c.l.b16 %v1925
    %v1943 = vunpack.c.l.b16 %v1926
    %v1944 = vunpack.c.h.b16 %v1926
    %v1945 = vunpack.c.l.b16 %v1927
    %v1946 = vunpack.c.l.b16 %v1928
    %v1947 = vunpack.c.h.b16 %v1928
    %v1948 = vunpack.c.l.b16 %v1929
    %v1949 = vunpack.c.l.b16 %v1930
    %v1950 = vunpack.c.h.b16 %v1930
    %v1951 = vunpack.c.l.b16 %v1931
    %v1952 = vpack.c.b16 %v1943, %v1940
    %v1953 = vpack.c.b16 %v1944, %v1941
    %v1954 = vpack.c.b16 %v1945, %v1942
    %v1955 = vpack.c.b16 %v1949, %v1946
    %v1956 = vpack.c.b16 %v1950, %v1947
    %v1957 = vpack.c.b16 %v1951, %v1948
    %v1965 = vsel %vm98, %v1922, 0
    %1967 = vmatprep.subr.bf16.mxu0 0
    %1968 = vmatpush1.bf16.msra.mxu0 0
    %1969 = vmatprep.subr.bf16.mxu0 0
    %1970 = vmatpush1.bf16.msra.mxu0 0
    %1971 = vmatprep.subr.bf16.mxu0 0
    %1972 = vmatpush1.bf16.msra.mxu0 0
    %1973 = vmatprep.subr.bf16.mxu0 0
    %1974 = vmatpush1.bf16.msra.mxu0 0
    %1975 = vmatprep.subr.bf16.mxu0 0
    %1976 = vmatpush1.bf16.msra.mxu0 0
    %1977 = vmatprep.subr.bf16.mxu0 0
    %1978 = vmatpush1.bf16.msra.mxu0 0
    %1979 = vmatprep.subr.bf16.mxu0 %v1956
    %1980 = vmatpush1.bf16.msra.mxu0 %v1955
    %1981 = vmatprep.subr.bf16.mxu0 %v1953
    %1982 = vmatpush1.bf16.msra.mxu0 %v1952
    %1983 = vmatprep.subr.bf16.mxu0 0
    %1984 = vmatpush2.bf16.msra.mxu0 0
    %1985 = vmatprep.subr.bf16.mxu0 0
    %1986 = vmatpush2.bf16.msra.mxu0 0
    %1987 = vmatprep.subr.bf16.mxu0 0
    %1988 = vmatpush2.bf16.msra.mxu0 0
    %1989 = vmatprep.subr.bf16.mxu0 0
    %1990 = vmatpush2.bf16.msra.mxu0 0
    %1991 = vmatprep.subr.bf16.mxu0 0
    %1992 = vmatpush2.bf16.msra.mxu0 0
    %1993 = vmatprep.subr.bf16.mxu0 0
    %1994 = vmatpush2.bf16.msra.mxu0 0
    %1995 = vmatprep.subr.bf16.mxu0 0
    %1996 = vmatpush2.bf16.msra.mxu0 0
    %1997 = vmatprep.subr.bf16.mxu0 0
    %1998 = vmatpush2.bf16.msra.mxu0 0
    %1999 = vmatprep.mubr.bf16.mxu0 0
    %2000 = vmatmul.mubr.bf16.gmra.mxu0 %v1965
    %v2001 = vpop.f32.mrf.mxu0
    %v2002 = vadd.f32 0.0, %v2001
    %v2003 = vpop.f32.mrf.mxu0
    %v2004 = vadd.f32 0.0, %v2003
    %v2005 = vpop.f32.mrf.mxu0
    %v2006 = vadd.f32 0.0, %v2005
    %v2007 = vpop.f32.mrf.mxu0
    %v2008 = vadd.f32 0.0, %v2007
    %2009 = vdwg.mxu0
    %2010 = vmatprep.subr.bf16.mxu0 0
    %2011 = vmatpush1.bf16.msra.mxu0 0
    %2012 = vmatprep.subr.bf16.mxu0 0
    %2013 = vmatpush1.bf16.msra.mxu0 0
    %2014 = vmatprep.subr.bf16.mxu0 0
    %2015 = vmatpush1.bf16.msra.mxu0 0
    %2016 = vmatprep.subr.bf16.mxu0 0
    %2017 = vmatpush1.bf16.msra.mxu0 0
    %2018 = vmatprep.subr.bf16.mxu0 0
    %2019 = vmatpush1.bf16.msra.mxu0 0
    %2020 = vmatprep.subr.bf16.mxu0 0
    %2021 = vmatpush1.bf16.msra.mxu0 0
    %2022 = vmatprep.subr.bf16.mxu0 0
    %2023 = vmatpush1.bf16.msra.mxu0 %v1957
    %2024 = vmatprep.subr.bf16.mxu0 0
    %2025 = vmatpush1.bf16.msra.mxu0 %v1954
    %2026 = vmatprep.subr.bf16.mxu0 0
    %2027 = vmatpush2.bf16.msra.mxu0 0
    %2028 = vmatprep.subr.bf16.mxu0 0
    %2029 = vmatpush2.bf16.msra.mxu0 0
    %2030 = vmatprep.subr.bf16.mxu0 0
    %2031 = vmatpush2.bf16.msra.mxu0 0
    %2032 = vmatprep.subr.bf16.mxu0 0
    %2033 = vmatpush2.bf16.msra.mxu0 0
    %2034 = vmatprep.subr.bf16.mxu0 0
    %2035 = vmatpush2.bf16.msra.mxu0 0
    %2036 = vmatprep.subr.bf16.mxu0 0
    %2037 = vmatpush2.bf16.msra.mxu0 0
    %2038 = vmatprep.subr.bf16.mxu0 0
    %2039 = vmatpush2.bf16.msra.mxu0 0
    %2040 = vmatprep.subr.bf16.mxu0 0
    %2041 = vmatpush2.bf16.msra.mxu0 0
    %2042 = vmatprep.mubr.bf16.mxu0 0
    %2043 = vmatmul.mubr.bf16.gmra.mxu0 %v1965
    %v2044 = vpop.f32.mrf.mxu0
    %v2045 = vadd.f32 0.0, %v2044
    %v2046 = vpop.f32.mrf.mxu0
    %v2047 = vpop.f32.mrf.mxu0
    %v2048 = vadd.f32 0.0, %v2047
    %v2049 = vpop.f32.mrf.mxu0
    %2050 = vdwg.mxu0
    %v2051 = vmul.f32 %v2002, 0.17677669
    %v2052 = vmul.f32 %v2006, 0.17677669
    %2054 = vrot.lane.b32.xlu0 %v2051, 96
    %v2055 = vpop.permute.xlu0 %2054
    %2056 = vrot.lane.b32.xlu0 %v2051, 64
    %v2057 = vpop.permute.xlu0 %2056
    %2058 = vrot.lane.b32.xlu0 %v2051, 32
    %v2059 = vpop.permute.xlu0 %2058
    %2061 = vrot.lane.b32.xlu0 %v2052, 96
    %v2062 = vpop.permute.xlu0 %2061
    %2063 = vrot.lane.b32.xlu0 %v2052, 64
    %v2064 = vpop.permute.xlu0 %2063
    %2065 = vrot.lane.b32.xlu0 %v2052, 32
    %v2066 = vpop.permute.xlu0 %2065
    %2068 = vrot.lane.b32.xlu0 %v2004, 96
    %v2069 = vpop.permute.xlu0 %2068
    %2070 = vrot.lane.b32.xlu0 %v2004, 64
    %v2071 = vpop.permute.xlu0 %2070
    %2072 = vrot.lane.b32.xlu0 %v2004, 32
    %v2073 = vpop.permute.xlu0 %2072
    %2075 = vrot.lane.b32.xlu0 %v2008, 96
    %v2076 = vpop.permute.xlu0 %2075
    %2077 = vrot.lane.b32.xlu0 %v2008, 64
    %v2078 = vpop.permute.xlu0 %2077
    %2079 = vrot.lane.b32.xlu0 %v2008, 32
    %v2080 = vpop.permute.xlu0 %2079
    %2082 = vrot.lane.b32.xlu0 %v2045, 96
    %v2083 = vpop.permute.xlu0 %2082
    %2085 = vrot.lane.b32.xlu0 %v2045, 64
    %v2086 = vpop.permute.xlu0 %2085
    %2088 = vrot.lane.b32.xlu0 %v2045, 32
    %v2089 = vpop.permute.xlu0 %2088
    %2092 = vrot.lane.b32.xlu0 %v2048, 96
    %v2093 = vpop.permute.xlu0 %2092
    %2095 = vrot.lane.b32.xlu0 %v2048, 64
    %v2096 = vpop.permute.xlu0 %2095
    %2098 = vrot.lane.b32.xlu0 %v2048, 32
    %v2099 = vpop.permute.xlu0 %2098
    %v2101 = vsel %vm98, %v2051, 0
    %v2103 = vsel %vm98, %v2004, 0
    %2105 = vmatprep.subr.mxu0 0.0
    %2106 = vmatpush1.xpose.msra.mxu0 0.0
    %2107 = vmatprep.subr.mxu0 0.0
    %2108 = vmatpush1.xpose.msra.mxu0 0.0
    %2109 = vmatprep.subr.mxu0 0.0
    %2110 = vmatpush1.xpose.msra.mxu0 0.0
    %2111 = vmatprep.subr.mxu0 0.0
    %2112 = vmatpush1.xpose.msra.mxu0 0.0
    %2113 = vmatprep.subr.mxu0 0.0
    %2114 = vmatpush1.xpose.msra.mxu0 0.0
    %2115 = vmatprep.subr.mxu0 0.0
    %2116 = vmatpush1.xpose.msra.mxu0 0.0
    %2117 = vmatprep.subr.mxu0 0.0
    %2118 = vmatpush1.xpose.msra.mxu0 0.0
    %2119 = vmatprep.subr.mxu0 0.0
    %2120 = vmatpush1.xpose.msra.mxu0 0.0
    %2121 = vmatprep.subr.mxu0 0.0
    %2122 = vmatpush1.xpose.msra.mxu0 0.0
    %2123 = vmatprep.subr.mxu0 0.0
    %2124 = vmatpush1.xpose.msra.mxu0 0.0
    %2125 = vmatprep.subr.mxu0 0.0
    %2126 = vmatpush1.xpose.msra.mxu0 0.0
    %2127 = vmatprep.subr.mxu0 0.0
    %2128 = vmatpush1.xpose.msra.mxu0 0.0
    %2129 = vmatprep.subr.mxu0 0.0
    %2130 = vmatpush1.xpose.msra.mxu0 0.0
    %2131 = vmatprep.subr.mxu0 0.0
    %2132 = vmatpush1.xpose.msra.mxu0 0.0
    %2133 = vmatprep.subr.mxu0 0.0
    %2134 = vmatpush1.xpose.msra.mxu0 0.0
    %2135 = vmatprep.subr.mxu0 0.0
    %2136 = vmatpush1.xpose.msra.mxu0 %v2103
    %2137 = vmatprep.subr.mxu0 0.0
    %2138 = vmatpush2.xpose.msra.mxu0 0.0
    %2139 = vmatprep.subr.mxu0 0.0
    %2140 = vmatpush2.xpose.msra.mxu0 0.0
    %2141 = vmatprep.subr.mxu0 0.0
    %2142 = vmatpush2.xpose.msra.mxu0 0.0
    %2143 = vmatprep.subr.mxu0 0.0
    %2144 = vmatpush2.xpose.msra.mxu0 0.0
    %2145 = vmatprep.subr.mxu0 0.0
    %2146 = vmatpush2.xpose.msra.mxu0 0.0
    %2147 = vmatprep.subr.mxu0 0.0
    %2148 = vmatpush2.xpose.msra.mxu0 0.0
    %2149 = vmatprep.subr.mxu0 0.0
    %2150 = vmatpush2.xpose.msra.mxu0 0.0
    %2151 = vmatprep.subr.mxu0 0.0
    %2152 = vmatpush2.xpose.msra.mxu0 0.0
    %2153 = vmatprep.subr.mxu0 0.0
    %2154 = vmatpush2.xpose.msra.mxu0 0.0
    %2155 = vmatprep.subr.mxu0 0.0
    %2156 = vmatpush2.xpose.msra.mxu0 0.0
    %2157 = vmatprep.subr.mxu0 0.0
    %2158 = vmatpush2.xpose.msra.mxu0 0.0
    %2159 = vmatprep.subr.mxu0 0.0
    %2160 = vmatpush2.xpose.msra.mxu0 0.0
    %2161 = vmatprep.subr.mxu0 0.0
    %2162 = vmatpush2.xpose.msra.mxu0 0.0
    %2163 = vmatprep.subr.mxu0 0.0
    %2164 = vmatpush2.xpose.msra.mxu0 0.0
    %2165 = vmatprep.subr.mxu0 0.0
    %2166 = vmatpush2.xpose.msra.mxu0 0.0
    %2167 = vmatprep.subr.mxu0 0.0
    %2168 = vmatpush2.xpose.msra.mxu0 0.0
    %2169 = vmatprep.mubr.f32.mxu0 0.0
    %2170 = vmatmul.mubr.f32.gmra.mxu0 %v2101
    %v2171 = vpop.f32.mrf.mxu0
    %v2172 = vadd.f32 0.0, %v2171
    %v2173 = vpop.f32.mrf.mxu0
    %2174 = vdwg.mxu0
    %v2175 = vsel %vm98, %v2055, 0
    %v2177 = vsel %vm98, %v2069, 0
    %2179 = vmatprep.subr.mxu0 0.0
    %2180 = vmatpush1.xpose.msra.mxu0 0.0
    %2181 = vmatprep.subr.mxu0 0.0
    %2182 = vmatpush1.xpose.msra.mxu0 0.0
    %2183 = vmatprep.subr.mxu0 0.0
    %2184 = vmatpush1.xpose.msra.mxu0 0.0
    %2185 = vmatprep.subr.mxu0 0.0
    %2186 = vmatpush1.xpose.msra.mxu0 0.0
    %2187 = vmatprep.subr.mxu0 0.0
    %2188 = vmatpush1.xpose.msra.mxu0 0.0
    %2189 = vmatprep.subr.mxu0 0.0
    %2190 = vmatpush1.xpose.msra.mxu0 0.0
    %2191 = vmatprep.subr.mxu0 0.0
    %2192 = vmatpush1.xpose.msra.mxu0 0.0
    %2193 = vmatprep.subr.mxu0 0.0
    %2194 = vmatpush1.xpose.msra.mxu0 0.0
    %2195 = vmatprep.subr.mxu0 0.0
    %2196 = vmatpush1.xpose.msra.mxu0 0.0
    %2197 = vmatprep.subr.mxu0 0.0
    %2198 = vmatpush1.xpose.msra.mxu0 0.0
    %2199 = vmatprep.subr.mxu0 0.0
    %2200 = vmatpush1.xpose.msra.mxu0 0.0
    %2201 = vmatprep.subr.mxu0 0.0
    %2202 = vmatpush1.xpose.msra.mxu0 0.0
    %2203 = vmatprep.subr.mxu0 0.0
    %2204 = vmatpush1.xpose.msra.mxu0 0.0
    %2205 = vmatprep.subr.mxu0 0.0
    %2206 = vmatpush1.xpose.msra.mxu0 0.0
    %2207 = vmatprep.subr.mxu0 0.0
    %2208 = vmatpush1.xpose.msra.mxu0 0.0
    %2209 = vmatprep.subr.mxu0 0.0
    %2210 = vmatpush1.xpose.msra.mxu0 %v2177
    %2211 = vmatprep.subr.mxu0 0.0
    %2212 = vmatpush2.xpose.msra.mxu0 0.0
    %2213 = vmatprep.subr.mxu0 0.0
    %2214 = vmatpush2.xpose.msra.mxu0 0.0
    %2215 = vmatprep.subr.mxu0 0.0
    %2216 = vmatpush2.xpose.msra.mxu0 0.0
    %2217 = vmatprep.subr.mxu0 0.0
    %2218 = vmatpush2.xpose.msra.mxu0 0.0
    %2219 = vmatprep.subr.mxu0 0.0
    %2220 = vmatpush2.xpose.msra.mxu0 0.0
    %2221 = vmatprep.subr.mxu0 0.0
    %2222 = vmatpush2.xpose.msra.mxu0 0.0
    %2223 = vmatprep.subr.mxu0 0.0
    %2224 = vmatpush2.xpose.msra.mxu0 0.0
    %2225 = vmatprep.subr.mxu0 0.0
    %2226 = vmatpush2.xpose.msra.mxu0 0.0
    %2227 = vmatprep.subr.mxu0 0.0
    %2228 = vmatpush2.xpose.msra.mxu0 0.0
    %2229 = vmatprep.subr.mxu0 0.0
    %2230 = vmatpush2.xpose.msra.mxu0 0.0
    %2231 = vmatprep.subr.mxu0 0.0
    %2232 = vmatpush2.xpose.msra.mxu0 0.0
    %2233 = vmatprep.subr.mxu0 0.0
    %2234 = vmatpush2.xpose.msra.mxu0 0.0
    %2235 = vmatprep.subr.mxu0 0.0
    %2236 = vmatpush2.xpose.msra.mxu0 0.0
    %2237 = vmatprep.subr.mxu0 0.0
    %2238 = vmatpush2.xpose.msra.mxu0 0.0
    %2239 = vmatprep.subr.mxu0 0.0
    %2240 = vmatpush2.xpose.msra.mxu0 0.0
    %2241 = vmatprep.subr.mxu0 0.0
    %2242 = vmatpush2.xpose.msra.mxu0 0.0
    %2243 = vmatprep.mubr.f32.mxu0 0.0
    %2244 = vmatmul.mubr.f32.gmra.mxu0 %v2175
    %v2245 = vpop.f32.mrf.mxu0
    %v2246 = vadd.f32 0.0, %v2245
    %v2247 = vpop.f32.mrf.mxu0
    %2248 = vdwg.mxu0
    %v2249 = vsel %vm98, %v2057, 0
    %v2251 = vsel %vm98, %v2071, 0
    %2253 = vmatprep.subr.mxu0 0.0
    %2254 = vmatpush1.xpose.msra.mxu0 0.0
    %2255 = vmatprep.subr.mxu0 0.0
    %2256 = vmatpush1.xpose.msra.mxu0 0.0
    %2257 = vmatprep.subr.mxu0 0.0
    %2258 = vmatpush1.xpose.msra.mxu0 0.0
    %2259 = vmatprep.subr.mxu0 0.0
    %2260 = vmatpush1.xpose.msra.mxu0 0.0
    %2261 = vmatprep.subr.mxu0 0.0
    %2262 = vmatpush1.xpose.msra.mxu0 0.0
    %2263 = vmatprep.subr.mxu0 0.0
    %2264 = vmatpush1.xpose.msra.mxu0 0.0
    %2265 = vmatprep.subr.mxu0 0.0
    %2266 = vmatpush1.xpose.msra.mxu0 0.0
    %2267 = vmatprep.subr.mxu0 0.0
    %2268 = vmatpush1.xpose.msra.mxu0 0.0
    %2269 = vmatprep.subr.mxu0 0.0
    %2270 = vmatpush1.xpose.msra.mxu0 0.0
    %2271 = vmatprep.subr.mxu0 0.0
    %2272 = vmatpush1.xpose.msra.mxu0 0.0
    %2273 = vmatprep.subr.mxu0 0.0
    %2274 = vmatpush1.xpose.msra.mxu0 0.0
    %2275 = vmatprep.subr.mxu0 0.0
    %2276 = vmatpush1.xpose.msra.mxu0 0.0
    %2277 = vmatprep.subr.mxu0 0.0
    %2278 = vmatpush1.xpose.msra.mxu0 0.0
    %2279 = vmatprep.subr.mxu0 0.0
    %2280 = vmatpush1.xpose.msra.mxu0 0.0
    %2281 = vmatprep.subr.mxu0 0.0
    %2282 = vmatpush1.xpose.msra.mxu0 0.0
    %2283 = vmatprep.subr.mxu0 0.0
    %2284 = vmatpush1.xpose.msra.mxu0 %v2251
    %2285 = vmatprep.subr.mxu0 0.0
    %2286 = vmatpush2.xpose.msra.mxu0 0.0
    %2287 = vmatprep.subr.mxu0 0.0
    %2288 = vmatpush2.xpose.msra.mxu0 0.0
    %2289 = vmatprep.subr.mxu0 0.0
    %2290 = vmatpush2.xpose.msra.mxu0 0.0
    %2291 = vmatprep.subr.mxu0 0.0
    %2292 = vmatpush2.xpose.msra.mxu0 0.0
    %2293 = vmatprep.subr.mxu0 0.0
    %2294 = vmatpush2.xpose.msra.mxu0 0.0
    %2295 = vmatprep.subr.mxu0 0.0
    %2296 = vmatpush2.xpose.msra.mxu0 0.0
    %2297 = vmatprep.subr.mxu0 0.0
    %2298 = vmatpush2.xpose.msra.mxu0 0.0
    %2299 = vmatprep.subr.mxu0 0.0
    %2300 = vmatpush2.xpose.msra.mxu0 0.0
    %2301 = vmatprep.subr.mxu0 0.0
    %2302 = vmatpush2.xpose.msra.mxu0 0.0
    %2303 = vmatprep.subr.mxu0 0.0
    %2304 = vmatpush2.xpose.msra.mxu0 0.0
    %2305 = vmatprep.subr.mxu0 0.0
    %2306 = vmatpush2.xpose.msra.mxu0 0.0
    %2307 = vmatprep.subr.mxu0 0.0
    %2308 = vmatpush2.xpose.msra.mxu0 0.0
    %2309 = vmatprep.subr.mxu0 0.0
    %2310 = vmatpush2.xpose.msra.mxu0 0.0
    %2311 = vmatprep.subr.mxu0 0.0
    %2312 = vmatpush2.xpose.msra.mxu0 0.0
    %2313 = vmatprep.subr.mxu0 0.0
    %2314 = vmatpush2.xpose.msra.mxu0 0.0
    %2315 = vmatprep.subr.mxu0 0.0
    %2316 = vmatpush2.xpose.msra.mxu0 0.0
    %2317 = vmatprep.mubr.f32.mxu0 0.0
    %2318 = vmatmul.mubr.f32.gmra.mxu0 %v2249
    %v2319 = vpop.f32.mrf.mxu0
    %v2320 = vadd.f32 0.0, %v2319
    %v2321 = vpop.f32.mrf.mxu0
    %2322 = vdwg.mxu0
    %v2323 = vsel %vm98, %v2059, 0
    %v2325 = vsel %vm98, %v2073, 0
    %2327 = vmatprep.subr.mxu0 0.0
    %2328 = vmatpush1.xpose.msra.mxu0 0.0
    %2329 = vmatprep.subr.mxu0 0.0
    %2330 = vmatpush1.xpose.msra.mxu0 0.0
    %2331 = vmatprep.subr.mxu0 0.0
    %2332 = vmatpush1.xpose.msra.mxu0 0.0
    %2333 = vmatprep.subr.mxu0 0.0
    %2334 = vmatpush1.xpose.msra.mxu0 0.0
    %2335 = vmatprep.subr.mxu0 0.0
    %2336 = vmatpush1.xpose.msra.mxu0 0.0
    %2337 = vmatprep.subr.mxu0 0.0
    %2338 = vmatpush1.xpose.msra.mxu0 0.0
    %2339 = vmatprep.subr.mxu0 0.0
    %2340 = vmatpush1.xpose.msra.mxu0 0.0
    %2341 = vmatprep.subr.mxu0 0.0
    %2342 = vmatpush1.xpose.msra.mxu0 0.0
    %2343 = vmatprep.subr.mxu0 0.0
    %2344 = vmatpush1.xpose.msra.mxu0 0.0
    %2345 = vmatprep.subr.mxu0 0.0
    %2346 = vmatpush1.xpose.msra.mxu0 0.0
    %2347 = vmatprep.subr.mxu0 0.0
    %2348 = vmatpush1.xpose.msra.mxu0 0.0
    %2349 = vmatprep.subr.mxu0 0.0
    %2350 = vmatpush1.xpose.msra.mxu0 0.0
    %2351 = vmatprep.subr.mxu0 0.0
    %2352 = vmatpush1.xpose.msra.mxu0 0.0
    %2353 = vmatprep.subr.mxu0 0.0
    %2354 = vmatpush1.xpose.msra.mxu0 0.0
    %2355 = vmatprep.subr.mxu0 0.0
    %2356 = vmatpush1.xpose.msra.mxu0 0.0
    %2357 = vmatprep.subr.mxu0 0.0
    %2358 = vmatpush1.xpose.msra.mxu0 %v2325
    %2359 = vmatprep.subr.mxu0 0.0
    %2360 = vmatpush2.xpose.msra.mxu0 0.0
    %2361 = vmatprep.subr.mxu0 0.0
    %2362 = vmatpush2.xpose.msra.mxu0 0.0
    %2363 = vmatprep.subr.mxu0 0.0
    %2364 = vmatpush2.xpose.msra.mxu0 0.0
    %2365 = vmatprep.subr.mxu0 0.0
    %2366 = vmatpush2.xpose.msra.mxu0 0.0
    %2367 = vmatprep.subr.mxu0 0.0
    %2368 = vmatpush2.xpose.msra.mxu0 0.0
    %2369 = vmatprep.subr.mxu0 0.0
    %2370 = vmatpush2.xpose.msra.mxu0 0.0
    %2371 = vmatprep.subr.mxu0 0.0
    %2372 = vmatpush2.xpose.msra.mxu0 0.0
    %2373 = vmatprep.subr.mxu0 0.0
    %2374 = vmatpush2.xpose.msra.mxu0 0.0
    %2375 = vmatprep.subr.mxu0 0.0
    %2376 = vmatpush2.xpose.msra.mxu0 0.0
    %2377 = vmatprep.subr.mxu0 0.0
    %2378 = vmatpush2.xpose.msra.mxu0 0.0
    %2379 = vmatprep.subr.mxu0 0.0
    %2380 = vmatpush2.xpose.msra.mxu0 0.0
    %2381 = vmatprep.subr.mxu0 0.0
    %2382 = vmatpush2.xpose.msra.mxu0 0.0
    %2383 = vmatprep.subr.mxu0 0.0
    %2384 = vmatpush2.xpose.msra.mxu0 0.0
    %2385 = vmatprep.subr.mxu0 0.0
    %2386 = vmatpush2.xpose.msra.mxu0 0.0
    %2387 = vmatprep.subr.mxu0 0.0
    %2388 = vmatpush2.xpose.msra.mxu0 0.0
    %2389 = vmatprep.subr.mxu0 0.0
    %2390 = vmatpush2.xpose.msra.mxu0 0.0
    %2391 = vmatprep.mubr.f32.mxu0 0.0
    %2392 = vmatmul.mubr.f32.gmra.mxu0 %v2323
    %v2393 = vpop.f32.mrf.mxu0
    %v2394 = vadd.f32 0.0, %v2393
    %v2395 = vpop.f32.mrf.mxu0
    %2396 = vdwg.mxu0
    %v2397 = vsel %vm98, %v2052, 0
    %v2399 = vsel %vm98, %v2008, 0
    %2401 = vmatprep.subr.mxu0 0.0
    %2402 = vmatpush1.xpose.msra.mxu0 0.0
    %2403 = vmatprep.subr.mxu0 0.0
    %2404 = vmatpush1.xpose.msra.mxu0 0.0
    %2405 = vmatprep.subr.mxu0 0.0
    %2406 = vmatpush1.xpose.msra.mxu0 0.0
    %2407 = vmatprep.subr.mxu0 0.0
    %2408 = vmatpush1.xpose.msra.mxu0 0.0
    %2409 = vmatprep.subr.mxu0 0.0
    %2410 = vmatpush1.xpose.msra.mxu0 0.0
    %2411 = vmatprep.subr.mxu0 0.0
    %2412 = vmatpush1.xpose.msra.mxu0 0.0
    %2413 = vmatprep.subr.mxu0 0.0
    %2414 = vmatpush1.xpose.msra.mxu0 0.0
    %2415 = vmatprep.subr.mxu0 0.0
    %2416 = vmatpush1.xpose.msra.mxu0 0.0
    %2417 = vmatprep.subr.mxu0 0.0
    %2418 = vmatpush1.xpose.msra.mxu0 0.0
    %2419 = vmatprep.subr.mxu0 0.0
    %2420 = vmatpush1.xpose.msra.mxu0 0.0
    %2421 = vmatprep.subr.mxu0 0.0
    %2422 = vmatpush1.xpose.msra.mxu0 0.0
    %2423 = vmatprep.subr.mxu0 0.0
    %2424 = vmatpush1.xpose.msra.mxu0 0.0
    %2425 = vmatprep.subr.mxu0 0.0
    %2426 = vmatpush1.xpose.msra.mxu0 0.0
    %2427 = vmatprep.subr.mxu0 0.0
    %2428 = vmatpush1.xpose.msra.mxu0 0.0
    %2429 = vmatprep.subr.mxu0 0.0
    %2430 = vmatpush1.xpose.msra.mxu0 0.0
    %2431 = vmatprep.subr.mxu0 0.0
    %2432 = vmatpush1.xpose.msra.mxu0 %v2399
    %2433 = vmatprep.subr.mxu0 0.0
    %2434 = vmatpush2.xpose.msra.mxu0 0.0
    %2435 = vmatprep.subr.mxu0 0.0
    %2436 = vmatpush2.xpose.msra.mxu0 0.0
    %2437 = vmatprep.subr.mxu0 0.0
    %2438 = vmatpush2.xpose.msra.mxu0 0.0
    %2439 = vmatprep.subr.mxu0 0.0
    %2440 = vmatpush2.xpose.msra.mxu0 0.0
    %2441 = vmatprep.subr.mxu0 0.0
    %2442 = vmatpush2.xpose.msra.mxu0 0.0
    %2443 = vmatprep.subr.mxu0 0.0
    %2444 = vmatpush2.xpose.msra.mxu0 0.0
    %2445 = vmatprep.subr.mxu0 0.0
    %2446 = vmatpush2.xpose.msra.mxu0 0.0
    %2447 = vmatprep.subr.mxu0 0.0
    %2448 = vmatpush2.xpose.msra.mxu0 0.0
    %2449 = vmatprep.subr.mxu0 0.0
    %2450 = vmatpush2.xpose.msra.mxu0 0.0
    %2451 = vmatprep.subr.mxu0 0.0
    %2452 = vmatpush2.xpose.msra.mxu0 0.0
    %2453 = vmatprep.subr.mxu0 0.0
    %2454 = vmatpush2.xpose.msra.mxu0 0.0
    %2455 = vmatprep.subr.mxu0 0.0
    %2456 = vmatpush2.xpose.msra.mxu0 0.0
    %2457 = vmatprep.subr.mxu0 0.0
    %2458 = vmatpush2.xpose.msra.mxu0 0.0
    %2459 = vmatprep.subr.mxu0 0.0
    %2460 = vmatpush2.xpose.msra.mxu0 0.0
    %2461 = vmatprep.subr.mxu0 0.0
    %2462 = vmatpush2.xpose.msra.mxu0 0.0
    %2463 = vmatprep.subr.mxu0 0.0
    %2464 = vmatpush2.xpose.msra.mxu0 0.0
    %2465 = vmatprep.mubr.f32.mxu0 0.0
    %2466 = vmatmul.mubr.f32.gmra.mxu0 %v2397
    %v2467 = vpop.f32.mrf.mxu0
    %v2468 = vadd.f32 0.0, %v2467
    %v2469 = vpop.f32.mrf.mxu0
    %2470 = vdwg.mxu0
    %v2471 = vsel %vm98, %v2062, 0
    %v2473 = vsel %vm98, %v2076, 0
    %2475 = vmatprep.subr.mxu0 0.0
    %2476 = vmatpush1.xpose.msra.mxu0 0.0
    %2477 = vmatprep.subr.mxu0 0.0
    %2478 = vmatpush1.xpose.msra.mxu0 0.0
    %2479 = vmatprep.subr.mxu0 0.0
    %2480 = vmatpush1.xpose.msra.mxu0 0.0
    %2481 = vmatprep.subr.mxu0 0.0
    %2482 = vmatpush1.xpose.msra.mxu0 0.0
    %2483 = vmatprep.subr.mxu0 0.0
    %2484 = vmatpush1.xpose.msra.mxu0 0.0
    %2485 = vmatprep.subr.mxu0 0.0
    %2486 = vmatpush1.xpose.msra.mxu0 0.0
    %2487 = vmatprep.subr.mxu0 0.0
    %2488 = vmatpush1.xpose.msra.mxu0 0.0
    %2489 = vmatprep.subr.mxu0 0.0
    %2490 = vmatpush1.xpose.msra.mxu0 0.0
    %2491 = vmatprep.subr.mxu0 0.0
    %2492 = vmatpush1.xpose.msra.mxu0 0.0
    %2493 = vmatprep.subr.mxu0 0.0
    %2494 = vmatpush1.xpose.msra.mxu0 0.0
    %2495 = vmatprep.subr.mxu0 0.0
    %2496 = vmatpush1.xpose.msra.mxu0 0.0
    %2497 = vmatprep.subr.mxu0 0.0
    %2498 = vmatpush1.xpose.msra.mxu0 0.0
    %2499 = vmatprep.subr.mxu0 0.0
    %2500 = vmatpush1.xpose.msra.mxu0 0.0
    %2501 = vmatprep.subr.mxu0 0.0
    %2502 = vmatpush1.xpose.msra.mxu0 0.0
    %2503 = vmatprep.subr.mxu0 0.0
    %2504 = vmatpush1.xpose.msra.mxu0 0.0
    %2505 = vmatprep.subr.mxu0 0.0
    %2506 = vmatpush1.xpose.msra.mxu0 %v2473
    %2507 = vmatprep.subr.mxu0 0.0
    %2508 = vmatpush2.xpose.msra.mxu0 0.0
    %2509 = vmatprep.subr.mxu0 0.0
    %2510 = vmatpush2.xpose.msra.mxu0 0.0
    %2511 = vmatprep.subr.mxu0 0.0
    %2512 = vmatpush2.xpose.msra.mxu0 0.0
    %2513 = vmatprep.subr.mxu0 0.0
    %2514 = vmatpush2.xpose.msra.mxu0 0.0
    %2515 = vmatprep.subr.mxu0 0.0
    %2516 = vmatpush2.xpose.msra.mxu0 0.0
    %2517 = vmatprep.subr.mxu0 0.0
    %2518 = vmatpush2.xpose.msra.mxu0 0.0
    %2519 = vmatprep.subr.mxu0 0.0
    %2520 = vmatpush2.xpose.msra.mxu0 0.0
    %2521 = vmatprep.subr.mxu0 0.0
    %2522 = vmatpush2.xpose.msra.mxu0 0.0
    %2523 = vmatprep.subr.mxu0 0.0
    %2524 = vmatpush2.xpose.msra.mxu0 0.0
    %2525 = vmatprep.subr.mxu0 0.0
    %2526 = vmatpush2.xpose.msra.mxu0 0.0
    %2527 = vmatprep.subr.mxu0 0.0
    %2528 = vmatpush2.xpose.msra.mxu0 0.0
    %2529 = vmatprep.subr.mxu0 0.0
    %2530 = vmatpush2.xpose.msra.mxu0 0.0
    %2531 = vmatprep.subr.mxu0 0.0
    %2532 = vmatpush2.xpose.msra.mxu0 0.0
    %2533 = vmatprep.subr.mxu0 0.0
    %2534 = vmatpush2.xpose.msra.mxu0 0.0
    %2535 = vmatprep.subr.mxu0 0.0
    %2536 = vmatpush2.xpose.msra.mxu0 0.0
    %2537 = vmatprep.subr.mxu0 0.0
    %2538 = vmatpush2.xpose.msra.mxu0 0.0
    %2539 = vmatprep.mubr.f32.mxu0 0.0
    %2540 = vmatmul.mubr.f32.gmra.mxu0 %v2471
    %v2541 = vpop.f32.mrf.mxu0
    %v2542 = vadd.f32 0.0, %v2541
    %v2543 = vpop.f32.mrf.mxu0
    %2544 = vdwg.mxu0
    %v2545 = vsel %vm98, %v2064, 0
    %v2547 = vsel %vm98, %v2078, 0
    %2549 = vmatprep.subr.mxu0 0.0
    %2550 = vmatpush1.xpose.msra.mxu0 0.0
    %2551 = vmatprep.subr.mxu0 0.0
    %2552 = vmatpush1.xpose.msra.mxu0 0.0
    %2553 = vmatprep.subr.mxu0 0.0
    %2554 = vmatpush1.xpose.msra.mxu0 0.0
    %2555 = vmatprep.subr.mxu0 0.0
    %2556 = vmatpush1.xpose.msra.mxu0 0.0
    %2557 = vmatprep.subr.mxu0 0.0
    %2558 = vmatpush1.xpose.msra.mxu0 0.0
    %2559 = vmatprep.subr.mxu0 0.0
    %2560 = vmatpush1.xpose.msra.mxu0 0.0
    %2561 = vmatprep.subr.mxu0 0.0
    %2562 = vmatpush1.xpose.msra.mxu0 0.0
    %2563 = vmatprep.subr.mxu0 0.0
    %2564 = vmatpush1.xpose.msra.mxu0 0.0
    %2565 = vmatprep.subr.mxu0 0.0
    %2566 = vmatpush1.xpose.msra.mxu0 0.0
    %2567 = vmatprep.subr.mxu0 0.0
    %2568 = vmatpush1.xpose.msra.mxu0 0.0
    %2569 = vmatprep.subr.mxu0 0.0
    %2570 = vmatpush1.xpose.msra.mxu0 0.0
    %2571 = vmatprep.subr.mxu0 0.0
    %2572 = vmatpush1.xpose.msra.mxu0 0.0
    %2573 = vmatprep.subr.mxu0 0.0
    %2574 = vmatpush1.xpose.msra.mxu0 0.0
    %2575 = vmatprep.subr.mxu0 0.0
    %2576 = vmatpush1.xpose.msra.mxu0 0.0
    %2577 = vmatprep.subr.mxu0 0.0
    %2578 = vmatpush1.xpose.msra.mxu0 0.0
    %2579 = vmatprep.subr.mxu0 0.0
    %2580 = vmatpush1.xpose.msra.mxu0 %v2547
    %2581 = vmatprep.subr.mxu0 0.0
    %2582 = vmatpush2.xpose.msra.mxu0 0.0
    %2583 = vmatprep.subr.mxu0 0.0
    %2584 = vmatpush2.xpose.msra.mxu0 0.0
    %2585 = vmatprep.subr.mxu0 0.0
    %2586 = vmatpush2.xpose.msra.mxu0 0.0
    %2587 = vmatprep.subr.mxu0 0.0
    %2588 = vmatpush2.xpose.msra.mxu0 0.0
    %2589 = vmatprep.subr.mxu0 0.0
    %2590 = vmatpush2.xpose.msra.mxu0 0.0
    %2591 = vmatprep.subr.mxu0 0.0
    %2592 = vmatpush2.xpose.msra.mxu0 0.0
    %2593 = vmatprep.subr.mxu0 0.0
    %2594 = vmatpush2.xpose.msra.mxu0 0.0
    %2595 = vmatprep.subr.mxu0 0.0
    %2596 = vmatpush2.xpose.msra.mxu0 0.0
    %2597 = vmatprep.subr.mxu0 0.0
    %2598 = vmatpush2.xpose.msra.mxu0 0.0
    %2599 = vmatprep.subr.mxu0 0.0
    %2600 = vmatpush2.xpose.msra.mxu0 0.0
    %2601 = vmatprep.subr.mxu0 0.0
    %2602 = vmatpush2.xpose.msra.mxu0 0.0
    %2603 = vmatprep.subr.mxu0 0.0
    %2604 = vmatpush2.xpose.msra.mxu0 0.0
    %2605 = vmatprep.subr.mxu0 0.0
    %2606 = vmatpush2.xpose.msra.mxu0 0.0
    %2607 = vmatprep.subr.mxu0 0.0
    %2608 = vmatpush2.xpose.msra.mxu0 0.0
    %2609 = vmatprep.subr.mxu0 0.0
    %2610 = vmatpush2.xpose.msra.mxu0 0.0
    %2611 = vmatprep.subr.mxu0 0.0
    %2612 = vmatpush2.xpose.msra.mxu0 0.0
    %2613 = vmatprep.mubr.f32.mxu0 0.0
    %2614 = vmatmul.mubr.f32.gmra.mxu0 %v2545
    %v2615 = vpop.f32.mrf.mxu0
    %v2616 = vadd.f32 0.0, %v2615
    %v2617 = vpop.f32.mrf.mxu0
    %2618 = vdwg.mxu0
    %v2619 = vsel %vm98, %v2066, 0
    %v2621 = vsel %vm98, %v2080, 0
    %2623 = vmatprep.subr.mxu0 0.0
    %2624 = vmatpush1.xpose.msra.mxu0 0.0
    %2625 = vmatprep.subr.mxu0 0.0
    %2626 = vmatpush1.xpose.msra.mxu0 0.0
    %2627 = vmatprep.subr.mxu0 0.0
    %2628 = vmatpush1.xpose.msra.mxu0 0.0
    %2629 = vmatprep.subr.mxu0 0.0
    %2630 = vmatpush1.xpose.msra.mxu0 0.0
    %2631 = vmatprep.subr.mxu0 0.0
    %2632 = vmatpush1.xpose.msra.mxu0 0.0
    %2633 = vmatprep.subr.mxu0 0.0
    %2634 = vmatpush1.xpose.msra.mxu0 0.0
    %2635 = vmatprep.subr.mxu0 0.0
    %2636 = vmatpush1.xpose.msra.mxu0 0.0
    %2637 = vmatprep.subr.mxu0 0.0
    %2638 = vmatpush1.xpose.msra.mxu0 0.0
    %2639 = vmatprep.subr.mxu0 0.0
    %2640 = vmatpush1.xpose.msra.mxu0 0.0
    %2641 = vmatprep.subr.mxu0 0.0
    %2642 = vmatpush1.xpose.msra.mxu0 0.0
    %2643 = vmatprep.subr.mxu0 0.0
    %2644 = vmatpush1.xpose.msra.mxu0 0.0
    %2645 = vmatprep.subr.mxu0 0.0
    %2646 = vmatpush1.xpose.msra.mxu0 0.0
    %2647 = vmatprep.subr.mxu0 0.0
    %2648 = vmatpush1.xpose.msra.mxu0 0.0
    %2649 = vmatprep.subr.mxu0 0.0
    %2650 = vmatpush1.xpose.msra.mxu0 0.0
    %2651 = vmatprep.subr.mxu0 0.0
    %2652 = vmatpush1.xpose.msra.mxu0 0.0
    %2653 = vmatprep.subr.mxu0 0.0
    %2654 = vmatpush1.xpose.msra.mxu0 %v2621
    %2655 = vmatprep.subr.mxu0 0.0
    %2656 = vmatpush2.xpose.msra.mxu0 0.0
    %2657 = vmatprep.subr.mxu0 0.0
    %2658 = vmatpush2.xpose.msra.mxu0 0.0
    %2659 = vmatprep.subr.mxu0 0.0
    %2660 = vmatpush2.xpose.msra.mxu0 0.0
    %2661 = vmatprep.subr.mxu0 0.0
    %2662 = vmatpush2.xpose.msra.mxu0 0.0
    %2663 = vmatprep.subr.mxu0 0.0
    %2664 = vmatpush2.xpose.msra.mxu0 0.0
    %2665 = vmatprep.subr.mxu0 0.0
    %2666 = vmatpush2.xpose.msra.mxu0 0.0
    %2667 = vmatprep.subr.mxu0 0.0
    %2668 = vmatpush2.xpose.msra.mxu0 0.0
    %2669 = vmatprep.subr.mxu0 0.0
    %2670 = vmatpush2.xpose.msra.mxu0 0.0
    %2671 = vmatprep.subr.mxu0 0.0
    %2672 = vmatpush2.xpose.msra.mxu0 0.0
    %2673 = vmatprep.subr.mxu0 0.0
    %2674 = vmatpush2.xpose.msra.mxu0 0.0
    %2675 = vmatprep.subr.mxu0 0.0
    %2676 = vmatpush2.xpose.msra.mxu0 0.0
    %2677 = vmatprep.subr.mxu0 0.0
    %2678 = vmatpush2.xpose.msra.mxu0 0.0
    %2679 = vmatprep.subr.mxu0 0.0
    %2680 = vmatpush2.xpose.msra.mxu0 0.0
    %2681 = vmatprep.subr.mxu0 0.0
    %2682 = vmatpush2.xpose.msra.mxu0 0.0
    %2683 = vmatprep.subr.mxu0 0.0
    %2684 = vmatpush2.xpose.msra.mxu0 0.0
    %2685 = vmatprep.subr.mxu0 0.0
    %2686 = vmatpush2.xpose.msra.mxu0 0.0
    %2687 = vmatprep.mubr.f32.mxu0 0.0
    %2688 = vmatmul.mubr.f32.gmra.mxu0 %v2619
    %v2689 = vpop.f32.mrf.mxu0
    %v2690 = vadd.f32 0.0, %v2689
    %v2691 = vpop.f32.mrf.mxu0
    %2692 = vdwg.mxu0
    %v2693 = vsel %vm828, %v2172, -inf
    %2694 = vmax.xlane.f32.xlu0 %v2693
    %v2695 = vpop.xlane.xlu0 %2694
    %v2696 = vsel %vm828, %v2246, -inf
    %2697 = vmax.xlane.f32.xlu0 %v2696
    %v2698 = vpop.xlane.xlu0 %2697
    %v2699 = vsel %vm828, %v2320, -inf
    %2700 = vmax.xlane.f32.xlu0 %v2699
    %v2701 = vpop.xlane.xlu0 %2700
    %v2702 = vsel %vm828, %v2394, -inf
    %2703 = vmax.xlane.f32.xlu0 %v2702
    %v2704 = vpop.xlane.xlu0 %2703
    %v2705 = vsel %vm828, %v2468, -inf
    %2706 = vmax.xlane.f32.xlu0 %v2705
    %v2707 = vpop.xlane.xlu0 %2706
    %v2708 = vsel %vm828, %v2542, -inf
    %2709 = vmax.xlane.f32.xlu0 %v2708
    %v2710 = vpop.xlane.xlu0 %2709
    %v2711 = vsel %vm828, %v2616, -inf
    %2712 = vmax.xlane.f32.xlu0 %v2711
    %v2713 = vpop.xlane.xlu0 %2712
    %v2714 = vsel %vm828, %v2690, -inf
    %2715 = vmax.xlane.f32.xlu0 %v2714
    %v2716 = vpop.xlane.xlu0 %2715
    %v2717 = vsub.f32 %v2172, %v2695
    %v2718 = vsub.f32 %v2246, %v2698
    %v2719 = vsub.f32 %v2320, %v2701
    %v2720 = vsub.f32 %v2394, %v2704
    %v2721 = vsub.f32 %v2468, %v2707
    %v2722 = vsub.f32 %v2542, %v2710
    %v2723 = vsub.f32 %v2616, %v2713
    %v2724 = vsub.f32 %v2690, %v2716
    %v2725 = vmul.f32 %v2717, 1.442695
    %v2726 = vpow.pop %v2725
    %v2727 = vmul.f32 %v2718, 1.442695
    %v2728 = vpow.pop %v2727
    %v2729 = vmul.f32 %v2719, 1.442695
    %v2730 = vpow.pop %v2729
    %v2731 = vmul.f32 %v2720, 1.442695
    %v2732 = vpow.pop %v2731
    %v2733 = vmul.f32 %v2721, 1.442695
    %v2734 = vpow.pop %v2733
    %v2735 = vmul.f32 %v2722, 1.442695
    %v2736 = vpow.pop %v2735
    %v2737 = vmul.f32 %v2723, 1.442695
    %v2738 = vpow.pop %v2737
    %v2739 = vmul.f32 %v2724, 1.442695
    %v2740 = vpow.pop %v2739
    %v2741 = vsel %vm828, %v2726, 0.0
    %2742 = vadd.xlane.f32.xlu0 %v2741
    %v2743 = vpop.xlane.xlu0 %2742
    %v2744 = vsel %vm828, %v2728, 0.0
    %2745 = vadd.xlane.f32.xlu0 %v2744
    %v2746 = vpop.xlane.xlu0 %2745
    %v2747 = vsel %vm828, %v2730, 0.0
    %2748 = vadd.xlane.f32.xlu0 %v2747
    %v2749 = vpop.xlane.xlu0 %2748
    %v2750 = vsel %vm828, %v2732, 0.0
    %2751 = vadd.xlane.f32.xlu0 %v2750
    %v2752 = vpop.xlane.xlu0 %2751
    %v2753 = vsel %vm828, %v2734, 0.0
    %2754 = vadd.xlane.f32.xlu0 %v2753
    %v2755 = vpop.xlane.xlu0 %2754
    %v2756 = vsel %vm828, %v2736, 0.0
    %2757 = vadd.xlane.f32.xlu0 %v2756
    %v2758 = vpop.xlane.xlu0 %2757
    %v2759 = vsel %vm828, %v2738, 0.0
    %2760 = vadd.xlane.f32.xlu0 %v2759
    %v2761 = vpop.xlane.xlu0 %2760
    %v2762 = vsel %vm828, %v2740, 0.0
    %2763 = vadd.xlane.f32.xlu0 %v2762
    %v2764 = vpop.xlane.xlu0 %2763
    %v2765 = vrcp.pop %v2743
    %v2766 = vrcp.pop %v2746
    %v2767 = vrcp.pop %v2749
    %v2768 = vrcp.pop %v2752
    %v2769 = vrcp.pop %v2755
    %v2770 = vrcp.pop %v2758
    %v2771 = vrcp.pop %v2761
    %v2772 = vrcp.pop %v2764
    %v2773 = vmul.f32 %v2726, %v2765
    %v2774 = vmul.f32 %v2728, %v2766
    %v2775 = vmul.f32 %v2730, %v2767
    %v2776 = vmul.f32 %v2732, %v2768
    %v2777 = vmul.f32 %v2734, %v2769
    %v2778 = vmul.f32 %v2736, %v2770
    %v2779 = vmul.f32 %v2738, %v2771
    %v2780 = vmul.f32 %v2740, %v2772
    %v2782 = vsel %vm828, %v2773, 0
    %2784 = vmatprep.subr.mxu0 0.0
    %2785 = vmatpush1.msra.mxu0 0.0
    %2786 = vmatprep.subr.mxu0 0.0
    %2787 = vmatpush1.msra.mxu0 0.0
    %2788 = vmatprep.subr.mxu0 0.0
    %2789 = vmatpush1.msra.mxu0 0.0
    %2790 = vmatprep.subr.mxu0 0.0
    %2791 = vmatpush1.msra.mxu0 0.0
    %2792 = vmatprep.subr.mxu0 0.0
    %2793 = vmatpush1.msra.mxu0 0.0
    %2794 = vmatprep.subr.mxu0 0.0
    %2795 = vmatpush1.msra.mxu0 0.0
    %2796 = vmatprep.subr.mxu0 0.0
    %2797 = vmatpush1.msra.mxu0 0.0
    %2798 = vmatprep.subr.mxu0 0.0
    %2799 = vmatpush1.msra.mxu0 0.0
    %2800 = vmatprep.subr.mxu0 0.0
    %2801 = vmatpush1.msra.mxu0 0.0
    %2802 = vmatprep.subr.mxu0 0.0
    %2803 = vmatpush1.msra.mxu0 0.0
    %2804 = vmatprep.subr.mxu0 0.0
    %2805 = vmatpush1.msra.mxu0 0.0
    %2806 = vmatprep.subr.mxu0 0.0
    %2807 = vmatpush1.msra.mxu0 0.0
    %2808 = vmatprep.subr.mxu0 0.0
    %2809 = vmatpush1.msra.mxu0 0.0
    %2810 = vmatprep.subr.mxu0 0.0
    %2811 = vmatpush1.msra.mxu0 0.0
    %2812 = vmatprep.subr.mxu0 0.0
    %2813 = vmatpush1.msra.mxu0 0.0
    %2814 = vmatprep.subr.mxu0 0.0
    %2815 = vmatpush1.msra.mxu0 %v2045
    %2816 = vmatprep.subr.mxu0 0.0
    %2817 = vmatpush2.msra.mxu0 0.0
    %2818 = vmatprep.subr.mxu0 0.0
    %2819 = vmatpush2.msra.mxu0 0.0
    %2820 = vmatprep.subr.mxu0 0.0
    %2821 = vmatpush2.msra.mxu0 0.0
    %2822 = vmatprep.subr.mxu0 0.0
    %2823 = vmatpush2.msra.mxu0 0.0
    %2824 = vmatprep.subr.mxu0 0.0
    %2825 = vmatpush2.msra.mxu0 0.0
    %2826 = vmatprep.subr.mxu0 0.0
    %2827 = vmatpush2.msra.mxu0 0.0
    %2828 = vmatprep.subr.mxu0 0.0
    %2829 = vmatpush2.msra.mxu0 0.0
    %2830 = vmatprep.subr.mxu0 0.0
    %2831 = vmatpush2.msra.mxu0 0.0
    %2832 = vmatprep.subr.mxu0 0.0
    %2833 = vmatpush2.msra.mxu0 0.0
    %2834 = vmatprep.subr.mxu0 0.0
    %2835 = vmatpush2.msra.mxu0 0.0
    %2836 = vmatprep.subr.mxu0 0.0
    %2837 = vmatpush2.msra.mxu0 0.0
    %2838 = vmatprep.subr.mxu0 0.0
    %2839 = vmatpush2.msra.mxu0 0.0
    %2840 = vmatprep.subr.mxu0 0.0
    %2841 = vmatpush2.msra.mxu0 0.0
    %2842 = vmatprep.subr.mxu0 0.0
    %2843 = vmatpush2.msra.mxu0 0.0
    %2844 = vmatprep.subr.mxu0 0.0
    %2845 = vmatpush2.msra.mxu0 0.0
    %2846 = vmatprep.subr.mxu0 0.0
    %2847 = vmatpush2.msra.mxu0 0.0
    %2848 = vmatprep.mubr.f32.mxu0 0.0
    %2849 = vmatmul.mubr.f32.gmra.mxu0 %v2782
    %v2850 = vpop.f32.mrf.mxu0
    %v2851 = vadd.f32 0.0, %v2850
    %v2852 = vpop.f32.mrf.mxu0
    %2853 = vdwg.mxu0
    %v2855 = vsel %vm828, %v2774, 0
    %2857 = vmatprep.subr.mxu0 0.0
    %2858 = vmatpush1.msra.mxu0 0.0
    %2859 = vmatprep.subr.mxu0 0.0
    %2860 = vmatpush1.msra.mxu0 0.0
    %2861 = vmatprep.subr.mxu0 0.0
    %2862 = vmatpush1.msra.mxu0 0.0
    %2863 = vmatprep.subr.mxu0 0.0
    %2864 = vmatpush1.msra.mxu0 0.0
    %2865 = vmatprep.subr.mxu0 0.0
    %2866 = vmatpush1.msra.mxu0 0.0
    %2867 = vmatprep.subr.mxu0 0.0
    %2868 = vmatpush1.msra.mxu0 0.0
    %2869 = vmatprep.subr.mxu0 0.0
    %2870 = vmatpush1.msra.mxu0 0.0
    %2871 = vmatprep.subr.mxu0 0.0
    %2872 = vmatpush1.msra.mxu0 0.0
    %2873 = vmatprep.subr.mxu0 0.0
    %2874 = vmatpush1.msra.mxu0 0.0
    %2875 = vmatprep.subr.mxu0 0.0
    %2876 = vmatpush1.msra.mxu0 0.0
    %2877 = vmatprep.subr.mxu0 0.0
    %2878 = vmatpush1.msra.mxu0 0.0
    %2879 = vmatprep.subr.mxu0 0.0
    %2880 = vmatpush1.msra.mxu0 0.0
    %2881 = vmatprep.subr.mxu0 0.0
    %2882 = vmatpush1.msra.mxu0 0.0
    %2883 = vmatprep.subr.mxu0 0.0
    %2884 = vmatpush1.msra.mxu0 0.0
    %2885 = vmatprep.subr.mxu0 0.0
    %2886 = vmatpush1.msra.mxu0 0.0
    %2887 = vmatprep.subr.mxu0 0.0
    %2888 = vmatpush1.msra.mxu0 %v2083
    %2889 = vmatprep.subr.mxu0 0.0
    %2890 = vmatpush2.msra.mxu0 0.0
    %2891 = vmatprep.subr.mxu0 0.0
    %2892 = vmatpush2.msra.mxu0 0.0
    %2893 = vmatprep.subr.mxu0 0.0
    %2894 = vmatpush2.msra.mxu0 0.0
    %2895 = vmatprep.subr.mxu0 0.0
    %2896 = vmatpush2.msra.mxu0 0.0
    %2897 = vmatprep.subr.mxu0 0.0
    %2898 = vmatpush2.msra.mxu0 0.0
    %2899 = vmatprep.subr.mxu0 0.0
    %2900 = vmatpush2.msra.mxu0 0.0
    %2901 = vmatprep.subr.mxu0 0.0
    %2902 = vmatpush2.msra.mxu0 0.0
    %2903 = vmatprep.subr.mxu0 0.0
    %2904 = vmatpush2.msra.mxu0 0.0
    %2905 = vmatprep.subr.mxu0 0.0
    %2906 = vmatpush2.msra.mxu0 0.0
    %2907 = vmatprep.subr.mxu0 0.0
    %2908 = vmatpush2.msra.mxu0 0.0
    %2909 = vmatprep.subr.mxu0 0.0
    %2910 = vmatpush2.msra.mxu0 0.0
    %2911 = vmatprep.subr.mxu0 0.0
    %2912 = vmatpush2.msra.mxu0 0.0
    %2913 = vmatprep.subr.mxu0 0.0
    %2914 = vmatpush2.msra.mxu0 0.0
    %2915 = vmatprep.subr.mxu0 0.0
    %2916 = vmatpush2.msra.mxu0 0.0
    %2917 = vmatprep.subr.mxu0 0.0
    %2918 = vmatpush2.msra.mxu0 0.0
    %2919 = vmatprep.subr.mxu0 0.0
    %2920 = vmatpush2.msra.mxu0 0.0
    %2921 = vmatprep.mubr.f32.mxu0 0.0
    %2922 = vmatmul.mubr.f32.gmra.mxu0 %v2855
    %v2923 = vpop.f32.mrf.mxu0
    %v2924 = vadd.f32 0.0, %v2923
    %v2925 = vpop.f32.mrf.mxu0
    %2926 = vdwg.mxu0
    %v2928 = vsel %vm828, %v2775, 0
    %2930 = vmatprep.subr.mxu0 0.0
    %2931 = vmatpush1.msra.mxu0 0.0
    %2932 = vmatprep.subr.mxu0 0.0
    %2933 = vmatpush1.msra.mxu0 0.0
    %2934 = vmatprep.subr.mxu0 0.0
    %2935 = vmatpush1.msra.mxu0 0.0
    %2936 = vmatprep.subr.mxu0 0.0
    %2937 = vmatpush1.msra.mxu0 0.0
    %2938 = vmatprep.subr.mxu0 0.0
    %2939 = vmatpush1.msra.mxu0 0.0
    %2940 = vmatprep.subr.mxu0 0.0
    %2941 = vmatpush1.msra.mxu0 0.0
    %2942 = vmatprep.subr.mxu0 0.0
    %2943 = vmatpush1.msra.mxu0 0.0
    %2944 = vmatprep.subr.mxu0 0.0
    %2945 = vmatpush1.msra.mxu0 0.0
    %2946 = vmatprep.subr.mxu0 0.0
    %2947 = vmatpush1.msra.mxu0 0.0
    %2948 = vmatprep.subr.mxu0 0.0
    %2949 = vmatpush1.msra.mxu0 0.0
    %2950 = vmatprep.subr.mxu0 0.0
    %2951 = vmatpush1.msra.mxu0 0.0
    %2952 = vmatprep.subr.mxu0 0.0
    %2953 = vmatpush1.msra.mxu0 0.0
    %2954 = vmatprep.subr.mxu0 0.0
    %2955 = vmatpush1.msra.mxu0 0.0
    %2956 = vmatprep.subr.mxu0 0.0
    %2957 = vmatpush1.msra.mxu0 0.0
    %2958 = vmatprep.subr.mxu0 0.0
    %2959 = vmatpush1.msra.mxu0 0.0
    %2960 = vmatprep.subr.mxu0 0.0
    %2961 = vmatpush1.msra.mxu0 %v2086
    %2962 = vmatprep.subr.mxu0 0.0
    %2963 = vmatpush2.msra.mxu0 0.0
    %2964 = vmatprep.subr.mxu0 0.0
    %2965 = vmatpush2.msra.mxu0 0.0
    %2966 = vmatprep.subr.mxu0 0.0
    %2967 = vmatpush2.msra.mxu0 0.0
    %2968 = vmatprep.subr.mxu0 0.0
    %2969 = vmatpush2.msra.mxu0 0.0
    %2970 = vmatprep.subr.mxu0 0.0
    %2971 = vmatpush2.msra.mxu0 0.0
    %2972 = vmatprep.subr.mxu0 0.0
    %2973 = vmatpush2.msra.mxu0 0.0
    %2974 = vmatprep.subr.mxu0 0.0
    %2975 = vmatpush2.msra.mxu0 0.0
    %2976 = vmatprep.subr.mxu0 0.0
    %2977 = vmatpush2.msra.mxu0 0.0
    %2978 = vmatprep.subr.mxu0 0.0
    %2979 = vmatpush2.msra.mxu0 0.0
    %2980 = vmatprep.subr.mxu0 0.0
    %2981 = vmatpush2.msra.mxu0 0.0
    %2982 = vmatprep.subr.mxu0 0.0
    %2983 = vmatpush2.msra.mxu0 0.0
    %2984 = vmatprep.subr.mxu0 0.0
    %2985 = vmatpush2.msra.mxu0 0.0
    %2986 = vmatprep.subr.mxu0 0.0
    %2987 = vmatpush2.msra.mxu0 0.0
    %2988 = vmatprep.subr.mxu0 0.0
    %2989 = vmatpush2.msra.mxu0 0.0
    %2990 = vmatprep.subr.mxu0 0.0
    %2991 = vmatpush2.msra.mxu0 0.0
    %2992 = vmatprep.subr.mxu0 0.0
    %2993 = vmatpush2.msra.mxu0 0.0
    %2994 = vmatprep.mubr.f32.mxu0 0.0
    %2995 = vmatmul.mubr.f32.gmra.mxu0 %v2928
    %v2996 = vpop.f32.mrf.mxu0
    %v2997 = vadd.f32 0.0, %v2996
    %v2998 = vpop.f32.mrf.mxu0
    %2999 = vdwg.mxu0
    %v3001 = vsel %vm828, %v2776, 0
    %3003 = vmatprep.subr.mxu0 0.0
    %3004 = vmatpush1.msra.mxu0 0.0
    %3005 = vmatprep.subr.mxu0 0.0
    %3006 = vmatpush1.msra.mxu0 0.0
    %3007 = vmatprep.subr.mxu0 0.0
    %3008 = vmatpush1.msra.mxu0 0.0
    %3009 = vmatprep.subr.mxu0 0.0
    %3010 = vmatpush1.msra.mxu0 0.0
    %3011 = vmatprep.subr.mxu0 0.0
    %3012 = vmatpush1.msra.mxu0 0.0
    %3013 = vmatprep.subr.mxu0 0.0
    %3014 = vmatpush1.msra.mxu0 0.0
    %3015 = vmatprep.subr.mxu0 0.0
    %3016 = vmatpush1.msra.mxu0 0.0
    %3017 = vmatprep.subr.mxu0 0.0
    %3018 = vmatpush1.msra.mxu0 0.0
    %3019 = vmatprep.subr.mxu0 0.0
    %3020 = vmatpush1.msra.mxu0 0.0
    %3021 = vmatprep.subr.mxu0 0.0
    %3022 = vmatpush1.msra.mxu0 0.0
    %3023 = vmatprep.subr.mxu0 0.0
    %3024 = vmatpush1.msra.mxu0 0.0
    %3025 = vmatprep.subr.mxu0 0.0
    %3026 = vmatpush1.msra.mxu0 0.0
    %3027 = vmatprep.subr.mxu0 0.0
    %3028 = vmatpush1.msra.mxu0 0.0
    %3029 = vmatprep.subr.mxu0 0.0
    %3030 = vmatpush1.msra.mxu0 0.0
    %3031 = vmatprep.subr.mxu0 0.0
    %3032 = vmatpush1.msra.mxu0 0.0
    %3033 = vmatprep.subr.mxu0 0.0
    %3034 = vmatpush1.msra.mxu0 %v2089
    %3035 = vmatprep.subr.mxu0 0.0
    %3036 = vmatpush2.msra.mxu0 0.0
    %3037 = vmatprep.subr.mxu0 0.0
    %3038 = vmatpush2.msra.mxu0 0.0
    %3039 = vmatprep.subr.mxu0 0.0
    %3040 = vmatpush2.msra.mxu0 0.0
    %3041 = vmatprep.subr.mxu0 0.0
    %3042 = vmatpush2.msra.mxu0 0.0
    %3043 = vmatprep.subr.mxu0 0.0
    %3044 = vmatpush2.msra.mxu0 0.0
    %3045 = vmatprep.subr.mxu0 0.0
    %3046 = vmatpush2.msra.mxu0 0.0
    %3047 = vmatprep.subr.mxu0 0.0
    %3048 = vmatpush2.msra.mxu0 0.0
    %3049 = vmatprep.subr.mxu0 0.0
    %3050 = vmatpush2.msra.mxu0 0.0
    %3051 = vmatprep.subr.mxu0 0.0
    %3052 = vmatpush2.msra.mxu0 0.0
    %3053 = vmatprep.subr.mxu0 0.0
    %3054 = vmatpush2.msra.mxu0 0.0
    %3055 = vmatprep.subr.mxu0 0.0
    %3056 = vmatpush2.msra.mxu0 0.0
    %3057 = vmatprep.subr.mxu0 0.0
    %3058 = vmatpush2.msra.mxu0 0.0
    %3059 = vmatprep.subr.mxu0 0.0
    %3060 = vmatpush2.msra.mxu0 0.0
    %3061 = vmatprep.subr.mxu0 0.0
    %3062 = vmatpush2.msra.mxu0 0.0
    %3063 = vmatprep.subr.mxu0 0.0
    %3064 = vmatpush2.msra.mxu0 0.0
    %3065 = vmatprep.subr.mxu0 0.0
    %3066 = vmatpush2.msra.mxu0 0.0
    %3067 = vmatprep.mubr.f32.mxu0 0.0
    %3068 = vmatmul.mubr.f32.gmra.mxu0 %v3001
    %v3069 = vpop.f32.mrf.mxu0
    %v3070 = vadd.f32 0.0, %v3069
    %v3071 = vpop.f32.mrf.mxu0
    %3072 = vdwg.mxu0
    %v3074 = vsel %vm828, %v2777, 0
    %3076 = vmatprep.subr.mxu0 0.0
    %3077 = vmatpush1.msra.mxu0 0.0
    %3078 = vmatprep.subr.mxu0 0.0
    %3079 = vmatpush1.msra.mxu0 0.0
    %3080 = vmatprep.subr.mxu0 0.0
    %3081 = vmatpush1.msra.mxu0 0.0
    %3082 = vmatprep.subr.mxu0 0.0
    %3083 = vmatpush1.msra.mxu0 0.0
    %3084 = vmatprep.subr.mxu0 0.0
    %3085 = vmatpush1.msra.mxu0 0.0
    %3086 = vmatprep.subr.mxu0 0.0
    %3087 = vmatpush1.msra.mxu0 0.0
    %3088 = vmatprep.subr.mxu0 0.0
    %3089 = vmatpush1.msra.mxu0 0.0
    %3090 = vmatprep.subr.mxu0 0.0
    %3091 = vmatpush1.msra.mxu0 0.0
    %3092 = vmatprep.subr.mxu0 0.0
    %3093 = vmatpush1.msra.mxu0 0.0
    %3094 = vmatprep.subr.mxu0 0.0
    %3095 = vmatpush1.msra.mxu0 0.0
    %3096 = vmatprep.subr.mxu0 0.0
    %3097 = vmatpush1.msra.mxu0 0.0
    %3098 = vmatprep.subr.mxu0 0.0
    %3099 = vmatpush1.msra.mxu0 0.0
    %3100 = vmatprep.subr.mxu0 0.0
    %3101 = vmatpush1.msra.mxu0 0.0
    %3102 = vmatprep.subr.mxu0 0.0
    %3103 = vmatpush1.msra.mxu0 0.0
    %3104 = vmatprep.subr.mxu0 0.0
    %3105 = vmatpush1.msra.mxu0 0.0
    %3106 = vmatprep.subr.mxu0 0.0
    %3107 = vmatpush1.msra.mxu0 %v2048
    %3108 = vmatprep.subr.mxu0 0.0
    %3109 = vmatpush2.msra.mxu0 0.0
    %3110 = vmatprep.subr.mxu0 0.0
    %3111 = vmatpush2.msra.mxu0 0.0
    %3112 = vmatprep.subr.mxu0 0.0
    %3113 = vmatpush2.msra.mxu0 0.0
    %3114 = vmatprep.subr.mxu0 0.0
    %3115 = vmatpush2.msra.mxu0 0.0
    %3116 = vmatprep.subr.mxu0 0.0
    %3117 = vmatpush2.msra.mxu0 0.0
    %3118 = vmatprep.subr.mxu0 0.0
    %3119 = vmatpush2.msra.mxu0 0.0
    %3120 = vmatprep.subr.mxu0 0.0
    %3121 = vmatpush2.msra.mxu0 0.0
    %3122 = vmatprep.subr.mxu0 0.0
    %3123 = vmatpush2.msra.mxu0 0.0
    %3124 = vmatprep.subr.mxu0 0.0
    %3125 = vmatpush2.msra.mxu0 0.0
    %3126 = vmatprep.subr.mxu0 0.0
    %3127 = vmatpush2.msra.mxu0 0.0
    %3128 = vmatprep.subr.mxu0 0.0
    %3129 = vmatpush2.msra.mxu0 0.0
    %3130 = vmatprep.subr.mxu0 0.0
    %3131 = vmatpush2.msra.mxu0 0.0
    %3132 = vmatprep.subr.mxu0 0.0
    %3133 = vmatpush2.msra.mxu0 0.0
    %3134 = vmatprep.subr.mxu0 0.0
    %3135 = vmatpush2.msra.mxu0 0.0
    %3136 = vmatprep.subr.mxu0 0.0
    %3137 = vmatpush2.msra.mxu0 0.0
    %3138 = vmatprep.subr.mxu0 0.0
    %3139 = vmatpush2.msra.mxu0 0.0
    %3140 = vmatprep.mubr.f32.mxu0 0.0
    %3141 = vmatmul.mubr.f32.gmra.mxu0 %v3074
    %v3142 = vpop.f32.mrf.mxu0
    %v3143 = vadd.f32 0.0, %v3142
    %v3144 = vpop.f32.mrf.mxu0
    %3145 = vdwg.mxu0
    %v3147 = vsel %vm828, %v2778, 0
    %3149 = vmatprep.subr.mxu0 0.0
    %3150 = vmatpush1.msra.mxu0 0.0
    %3151 = vmatprep.subr.mxu0 0.0
    %3152 = vmatpush1.msra.mxu0 0.0
    %3153 = vmatprep.subr.mxu0 0.0
    %3154 = vmatpush1.msra.mxu0 0.0
    %3155 = vmatprep.subr.mxu0 0.0
    %3156 = vmatpush1.msra.mxu0 0.0
    %3157 = vmatprep.subr.mxu0 0.0
    %3158 = vmatpush1.msra.mxu0 0.0
    %3159 = vmatprep.subr.mxu0 0.0
    %3160 = vmatpush1.msra.mxu0 0.0
    %3161 = vmatprep.subr.mxu0 0.0
    %3162 = vmatpush1.msra.mxu0 0.0
    %3163 = vmatprep.subr.mxu0 0.0
    %3164 = vmatpush1.msra.mxu0 0.0
    %3165 = vmatprep.subr.mxu0 0.0
    %3166 = vmatpush1.msra.mxu0 0.0
    %3167 = vmatprep.subr.mxu0 0.0
    %3168 = vmatpush1.msra.mxu0 0.0
    %3169 = vmatprep.subr.mxu0 0.0
    %3170 = vmatpush1.msra.mxu0 0.0
    %3171 = vmatprep.subr.mxu0 0.0
    %3172 = vmatpush1.msra.mxu0 0.0
    %3173 = vmatprep.subr.mxu0 0.0
    %3174 = vmatpush1.msra.mxu0 0.0
    %3175 = vmatprep.subr.mxu0 0.0
    %3176 = vmatpush1.msra.mxu0 0.0
    %3177 = vmatprep.subr.mxu0 0.0
    %3178 = vmatpush1.msra.mxu0 0.0
    %3179 = vmatprep.subr.mxu0 0.0
    %3180 = vmatpush1.msra.mxu0 %v2093
    %3181 = vmatprep.subr.mxu0 0.0
    %3182 = vmatpush2.msra.mxu0 0.0
    %3183 = vmatprep.subr.mxu0 0.0
    %3184 = vmatpush2.msra.mxu0 0.0
    %3185 = vmatprep.subr.mxu0 0.0
    %3186 = vmatpush2.msra.mxu0 0.0
    %3187 = vmatprep.subr.mxu0 0.0
    %3188 = vmatpush2.msra.mxu0 0.0
    %3189 = vmatprep.subr.mxu0 0.0
    %3190 = vmatpush2.msra.mxu0 0.0
    %3191 = vmatprep.subr.mxu0 0.0
    %3192 = vmatpush2.msra.mxu0 0.0
    %3193 = vmatprep.subr.mxu0 0.0
    %3194 = vmatpush2.msra.mxu0 0.0
    %3195 = vmatprep.subr.mxu0 0.0
    %3196 = vmatpush2.msra.mxu0 0.0
    %3197 = vmatprep.subr.mxu0 0.0
    %3198 = vmatpush2.msra.mxu0 0.0
    %3199 = vmatprep.subr.mxu0 0.0
    %3200 = vmatpush2.msra.mxu0 0.0
    %3201 = vmatprep.subr.mxu0 0.0
    %3202 = vmatpush2.msra.mxu0 0.0
    %3203 = vmatprep.subr.mxu0 0.0
    %3204 = vmatpush2.msra.mxu0 0.0
    %3205 = vmatprep.subr.mxu0 0.0
    %3206 = vmatpush2.msra.mxu0 0.0
    %3207 = vmatprep.subr.mxu0 0.0
    %3208 = vmatpush2.msra.mxu0 0.0
    %3209 = vmatprep.subr.mxu0 0.0
    %3210 = vmatpush2.msra.mxu0 0.0
    %3211 = vmatprep.subr.mxu0 0.0
    %3212 = vmatpush2.msra.mxu0 0.0
    %3213 = vmatprep.mubr.f32.mxu0 0.0
    %3214 = vmatmul.mubr.f32.gmra.mxu0 %v3147
    %v3215 = vpop.f32.mrf.mxu0
    %v3216 = vadd.f32 0.0, %v3215
    %v3217 = vpop.f32.mrf.mxu0
    %3218 = vdwg.mxu0
    %v3220 = vsel %vm828, %v2779, 0
    %3222 = vmatprep.subr.mxu0 0.0
    %3223 = vmatpush1.msra.mxu0 0.0
    %3224 = vmatprep.subr.mxu0 0.0
    %3225 = vmatpush1.msra.mxu0 0.0
    %3226 = vmatprep.subr.mxu0 0.0
    %3227 = vmatpush1.msra.mxu0 0.0
    %3228 = vmatprep.subr.mxu0 0.0
    %3229 = vmatpush1.msra.mxu0 0.0
    %3230 = vmatprep.subr.mxu0 0.0
    %3231 = vmatpush1.msra.mxu0 0.0
    %3232 = vmatprep.subr.mxu0 0.0
    %3233 = vmatpush1.msra.mxu0 0.0
    %3234 = vmatprep.subr.mxu0 0.0
    %3235 = vmatpush1.msra.mxu0 0.0
    %3236 = vmatprep.subr.mxu0 0.0
    %3237 = vmatpush1.msra.mxu0 0.0
    %3238 = vmatprep.subr.mxu0 0.0
    %3239 = vmatpush1.msra.mxu0 0.0
    %3240 = vmatprep.subr.mxu0 0.0
    %3241 = vmatpush1.msra.mxu0 0.0
    %3242 = vmatprep.subr.mxu0 0.0
    %3243 = vmatpush1.msra.mxu0 0.0
    %3244 = vmatprep.subr.mxu0 0.0
    %3245 = vmatpush1.msra.mxu0 0.0
    %3246 = vmatprep.subr.mxu0 0.0
    %3247 = vmatpush1.msra.mxu0 0.0
    %3248 = vmatprep.subr.mxu0 0.0
    %3249 = vmatpush1.msra.mxu0 0.0
    %3250 = vmatprep.subr.mxu0 0.0
    %3251 = vmatpush1.msra.mxu0 0.0
    %3252 = vmatprep.subr.mxu0 0.0
    %3253 = vmatpush1.msra.mxu0 %v2096
    %3254 = vmatprep.subr.mxu0 0.0
    %3255 = vmatpush2.msra.mxu0 0.0
    %3256 = vmatprep.subr.mxu0 0.0
    %3257 = vmatpush2.msra.mxu0 0.0
    %3258 = vmatprep.subr.mxu0 0.0
    %3259 = vmatpush2.msra.mxu0 0.0
    %3260 = vmatprep.subr.mxu0 0.0
    %3261 = vmatpush2.msra.mxu0 0.0
    %3262 = vmatprep.subr.mxu0 0.0
    %3263 = vmatpush2.msra.mxu0 0.0
    %3264 = vmatprep.subr.mxu0 0.0
    %3265 = vmatpush2.msra.mxu0 0.0
    %3266 = vmatprep.subr.mxu0 0.0
    %3267 = vmatpush2.msra.mxu0 0.0
    %3268 = vmatprep.subr.mxu0 0.0
    %3269 = vmatpush2.msra.mxu0 0.0
    %3270 = vmatprep.subr.mxu0 0.0
    %3271 = vmatpush2.msra.mxu0 0.0
    %3272 = vmatprep.subr.mxu0 0.0
    %3273 = vmatpush2.msra.mxu0 0.0
    %3274 = vmatprep.subr.mxu0 0.0
    %3275 = vmatpush2.msra.mxu0 0.0
    %3276 = vmatprep.subr.mxu0 0.0
    %3277 = vmatpush2.msra.mxu0 0.0
    %3278 = vmatprep.subr.mxu0 0.0
    %3279 = vmatpush2.msra.mxu0 0.0
    %3280 = vmatprep.subr.mxu0 0.0
    %3281 = vmatpush2.msra.mxu0 0.0
    %3282 = vmatprep.subr.mxu0 0.0
    %3283 = vmatpush2.msra.mxu0 0.0
    %3284 = vmatprep.subr.mxu0 0.0
    %3285 = vmatpush2.msra.mxu0 0.0
    %3286 = vmatprep.mubr.f32.mxu0 0.0
    %3287 = vmatmul.mubr.f32.gmra.mxu0 %v3220
    %v3288 = vpop.f32.mrf.mxu0
    %v3289 = vadd.f32 0.0, %v3288
    %v3290 = vpop.f32.mrf.mxu0
    %3291 = vdwg.mxu0
    %v3293 = vsel %vm828, %v2780, 0
    %3295 = vmatprep.subr.mxu0 0.0
    %3296 = vmatpush1.msra.mxu0 0.0
    %3297 = vmatprep.subr.mxu0 0.0
    %3298 = vmatpush1.msra.mxu0 0.0
    %3299 = vmatprep.subr.mxu0 0.0
    %3300 = vmatpush1.msra.mxu0 0.0
    %3301 = vmatprep.subr.mxu0 0.0
    %3302 = vmatpush1.msra.mxu0 0.0
    %3303 = vmatprep.subr.mxu0 0.0
    %3304 = vmatpush1.msra.mxu0 0.0
    %3305 = vmatprep.subr.mxu0 0.0
    %3306 = vmatpush1.msra.mxu0 0.0
    %3307 = vmatprep.subr.mxu0 0.0
    %3308 = vmatpush1.msra.mxu0 0.0
    %3309 = vmatprep.subr.mxu0 0.0
    %3310 = vmatpush1.msra.mxu0 0.0
    %3311 = vmatprep.subr.mxu0 0.0
    %3312 = vmatpush1.msra.mxu0 0.0
    %3313 = vmatprep.subr.mxu0 0.0
    %3314 = vmatpush1.msra.mxu0 0.0
    %3315 = vmatprep.subr.mxu0 0.0
    %3316 = vmatpush1.msra.mxu0 0.0
    %3317 = vmatprep.subr.mxu0 0.0
    %3318 = vmatpush1.msra.mxu0 0.0
    %3319 = vmatprep.subr.mxu0 0.0
    %3320 = vmatpush1.msra.mxu0 0.0
    %3321 = vmatprep.subr.mxu0 0.0
    %3322 = vmatpush1.msra.mxu0 0.0
    %3323 = vmatprep.subr.mxu0 0.0
    %3324 = vmatpush1.msra.mxu0 0.0
    %3325 = vmatprep.subr.mxu0 0.0
    %3326 = vmatpush1.msra.mxu0 %v2099
    %3327 = vmatprep.subr.mxu0 0.0
    %3328 = vmatpush2.msra.mxu0 0.0
    %3329 = vmatprep.subr.mxu0 0.0
    %3330 = vmatpush2.msra.mxu0 0.0
    %3331 = vmatprep.subr.mxu0 0.0
    %3332 = vmatpush2.msra.mxu0 0.0
    %3333 = vmatprep.subr.mxu0 0.0
    %3334 = vmatpush2.msra.mxu0 0.0
    %3335 = vmatprep.subr.mxu0 0.0
    %3336 = vmatpush2.msra.mxu0 0.0
    %3337 = vmatprep.subr.mxu0 0.0
    %3338 = vmatpush2.msra.mxu0 0.0
    %3339 = vmatprep.subr.mxu0 0.0
    %3340 = vmatpush2.msra.mxu0 0.0
    %3341 = vmatprep.subr.mxu0 0.0
    %3342 = vmatpush2.msra.mxu0 0.0
    %3343 = vmatprep.subr.mxu0 0.0
    %3344 = vmatpush2.msra.mxu0 0.0
    %3345 = vmatprep.subr.mxu0 0.0
    %3346 = vmatpush2.msra.mxu0 0.0
    %3347 = vmatprep.subr.mxu0 0.0
    %3348 = vmatpush2.msra.mxu0 0.0
    %3349 = vmatprep.subr.mxu0 0.0
    %3350 = vmatpush2.msra.mxu0 0.0
    %3351 = vmatprep.subr.mxu0 0.0
    %3352 = vmatpush2.msra.mxu0 0.0
    %3353 = vmatprep.subr.mxu0 0.0
    %3354 = vmatpush2.msra.mxu0 0.0
    %3355 = vmatprep.subr.mxu0 0.0
    %3356 = vmatpush2.msra.mxu0 0.0
    %3357 = vmatprep.subr.mxu0 0.0
    %3358 = vmatpush2.msra.mxu0 0.0
    %3359 = vmatprep.mubr.f32.mxu0 0.0
    %3360 = vmatmul.mubr.f32.gmra.mxu0 %v3293
    %v3361 = vpop.f32.mrf.mxu0
    %v3362 = vadd.f32 0.0, %v3361
    %v3363 = vpop.f32.mrf.mxu0
    %3364 = vdwg.mxu0
    %3366 = vrot.lane.b32.xlu0 %v2924, 32
    %v3367 = vpop.permute.xlu0 %3366
    %3370 = vrot.lane.b32.xlu0 %v2997, 64
    %v3371 = vpop.permute.xlu0 %3370
    %3374 = vrot.lane.b32.xlu0 %v3070, 96
    %v3375 = vpop.permute.xlu0 %3374
    %v3377 = vsel %vm98, %v2851, %v3367
    %v3378 = vsel %vm1514, %v3377, %v3371
    %v3379 = vsel %vm1516, %v3378, %v3375
    %3381 = vrot.lane.b32.xlu0 %v3216, 32
    %v3382 = vpop.permute.xlu0 %3381
    %3385 = vrot.lane.b32.xlu0 %v3289, 64
    %v3386 = vpop.permute.xlu0 %3385
    %3389 = vrot.lane.b32.xlu0 %v3362, 96
    %v3390 = vpop.permute.xlu0 %3389
    %v3392 = vsel %vm98, %v3143, %v3382
    %v3393 = vsel %vm1514, %v3392, %v3386
    %v3394 = vsel %vm1516, %v3393, %v3390
    %v3395 = vpack.c.bf16 %v3394, %v3379
    %s3396 = scalar_lea.vmem %s3, 64
    %v3397 = vld [vmem:[%s3396] sm:$0xf]
    %v3398 = vld [vmem:[%s3396 + $0x4] sm:$0xf]
    %v3399 = vld [vmem:[%s3396 + $0x8] sm:$0xf]
    %v3400 = vld [vmem:[%s3396 + $0xc] sm:$0xf]
    %v3401 = vld [vmem:[%s3396 + $0x10] sm:$0xf]
    %v3402 = vld [vmem:[%s3396 + $0x14] sm:$0xf]
    %v3403 = vld [vmem:[%s3396 + $0x18] sm:$0xf]
    %v3404 = vld [vmem:[%s3396 + $0x1c] sm:$0xf]
    %v3405 = vld [vmem:[%s3396 + $0x20] sm:$0xf]
    %v3406 = vld [vmem:[%s3396 + $0x24] sm:$0xf]
    %v3407 = vld [vmem:[%s3396 + $0x28] sm:$0xf]
    %v3408 = vld [vmem:[%s3396 + $0x2c] sm:$0xf]
    %v3409 = vld [vmem:[%s3396 + $0x30] sm:$0xf]
    %v3410 = vld [vmem:[%s3396 + $0x34] sm:$0xf]
    %v3411 = vld [vmem:[%s3396 + $0x38] sm:$0xf]
    %v3412 = vld [vmem:[%s3396 + $0x3c] sm:$0xf]
    %s3413 = scalar_lea.vmem %s4, 1
    %v3414 = vld [vmem:[%s3413] sm:$0x1]
    %v3416 = vlaneseq
    %v3417 = vshrl.u32 %v3416, 7
    %v3418 = vsub.s32 0, %v3417
    %v3419 = vrot.slane %v3414, %v3418
    %v3437 = vunpack.c.l.b16 %v3397
    %v3438 = vunpack.c.l.b16 %v3398
    %v3439 = vunpack.c.l.b16 %v3399
    %v3440 = vunpack.c.l.b16 %v3400
    %v3441 = vunpack.c.l.b16 %v3401
    %v3442 = vunpack.c.l.b16 %v3402
    %v3443 = vunpack.c.l.b16 %v3403
    %v3444 = vunpack.c.l.b16 %v3404
    %v3445 = vunpack.c.l.b16 %v3405
    %v3446 = vunpack.c.l.b16 %v3406
    %v3447 = vunpack.c.l.b16 %v3407
    %v3448 = vunpack.c.l.b16 %v3408
    %v3449 = vunpack.c.l.b16 %v3409
    %v3450 = vunpack.c.l.b16 %v3410
    %v3451 = vunpack.c.l.b16 %v3411
    %v3452 = vunpack.c.l.b16 %v3412
    %v3453 = vpack.c.b16 %v3438, %v3437
    %v3454 = vpack.c.b16 %v3440, %v3439
    %v3455 = vpack.c.b16 %v3442, %v3441
    %v3456 = vpack.c.b16 %v3444, %v3443
    %v3457 = vpack.c.b16 %v3446, %v3445
    %v3458 = vpack.c.b16 %v3448, %v3447
    %v3459 = vpack.c.b16 %v3450, %v3449
    %v3460 = vpack.c.b16 %v3452, %v3451
    %3469 = vmatprep.subr.bf16.mxu0 0
    %3470 = vmatpush1.bf16.msra.mxu0 %v3460
    %3471 = vmatprep.subr.bf16.mxu0 0
    %3472 = vmatpush1.bf16.msra.mxu0 %v3459
    %3473 = vmatprep.subr.bf16.mxu0 0
    %3474 = vmatpush1.bf16.msra.mxu0 %v3458
    %3475 = vmatprep.subr.bf16.mxu0 0
    %3476 = vmatpush1.bf16.msra.mxu0 %v3457
    %3477 = vmatprep.subr.bf16.mxu0 0
    %3478 = vmatpush1.bf16.msra.mxu0 %v3456
    %3479 = vmatprep.subr.bf16.mxu0 0
    %3480 = vmatpush1.bf16.msra.mxu0 %v3455
    %3481 = vmatprep.subr.bf16.mxu0 0
    %3482 = vmatpush1.bf16.msra.mxu0 %v3454
    %3483 = vmatprep.subr.bf16.mxu0 0
    %3484 = vmatpush1.bf16.msra.mxu0 %v3453
    %3485 = vmatprep.subr.bf16.mxu0 0
    %3486 = vmatpush2.bf16.msra.mxu0 0
    %3487 = vmatprep.subr.bf16.mxu0 0
    %3488 = vmatpush2.bf16.msra.mxu0 0
    %3489 = vmatprep.subr.bf16.mxu0 0
    %3490 = vmatpush2.bf16.msra.mxu0 0
    %3491 = vmatprep.subr.bf16.mxu0 0
    %3492 = vmatpush2.bf16.msra.mxu0 0
    %3493 = vmatprep.subr.bf16.mxu0 0
    %3494 = vmatpush2.bf16.msra.mxu0 0
    %3495 = vmatprep.subr.bf16.mxu0 0
    %3496 = vmatpush2.bf16.msra.mxu0 0
    %3497 = vmatprep.subr.bf16.mxu0 0
    %3498 = vmatpush2.bf16.msra.mxu0 0
    %3499 = vmatprep.subr.bf16.mxu0 0
    %3500 = vmatpush2.bf16.msra.mxu0 0
    %3501 = vmatprep.mubr.bf16.mxu0 0
    %3502 = vmatmul.mubr.bf16.gmra.mxu0 %v3395
    %v3503 = vpop.f32.mrf.mxu0
    %v3504 = vadd.f32 %v3419, %v3503
    %v3505 = vpop.f32.mrf.mxu0
    %v3506 = vpop.f32.mrf.mxu0
    %v3507 = vadd.f32 %v3419, %v3506
    %v3508 = vpop.f32.mrf.mxu0
    %3509 = vdwg.mxu0
    %v3510 = vadd.f32 %v3504, %v1920
    %v3511 = vadd.f32 %v3507, %v1921
    %s3512 = scalar_lea.vmem %s5, 1
    %v3513 = vld [vmem:[%s3512] sm:$0x1]
    %s3514 = scalar_lea.vmem %s6, 1
    %v3515 = vld [vmem:[%s3514] sm:$0x1]
    %v3516 = vsel %vm98, %v3510, 0.0
    %3517 = vadd.xlane.f32.xlu0 %v3516
    %v3518 = vpop.xlane.xlu0 %3517
    %v3519 = vsel %vm98, %v3511, 0.0
    %3520 = vadd.xlane.f32.xlu0 %v3519
    %v3521 = vpop.xlane.xlu0 %3520
    %v3522 = vmul.f32 %v3518, %v1656
    %v3523 = vmul.f32 %v3521, %v1656
    %v3524 = vsub.f32 %v3510, %v3522
    %v3525 = vsub.f32 %v3511, %v3523
    %v3526 = vmul.f32 %v3524, %v3524
    %v3527 = vmul.f32 %v3525, %v3525
    %v3528 = vsel %vm98, %v3526, 0.0
    %3529 = vadd.xlane.f32.xlu0 %v3528
    %v3530 = vpop.xlane.xlu0 %3529
    %v3531 = vsel %vm98, %v3527, 0.0
    %3532 = vadd.xlane.f32.xlu0 %v3531
    %v3533 = vpop.xlane.xlu0 %3532
    %v3534 = vmul.f32 %v3530, %v1656
    %v3535 = vmul.f32 %v3533, %v1656
    %v3536 = vadd.f32 %v3534, 1e-05
    %v3537 = vadd.f32 %v3535, 1e-05
    %v3538 = vrsqrt.pop %v3536
    %v3539 = vrsqrt.pop %v3537
    %v3540 = vmul.f32 %v3524, %v3538
    %v3541 = vmul.f32 %v3525, %v3539
    %v3543 = vlaneseq
    %v3544 = vshrl.u32 %v3543, 7
    %v3545 = vsub.s32 0, %v3544
    %v3546 = vrot.slane %v3513, %v3545
    %v3548 = vmul.f32 %v3540, %v3546
    %v3549 = vmul.f32 %v3541, %v3546
    %v3551 = vlaneseq
    %v3552 = vshrl.u32 %v3551, 7
    %v3553 = vsub.s32 0, %v3552
    %v3554 = vrot.slane %v3515, %v3553
    %v3556 = vadd.f32 %v3548, %v3554
    %v3557 = vadd.f32 %v3549, %v3554
    %v3558 = vpack.c.bf16 %v3557, %v3556
    %s3559 = scalar_lea.vmem %s7, 16
    %v3560 = vld [vmem:[%s3559] sm:$0xf]
    %v3561 = vld [vmem:[%s3559 + $0x4] sm:$0xf]
    %v3562 = vld [vmem:[%s3559 + $0x8] sm:$0xf]
    %v3563 = vld [vmem:[%s3559 + $0xc] sm:$0xf]
    %s3564 = scalar_lea.vmem %s8, 1
    %v3565 = vld [vmem:[%s3564] sm:$0x1]
    %v3567 = vlaneseq
    %v3568 = vshrl.u32 %v3567, 7
    %v3569 = vsub.s32 0, %v3568
    %v3570 = vrot.slane %v3565, %v3569
    %v3576 = vunpack.c.l.b16 %v3560
    %v3577 = vunpack.c.l.b16 %v3561
    %v3578 = vunpack.c.l.b16 %v3562
    %v3579 = vunpack.c.l.b16 %v3563
    %v3580 = vpack.c.b16 %v3577, %v3576
    %v3581 = vpack.c.b16 %v3579, %v3578
    %v3585 = vsel %vm98, %v3558, 0
    %3587 = vmatprep.subr.bf16.mxu0 0
    %3588 = vmatpush1.bf16.msra.mxu0 0
    %3589 = vmatprep.subr.bf16.mxu0 0
    %3590 = vmatpush1.bf16.msra.mxu0 0
    %3591 = vmatprep.subr.bf16.mxu0 0
    %3592 = vmatpush1.bf16.msra.mxu0 0
    %3593 = vmatprep.subr.bf16.mxu0 0
    %3594 = vmatpush1.bf16.msra.mxu0 0
    %3595 = vmatprep.subr.bf16.mxu0 0
    %3596 = vmatpush1.bf16.msra.mxu0 0
    %3597 = vmatprep.subr.bf16.mxu0 0
    %3598 = vmatpush1.bf16.msra.mxu0 0
    %3599 = vmatprep.subr.bf16.mxu0 0
    %3600 = vmatpush1.bf16.msra.mxu0 %v3581
    %3601 = vmatprep.subr.bf16.mxu0 0
    %3602 = vmatpush1.bf16.msra.mxu0 %v3580
    %3603 = vmatprep.subr.bf16.mxu0 0
    %3604 = vmatpush2.bf16.msra.mxu0 0
    %3605 = vmatprep.subr.bf16.mxu0 0
    %3606 = vmatpush2.bf16.msra.mxu0 0
    %3607 = vmatprep.subr.bf16.mxu0 0
    %3608 = vmatpush2.bf16.msra.mxu0 0
    %3609 = vmatprep.subr.bf16.mxu0 0
    %3610 = vmatpush2.bf16.msra.mxu0 0
    %3611 = vmatprep.subr.bf16.mxu0 0
    %3612 = vmatpush2.bf16.msra.mxu0 0
    %3613 = vmatprep.subr.bf16.mxu0 0
    %3614 = vmatpush2.bf16.msra.mxu0 0
    %3615 = vmatprep.subr.bf16.mxu0 0
    %3616 = vmatpush2.bf16.msra.mxu0 0
    %3617 = vmatprep.subr.bf16.mxu0 0
    %3618 = vmatpush2.bf16.msra.mxu0 0
    %3619 = vmatprep.mubr.bf16.mxu0 0
    %3620 = vmatmul.mubr.bf16.gmra.mxu0 %v3585
    %v3621 = vpop.f32.mrf.mxu0
    %v3622 = vadd.f32 %v3570, %v3621
    %v3623 = vpop.f32.mrf.mxu0
    %v3624 = vpop.f32.mrf.mxu0
    %v3625 = vadd.f32 %v3570, %v3624
    %v3626 = vpop.f32.mrf.mxu0
    %3627 = vdwg.mxu0
    %v3628 = vmax.f32 %v3622, 0.0
    %v3629 = vmax.f32 %v3625, 0.0
    %v3630 = vpack.c.bf16 %v3629, %v3628
    %s3631 = scalar_lea.vmem %s9, 64
    %v3632 = vld [vmem:[%s3631] sm:$0xf]
    %v3633 = vld [vmem:[%s3631 + $0x4] sm:$0xf]
    %v3634 = vld [vmem:[%s3631 + $0x8] sm:$0xf]
    %v3635 = vld [vmem:[%s3631 + $0xc] sm:$0xf]
    %v3636 = vld [vmem:[%s3631 + $0x10] sm:$0xf]
    %v3637 = vld [vmem:[%s3631 + $0x14] sm:$0xf]
    %v3638 = vld [vmem:[%s3631 + $0x18] sm:$0xf]
    %v3639 = vld [vmem:[%s3631 + $0x1c] sm:$0xf]
    %v3640 = vld [vmem:[%s3631 + $0x20] sm:$0xf]
    %v3641 = vld [vmem:[%s3631 + $0x24] sm:$0xf]
    %v3642 = vld [vmem:[%s3631 + $0x28] sm:$0xf]
    %v3643 = vld [vmem:[%s3631 + $0x2c] sm:$0xf]
    %v3644 = vld [vmem:[%s3631 + $0x30] sm:$0xf]
    %v3645 = vld [vmem:[%s3631 + $0x34] sm:$0xf]
    %v3646 = vld [vmem:[%s3631 + $0x38] sm:$0xf]
    %v3647 = vld [vmem:[%s3631 + $0x3c] sm:$0xf]
    %s3648 = scalar_lea.vmem %s10, 1
    %v3649 = vld [vmem:[%s3648] sm:$0x1]
    %v3651 = vlaneseq
    %v3652 = vshrl.u32 %v3651, 7
    %v3653 = vsub.s32 0, %v3652
    %v3654 = vrot.slane %v3649, %v3653
    %v3672 = vunpack.c.l.b16 %v3632
    %v3673 = vunpack.c.l.b16 %v3633
    %v3674 = vunpack.c.l.b16 %v3634
    %v3675 = vunpack.c.l.b16 %v3635
    %v3676 = vunpack.c.l.b16 %v3636
    %v3677 = vunpack.c.l.b16 %v3637
    %v3678 = vunpack.c.l.b16 %v3638
    %v3679 = vunpack.c.l.b16 %v3639
    %v3680 = vunpack.c.l.b16 %v3640
    %v3681 = vunpack.c.l.b16 %v3641
    %v3682 = vunpack.c.l.b16 %v3642
    %v3683 = vunpack.c.l.b16 %v3643
    %v3684 = vunpack.c.l.b16 %v3644
    %v3685 = vunpack.c.l.b16 %v3645
    %v3686 = vunpack.c.l.b16 %v3646
    %v3687 = vunpack.c.l.b16 %v3647
    %v3688 = vpack.c.b16 %v3673, %v3672
    %v3689 = vpack.c.b16 %v3675, %v3674
    %v3690 = vpack.c.b16 %v3677, %v3676
    %v3691 = vpack.c.b16 %v3679, %v3678
    %v3692 = vpack.c.b16 %v3681, %v3680
    %v3693 = vpack.c.b16 %v3683, %v3682
    %v3694 = vpack.c.b16 %v3685, %v3684
    %v3695 = vpack.c.b16 %v3687, %v3686
    %3704 = vmatprep.subr.bf16.mxu0 0
    %3705 = vmatpush1.bf16.msra.mxu0 %v3695
    %3706 = vmatprep.subr.bf16.mxu0 0
    %3707 = vmatpush1.bf16.msra.mxu0 %v3694
    %3708 = vmatprep.subr.bf16.mxu0 0
    %3709 = vmatpush1.bf16.msra.mxu0 %v3693
    %3710 = vmatprep.subr.bf16.mxu0 0
    %3711 = vmatpush1.bf16.msra.mxu0 %v3692
    %3712 = vmatprep.subr.bf16.mxu0 0
    %3713 = vmatpush1.bf16.msra.mxu0 %v3691
    %3714 = vmatprep.subr.bf16.mxu0 0
    %3715 = vmatpush1.bf16.msra.mxu0 %v3690
    %3716 = vmatprep.subr.bf16.mxu0 0
    %3717 = vmatpush1.bf16.msra.mxu0 %v3689
    %3718 = vmatprep.subr.bf16.mxu0 0
    %3719 = vmatpush1.bf16.msra.mxu0 %v3688
    %3720 = vmatprep.subr.bf16.mxu0 0
    %3721 = vmatpush2.bf16.msra.mxu0 0
    %3722 = vmatprep.subr.bf16.mxu0 0
    %3723 = vmatpush2.bf16.msra.mxu0 0
    %3724 = vmatprep.subr.bf16.mxu0 0
    %3725 = vmatpush2.bf16.msra.mxu0 0
    %3726 = vmatprep.subr.bf16.mxu0 0
    %3727 = vmatpush2.bf16.msra.mxu0 0
    %3728 = vmatprep.subr.bf16.mxu0 0
    %3729 = vmatpush2.bf16.msra.mxu0 0
    %3730 = vmatprep.subr.bf16.mxu0 0
    %3731 = vmatpush2.bf16.msra.mxu0 0
    %3732 = vmatprep.subr.bf16.mxu0 0
    %3733 = vmatpush2.bf16.msra.mxu0 0
    %3734 = vmatprep.subr.bf16.mxu0 0
    %3735 = vmatpush2.bf16.msra.mxu0 0
    %3736 = vmatprep.mubr.bf16.mxu0 0
    %3737 = vmatmul.mubr.bf16.gmra.mxu0 %v3630
    %v3738 = vpop.f32.mrf.mxu0
    %v3739 = vadd.f32 %v3654, %v3738
    %v3740 = vpop.f32.mrf.mxu0
    %v3741 = vpop.f32.mrf.mxu0
    %v3742 = vadd.f32 %v3654, %v3741
    %v3743 = vpop.f32.mrf.mxu0
    %3744 = vdwg.mxu0
    %v3745 = vadd.f32 %v3739, %v3556
    %v3746 = vadd.f32 %v3742, %v3557
    %s3747 = scalar_lea.vmem %s11, 1
    %v3748 = vld [vmem:[%s3747] sm:$0x1]
    %s3749 = scalar_lea.vmem %s12, 1
    %v3750 = vld [vmem:[%s3749] sm:$0x1]
    %v3751 = vsel %vm98, %v3745, 0.0
    %3752 = vadd.xlane.f32.xlu0 %v3751
    %v3753 = vpop.xlane.xlu0 %3752
    %v3754 = vsel %vm98, %v3746, 0.0
    %3755 = vadd.xlane.f32.xlu0 %v3754
    %v3756 = vpop.xlane.xlu0 %3755
    %v3757 = vmul.f32 %v3753, %v1656
    %v3758 = vmul.f32 %v3756, %v1656
    %v3759 = vsub.f32 %v3745, %v3757
    %v3760 = vsub.f32 %v3746, %v3758
    %v3761 = vmul.f32 %v3759, %v3759
    %v3762 = vmul.f32 %v3760, %v3760
    %v3763 = vsel %vm98, %v3761, 0.0
    %3764 = vadd.xlane.f32.xlu0 %v3763
    %v3765 = vpop.xlane.xlu0 %3764
    %v3766 = vsel %vm98, %v3762, 0.0
    %3767 = vadd.xlane.f32.xlu0 %v3766
    %v3768 = vpop.xlane.xlu0 %3767
    %v3769 = vmul.f32 %v3765, %v1656
    %v3770 = vmul.f32 %v3768, %v1656
    %v3771 = vadd.f32 %v3769, 1e-05
    %v3772 = vadd.f32 %v3770, 1e-05
    %v3773 = vrsqrt.pop %v3771
    %v3774 = vrsqrt.pop %v3772
    %v3775 = vmul.f32 %v3759, %v3773
    %v3776 = vmul.f32 %v3760, %v3774
    %v3778 = vlaneseq
    %v3779 = vshrl.u32 %v3778, 7
    %v3780 = vsub.s32 0, %v3779
    %v3781 = vrot.slane %v3748, %v3780
    %v3783 = vmul.f32 %v3775, %v3781
    %v3784 = vmul.f32 %v3776, %v3781
    %v3786 = vlaneseq
    %v3787 = vshrl.u32 %v3786, 7
    %v3788 = vsub.s32 0, %v3787
    %v3789 = vrot.slane %v3750, %v3788
    %v3791 = vadd.f32 %v3783, %v3789
    %v3792 = vadd.f32 %v3784, %v3789
    %v3793 = vsel %vm98, %v3791, -inf
    %v3794 = vrot.slane %v3793, 4
    %v3795 = vmax.f32 %v3793, %v3794
    %v3796 = vrot.slane %v3795, 2
    %v3797 = vmax.f32 %v3795, %v3796
    %v3798 = vrot.slane %v3797, 1
    %v3799 = vmax.f32 %v3797, %v3798
    %v3800 = vsel %vm98, %v3792, -inf
    %v3801 = vrot.slane %v3800, 4
    %v3802 = vmax.f32 %v3800, %v3801
    %v3803 = vrot.slane %v3802, 2
    %v3804 = vmax.f32 %v3802, %v3803
    %v3805 = vrot.slane %v3804, 1
    %v3806 = vmax.f32 %v3804, %v3805
    %v3807 = vpack.c.bf16 %v3799, %v3799
    %v3808 = vpack.c.bf16 %v3806, %v3806
    %v3809 = vld [vmem:[%s13] sm:$0xf]
    %v3810 = vld [vmem:[%s13 + $0x4] sm:$0xf]
    %v3811 = vld [vmem:[%s13 + $0x8] sm:$0xf]
    %v3812 = vld [vmem:[%s13 + $0xc] sm:$0xf]
    %v3813 = vld [vmem:[%s14] sm:$0x1]
    %v3815 = vlaneseq
    %v3816 = vshrl.u32 %v3815, 7
    %v3817 = vsub.s32 0, %v3816
    %v3818 = vrot.slane %v3813, %v3817
    %v3822 = vunpack.c.l.b16 %v3807
    %v3823 = vunpack.c.l.b16 %v3808
    %vm3824 = vcmask 1041409
    %v3825 = vsel %vm3824, %v3823, %v3822
    %v3826 = vpack.c.b16 %v3825, %v3825
    %v3831 = vunpack.c.l.b16 %v3809
    %v3832 = vunpack.c.l.b16 %v3810
    %v3833 = vunpack.c.l.b16 %v3811
    %v3834 = vunpack.c.l.b16 %v3812
    %v3835 = vpack.c.b16 %v3832, %v3831
    %v3836 = vpack.c.b16 %v3834, %v3833
    %v3840 = vsel %vm98, %v3826, 0
    %3842 = vmatprep.subr.bf16.mxu0 0
    %3843 = vmatpush1.bf16.msra.mxu0 0
    %3844 = vmatprep.subr.bf16.mxu0 0
    %3845 = vmatpush1.bf16.msra.mxu0 0
    %3846 = vmatprep.subr.bf16.mxu0 0
    %3847 = vmatpush1.bf16.msra.mxu0 0
    %3848 = vmatprep.subr.bf16.mxu0 0
    %3849 = vmatpush1.bf16.msra.mxu0 0
    %3850 = vmatprep.subr.bf16.mxu0 0
    %3851 = vmatpush1.bf16.msra.mxu0 0
    %3852 = vmatprep.subr.bf16.mxu0 0
    %3853 = vmatpush1.bf16.msra.mxu0 0
    %3854 = vmatprep.subr.bf16.mxu0 0
    %3855 = vmatpush1.bf16.msra.mxu0 %v3836
    %3856 = vmatprep.subr.bf16.mxu0 0
    %3857 = vmatpush1.bf16.msra.mxu0 %v3835
    %3858 = vmatprep.subr.bf16.mxu0 0
    %3859 = vmatpush2.bf16.msra.mxu0 0
    %3860 = vmatprep.subr.bf16.mxu0 0
    %3861 = vmatpush2.bf16.msra.mxu0 0
    %3862 = vmatprep.subr.bf16.mxu0 0
    %3863 = vmatpush2.bf16.msra.mxu0 0
    %3864 = vmatprep.subr.bf16.mxu0 0
    %3865 = vmatpush2.bf16.msra.mxu0 0
    %3866 = vmatprep.subr.bf16.mxu0 0
    %3867 = vmatpush2.bf16.msra.mxu0 0
    %3868 = vmatprep.subr.bf16.mxu0 0
    %3869 = vmatpush2.bf16.msra.mxu0 0
    %3870 = vmatprep.subr.bf16.mxu0 0
    %3871 = vmatpush2.bf16.msra.mxu0 0
    %3872 = vmatprep.subr.bf16.mxu0 0
    %3873 = vmatpush2.bf16.msra.mxu0 0
    %3874 = vmatprep.mubr.bf16.mxu0 0
    %3875 = vmatmul.mubr.bf16.gmra.mxu0 %v3840
    %v3876 = vpop.f32.mrf.mxu0
    %v3877 = vadd.f32 %v3818, %v3876
    %v3878 = vpop.f32.mrf.mxu0
    %v3879 = vpop.f32.mrf.mxu0
    %v3880 = vpop.f32.mrf.mxu0
    %3881 = vdwg.mxu0
    %vm3882 = vcmask 25600
    %3883 = vst.msk [vmem:[#allocation2] sm:$0x3] %vm3882, %v3877
    // Predicated region
    $region62: #{tpu_custom_call.1} parent=1 // pred_check
      _
    $region63: #{tpu_custom_call.1} parent=1 // pred_check_branch
      %3885 = sbr.rel (0) target = $region65
    $region64: #{tpu_custom_call.1} parent=1 // pred_region
      %s3887 = ssub.s32 32, 32
      %3888 = vsyncadd [#allocation3], %s3887
      %s3890 = sshll.u32 [#allocation2], 4
      %s3891 = int_to_ptr.vmem [resolvable:$true] %s3890
      %3893 = dma.vmem_to_hbm [thread:$0]  %s3891, 32, %s15, [#allocation3]
    $region65: #{tpu_custom_call.1} parent=1 // pred_fallthru
      _
    // Predicated region
    $region66: #{tpu_custom_call.1} parent=1 // pred_check
      _
    $region67: #{tpu_custom_call.1} parent=1 // pred_check_branch
      %3895 = sbr.rel (0) target = $region69
    $region68: #{tpu_custom_call.1} parent=1 // pred_region
      %3896 = dma.done [#allocation3], 32
    $region69: #{tpu_custom_call.1} parent=1 // pred_fallthru
      _
    %3897 = vsyncpa [#allocation3], 1

</llo_original>
